<compile_context>
chip_gen: v5e
topology: v5e:2x2
jax: 0.10.0
libtpu: 0.0.40
codegen_flags: <defaults>
</compile_context>

<pallas_src>
import functools

import numpy as np

import jax
import jax.numpy as jnp
from jax import lax
from jax.experimental import pallas as pl
from jax.experimental.pallas import tpu as pltpu


_VMEM = pl.BlockSpec(memory_space=pltpu.MemorySpace.VMEM)


# ---------------------------------------------------------------------------
# Fused Pallas kernel: conv3x3+BN+ReLU (x4, with residuals) -> conv1x1
# ---------------------------------------------------------------------------
def _resblock2_kernel(x_ref, mask_ref,
                      w1_ref, b1_ref, w2_ref, b2_ref, w3_ref, b3_ref,
                      w4_ref, b4_ref, w5_ref, b5_ref, out_ref, *, W, NP):
    """Fused ResBlock2 forward in channel-major layout.

    x_ref:    (Cin0, NP)      input activation, NP = N*H*W on the lane axis
    mask_ref: (9, NP)         per-tap zero-padding validity masks
    w{i}_ref: (9, Cout, Cin)  3x3 weights, tap-major, BN scale folded in
    b{i}_ref: (Cout, 1)       folded bias: (conv_bias - mean)*scale + beta
    w5_ref:   (Cout5, Cin5)   1x1 conv weight;  b5_ref: (Cout5, 1)
    out_ref:  (Cout5, NP)
    """
    masks = mask_ref[...]                                 # (9, NP)

    def conv3x3_bn_relu(act, w_ref, b_ref):
        # Center tap first: no shift / no mask; folded BN bias seeds the accumulator.
        acc = jnp.dot(w_ref[4], act, preferred_element_type=jnp.float32) + b_ref[...]
        for kh in range(3):
            for kw in range(3):
                t = kh * 3 + kw
                if t == 4:
                    continue
                s = (kh - 1) * W + (kw - 1)               # flat spatial source offset
                # y[:, q] = act[:, q + s]  (lane roll on the XLU)
                shifted = pltpu.roll(act, shift=(-s) % NP, axis=1)
                # Zero lanes whose true source lies in the zero-padding region
                # (also kills roll wrap-around / cross-batch contamination).
                tap = shifted * masks[t:t + 1, :]
                acc = acc + jnp.dot(w_ref[t], tap, preferred_element_type=jnp.float32)
        return jnp.maximum(acc, 0.0)                      # ReLU

    a1 = conv3x3_bn_relu(x_ref[...], w1_ref, b1_ref)      # block1
    a2 = conv3x3_bn_relu(a1, w2_ref, b2_ref) + a1         # block2 + x
    a3 = conv3x3_bn_relu(a2, w3_ref, b3_ref) + a2         # block3 + x
    a4 = conv3x3_bn_relu(a3, w4_ref, b4_ref) + a3         # block4 + x
    # block5: 1x1 conv only (filter_dim > output_dim -> no norm / no ReLU)
    out_ref[...] = jnp.dot(w5_ref[...], a4, preferred_element_type=jnp.float32) + b5_ref[...]


# ---------------------------------------------------------------------------
# Wrapper
# ---------------------------------------------------------------------------
def _make_tap_masks(N, H, W):
    """(9, N*H*W) f32 validity masks for the 3x3 taps (stride 1, zero padding 1)."""
    hh, ww = np.meshgrid(np.arange(H), np.arange(W), indexing="ij")
    rows = []
    for kh in range(3):
        for kw in range(3):
            dy, dx = kh - 1, kw - 1
            valid = ((hh + dy >= 0) & (hh + dy < H) &
                     (ww + dx >= 0) & (ww + dx < W)).astype(np.float32)
            rows.append(np.tile(valid.reshape(-1), N))
    return jnp.asarray(np.stack(rows, axis=0))


def resblock2_forward(x_nchw, params):
    N, Cin, H, W = x_nchw.shape
    NP = N * H * W
    Cout = params["b5"][0].shape[0]

    # NCHW -> channel-major (C, N*H*W): batch+spatial lane-dense (512 = 4*128).
    x_cm = jnp.transpose(x_nchw, (1, 0, 2, 3)).reshape(Cin, NP)
    masks = _make_tap_masks(N, H, W)   # compile-time constant under jit

    kernel = functools.partial(_resblock2_kernel, W=W, NP=NP)
    inputs = [x_cm, masks,
              *params["b1"], *params["b2"], *params["b3"], *params["b4"], *params["b5"]]

    out_cm = pl.pallas_call(
        kernel,
        out_shape=jax.ShapeDtypeStruct((Cout, NP), jnp.float32),
        in_specs=[_VMEM] * len(inputs),
        out_specs=_VMEM,
    )(*inputs)

    # (Cout, N*H*W) -> NCHW
    return jnp.transpose(out_cm.reshape(Cout, N, H, W), (1, 0, 2, 3))


# ---------------------------------------------------------------------------
# Deterministic synthetic parameters (shapes from ResBlock2.__init__)
# ---------------------------------------------------------------------------
def make_conv3x3_block_params(key, cin, cout, eps=1e-5):
    ks = jax.random.split(key, 6)
    w_oihw = jax.random.normal(ks[0], (cout, cin, 3, 3), jnp.float32) * 0.1
    b = jax.random.normal(ks[1], (cout,), jnp.float32) * 0.1
    gamma = 1.0 + 0.1 * jax.random.normal(ks[2], (cout,), jnp.float32)
    beta = 0.1 * jax.random.normal(ks[3], (cout,), jnp.float32)
    mean = 0.1 * jax.random.normal(ks[4], (cout,), jnp.float32)
    var = jnp.abs(jax.random.normal(ks[5], (cout,), jnp.float32)) + 0.5
    scale = gamma / jnp.sqrt(var + eps)

    # Kernel params: BN scale folded into weights, tap-major (9, Cout, Cin);
    # folded bias = (conv_bias - mean) * scale + beta, shaped (Cout, 1).
    w_k = jnp.transpose(w_oihw * scale[:, None, None, None], (2, 3, 0, 1)).reshape(9, cout, cin)
    b_k = ((b - mean) * scale + beta).reshape(cout, 1)

    # Reference params: unfolded HWIO weights + raw BN stats for lax.conv check.
    ref = (jnp.transpose(w_oihw, (2, 3, 1, 0)), b, gamma, beta, mean, var, eps)
    return (w_k, b_k), ref


def make_conv1x1_block_params(key, cin, cout):
    k0, k1 = jax.random.split(key)
    w_oi = jax.random.normal(k0, (cout, cin), jnp.float32) * 0.1
    b = jax.random.normal(k1, (cout,), jnp.float32) * 0.1
    return (w_oi, b.reshape(cout, 1)), (w_oi.T, b)


# ---------------------------------------------------------------------------
# Pure-JAX reference (unfolded BN) for correctness check only
# ---------------------------------------------------------------------------
def ref_forward(x_nchw, refs):
    def block3x3(x, rp, res=None):
        w_hwio, b, gamma, beta, mean, var, eps = rp
        y = lax.conv_general_dilated(
            x, w_hwio, (1, 1), "SAME",
            dimension_numbers=("NHWC", "HWIO", "NHWC")) + b
        y = (y - mean) * (gamma / jnp.sqrt(var + eps)) + beta
        y = jnp.maximum(y, 0.0)
        return y + res if res is not None else y

    x = jnp.transpose(x_nchw, (0, 2, 3, 1))
    x = block3x3(x, refs["b1"])
    x = block3x3(x, refs["b2"], res=x)
    x = block3x3(x, refs["b3"], res=x)
    x = block3x3(x, refs["b4"], res=x)
    w_io, b5 = refs["b5"]
    x = jnp.dot(x, w_io) + b5
    return jnp.transpose(x, (0, 3, 1, 2))


# ---------------------------------------------------------------------------
if __name__ == "__main__":
    key = jax.random.PRNGKey(0)
    kx, k1, k2, k3, k4, k5 = jax.random.split(key, 6)

    # ResBlock2(input_dim=4, filter_dim=8, output_dim=4)
    N, INPUT_DIM, H, W = 2, 4, 16, 16
    FILTER_DIM, OUTPUT_DIM = 8, 4

    x = jax.random.normal(kx, (N, INPUT_DIM, H, W), jnp.float32)   # NCHW like PyTorch

    p1, r1 = make_conv3x3_block_params(k1, INPUT_DIM, FILTER_DIM)
    p2, r2 = make_conv3x3_block_params(k2, FILTER_DIM, FILTER_DIM)
    p3, r3 = make_conv3x3_block_params(k3, FILTER_DIM, FILTER_DIM)
    p4, r4 = make_conv3x3_block_params(k4, FILTER_DIM, FILTER_DIM)
    p5, r5 = make_conv1x1_block_params(k5, FILTER_DIM, OUTPUT_DIM)

    params = {"b1": p1, "b2": p2, "b3": p3, "b4": p4, "b5": p5}
    refs = {"b1": r1, "b2": r2, "b3": r3, "b4": r4, "b5": r5}

    out = jax.jit(lambda xx: resblock2_forward(xx, params))(x)
    out = jax.block_until_ready(out)

    assert out.shape == (N, OUTPUT_DIM, H, W), out.shape
    ref = ref_forward(x, refs)
    max_err = float(jnp.max(jnp.abs(out - ref)))
    assert jnp.allclose(out, ref, atol=2e-4, rtol=2e-4), max_err

    print("KERNEL_OK")
</pallas_src>

<mosaic_0001>
module attributes {stable_mosaic.version = 11 : i64} {
  func.func @_resblock2_kernel(%arg0: memref<4x512xf32, #tpu.memory_space<vmem>>, %arg1: memref<9x512xf32, #tpu.memory_space<vmem>>, %arg2: memref<9x8x4xf32, #tpu.memory_space<vmem>>, %arg3: memref<8x1xf32, #tpu.memory_space<vmem>>, %arg4: memref<9x8x8xf32, #tpu.memory_space<vmem>>, %arg5: memref<8x1xf32, #tpu.memory_space<vmem>>, %arg6: memref<9x8x8xf32, #tpu.memory_space<vmem>>, %arg7: memref<8x1xf32, #tpu.memory_space<vmem>>, %arg8: memref<9x8x8xf32, #tpu.memory_space<vmem>>, %arg9: memref<8x1xf32, #tpu.memory_space<vmem>>, %arg10: memref<4x8xf32, #tpu.memory_space<vmem>>, %arg11: memref<4x1xf32, #tpu.memory_space<vmem>>, %arg12: memref<4x512xf32, #tpu.memory_space<vmem>>) attributes {dimension_semantics = [], scalar_prefetch = 0 : i64, scratch_operands = 0 : i64, tpu.core_type = #tpu.core_type<tc>} {
    %c0 = arith.constant 0 : index
    %c0_0 = arith.constant 0 : index
    %0 = vector.load %arg1[%c0, %c0_0] : memref<9x512xf32, #tpu.memory_space<vmem>>, vector<9x512xf32>
    %c0_1 = arith.constant 0 : index
    %c0_2 = arith.constant 0 : index
    %1 = vector.load %arg0[%c0_1, %c0_2] : memref<4x512xf32, #tpu.memory_space<vmem>>, vector<4x512xf32>
    %c4 = arith.constant 4 : index
    %c0_3 = arith.constant 0 : index
    %c0_4 = arith.constant 0 : index
    %2 = vector.load %arg2[%c4, %c0_3, %c0_4] : memref<9x8x4xf32, #tpu.memory_space<vmem>>, vector<1x8x4xf32>
    %3 = vector.shape_cast %2 : vector<1x8x4xf32> to vector<8x4xf32>
    %cst = arith.constant dense<0.000000e+00> : vector<8x512xf32>
    %4 = tpu.matmul %3, %1, %cst {dimension_numbers = #tpu.dot_dimension_numbers<[1], [0], [0], [1], [0, 0, 1, 1], [], []>} : vector<8x4xf32>, vector<4x512xf32>, vector<8x512xf32> -> vector<8x512xf32>
    %c0_5 = arith.constant 0 : index
    %c0_6 = arith.constant 0 : index
    %5 = vector.load %arg3[%c0_5, %c0_6] : memref<8x1xf32, #tpu.memory_space<vmem>>, vector<8x1xf32>
    %6 = vector.broadcast %5 : vector<8x1xf32> to vector<8x512xf32>
    %7 = arith.addf %4, %6 : vector<8x512xf32>
    %c17_i32 = arith.constant 17 : i32
    %8 = tpu.dynamic_rotate %1 by %c17_i32 dim 1 : vector<4x512xf32>, i32 -> vector<4x512xf32>
    %9 = vector.extract_strided_slice %0 {offsets = [0, 0], sizes = [1, 512], strides = [1, 1]} : vector<9x512xf32> to vector<1x512xf32>
    %10 = vector.broadcast %9 : vector<1x512xf32> to vector<4x512xf32>
    %11 = arith.mulf %8, %10 : vector<4x512xf32>
    %c0_7 = arith.constant 0 : index
    %c0_8 = arith.constant 0 : index
    %c0_9 = arith.constant 0 : index
    %12 = vector.load %arg2[%c0_7, %c0_8, %c0_9] : memref<9x8x4xf32, #tpu.memory_space<vmem>>, vector<1x8x4xf32>
    %13 = vector.shape_cast %12 : vector<1x8x4xf32> to vector<8x4xf32>
    %cst_10 = arith.constant dense<0.000000e+00> : vector<8x512xf32>
    %14 = tpu.matmul %13, %11, %cst_10 {dimension_numbers = #tpu.dot_dimension_numbers<[1], [0], [0], [1], [0, 0, 1, 1], [], []>} : vector<8x4xf32>, vector<4x512xf32>, vector<8x512xf32> -> vector<8x512xf32>
    %15 = arith.addf %7, %14 : vector<8x512xf32>
    %c16_i32 = arith.constant 16 : i32
    %16 = tpu.dynamic_rotate %1 by %c16_i32 dim 1 : vector<4x512xf32>, i32 -> vector<4x512xf32>
    %17 = vector.extract_strided_slice %0 {offsets = [1, 0], sizes = [1, 512], strides = [1, 1]} : vector<9x512xf32> to vector<1x512xf32>
    %18 = vector.broadcast %17 : vector<1x512xf32> to vector<4x512xf32>
    %19 = arith.mulf %16, %18 : vector<4x512xf32>
    %c1 = arith.constant 1 : index
    %c0_11 = arith.constant 0 : index
    %c0_12 = arith.constant 0 : index
    %20 = vector.load %arg2[%c1, %c0_11, %c0_12] : memref<9x8x4xf32, #tpu.memory_space<vmem>>, vector<1x8x4xf32>
    %21 = vector.shape_cast %20 : vector<1x8x4xf32> to vector<8x4xf32>
    %cst_13 = arith.constant dense<0.000000e+00> : vector<8x512xf32>
    %22 = tpu.matmul %21, %19, %cst_13 {dimension_numbers = #tpu.dot_dimension_numbers<[1], [0], [0], [1], [0, 0, 1, 1], [], []>} : vector<8x4xf32>, vector<4x512xf32>, vector<8x512xf32> -> vector<8x512xf32>
    %23 = arith.addf %15, %22 : vector<8x512xf32>
    %c15_i32 = arith.constant 15 : i32
    %24 = tpu.dynamic_rotate %1 by %c15_i32 dim 1 : vector<4x512xf32>, i32 -> vector<4x512xf32>
    %25 = vector.extract_strided_slice %0 {offsets = [2, 0], sizes = [1, 512], strides = [1, 1]} : vector<9x512xf32> to vector<1x512xf32>
    %26 = vector.broadcast %25 : vector<1x512xf32> to vector<4x512xf32>
    %27 = arith.mulf %24, %26 : vector<4x512xf32>
    %c2 = arith.constant 2 : index
    %c0_14 = arith.constant 0 : index
    %c0_15 = arith.constant 0 : index
    %28 = vector.load %arg2[%c2, %c0_14, %c0_15] : memref<9x8x4xf32, #tpu.memory_space<vmem>>, vector<1x8x4xf32>
    %29 = vector.shape_cast %28 : vector<1x8x4xf32> to vector<8x4xf32>
    %cst_16 = arith.constant dense<0.000000e+00> : vector<8x512xf32>
    %30 = tpu.matmul %29, %27, %cst_16 {dimension_numbers = #tpu.dot_dimension_numbers<[1], [0], [0], [1], [0, 0, 1, 1], [], []>} : vector<8x4xf32>, vector<4x512xf32>, vector<8x512xf32> -> vector<8x512xf32>
    %31 = arith.addf %23, %30 : vector<8x512xf32>
    %c1_i32 = arith.constant 1 : i32
    %32 = tpu.dynamic_rotate %1 by %c1_i32 dim 1 : vector<4x512xf32>, i32 -> vector<4x512xf32>
    %33 = vector.extract_strided_slice %0 {offsets = [3, 0], sizes = [1, 512], strides = [1, 1]} : vector<9x512xf32> to vector<1x512xf32>
    %34 = vector.broadcast %33 : vector<1x512xf32> to vector<4x512xf32>
    %35 = arith.mulf %32, %34 : vector<4x512xf32>
    %c3 = arith.constant 3 : index
    %c0_17 = arith.constant 0 : index
    %c0_18 = arith.constant 0 : index
    %36 = vector.load %arg2[%c3, %c0_17, %c0_18] : memref<9x8x4xf32, #tpu.memory_space<vmem>>, vector<1x8x4xf32>
    %37 = vector.shape_cast %36 : vector<1x8x4xf32> to vector<8x4xf32>
    %cst_19 = arith.constant dense<0.000000e+00> : vector<8x512xf32>
    %38 = tpu.matmul %37, %35, %cst_19 {dimension_numbers = #tpu.dot_dimension_numbers<[1], [0], [0], [1], [0, 0, 1, 1], [], []>} : vector<8x4xf32>, vector<4x512xf32>, vector<8x512xf32> -> vector<8x512xf32>
    %39 = arith.addf %31, %38 : vector<8x512xf32>
    %c511_i32 = arith.constant 511 : i32
    %40 = tpu.dynamic_rotate %1 by %c511_i32 dim 1 : vector<4x512xf32>, i32 -> vector<4x512xf32>
    %41 = vector.extract_strided_slice %0 {offsets = [5, 0], sizes = [1, 512], strides = [1, 1]} : vector<9x512xf32> to vector<1x512xf32>
    %42 = vector.broadcast %41 : vector<1x512xf32> to vector<4x512xf32>
    %43 = arith.mulf %40, %42 : vector<4x512xf32>
    %c5 = arith.constant 5 : index
    %c0_20 = arith.constant 0 : index
    %c0_21 = arith.constant 0 : index
    %44 = vector.load %arg2[%c5, %c0_20, %c0_21] : memref<9x8x4xf32, #tpu.memory_space<vmem>>, vector<1x8x4xf32>
    %45 = vector.shape_cast %44 : vector<1x8x4xf32> to vector<8x4xf32>
    %cst_22 = arith.constant dense<0.000000e+00> : vector<8x512xf32>
    %46 = tpu.matmul %45, %43, %cst_22 {dimension_numbers = #tpu.dot_dimension_numbers<[1], [0], [0], [1], [0, 0, 1, 1], [], []>} : vector<8x4xf32>, vector<4x512xf32>, vector<8x512xf32> -> vector<8x512xf32>
    %47 = arith.addf %39, %46 : vector<8x512xf32>
    %c497_i32 = arith.constant 497 : i32
    %48 = tpu.dynamic_rotate %1 by %c497_i32 dim 1 : vector<4x512xf32>, i32 -> vector<4x512xf32>
    %49 = vector.extract_strided_slice %0 {offsets = [6, 0], sizes = [1, 512], strides = [1, 1]} : vector<9x512xf32> to vector<1x512xf32>
    %50 = vector.broadcast %49 : vector<1x512xf32> to vector<4x512xf32>
    %51 = arith.mulf %48, %50 : vector<4x512xf32>
    %c6 = arith.constant 6 : index
    %c0_23 = arith.constant 0 : index
    %c0_24 = arith.constant 0 : index
    %52 = vector.load %arg2[%c6, %c0_23, %c0_24] : memref<9x8x4xf32, #tpu.memory_space<vmem>>, vector<1x8x4xf32>
    %53 = vector.shape_cast %52 : vector<1x8x4xf32> to vector<8x4xf32>
    %cst_25 = arith.constant dense<0.000000e+00> : vector<8x512xf32>
    %54 = tpu.matmul %53, %51, %cst_25 {dimension_numbers = #tpu.dot_dimension_numbers<[1], [0], [0], [1], [0, 0, 1, 1], [], []>} : vector<8x4xf32>, vector<4x512xf32>, vector<8x512xf32> -> vector<8x512xf32>
    %55 = arith.addf %47, %54 : vector<8x512xf32>
    %c496_i32 = arith.constant 496 : i32
    %56 = tpu.dynamic_rotate %1 by %c496_i32 dim 1 : vector<4x512xf32>, i32 -> vector<4x512xf32>
    %57 = vector.extract_strided_slice %0 {offsets = [7, 0], sizes = [1, 512], strides = [1, 1]} : vector<9x512xf32> to vector<1x512xf32>
    %58 = vector.broadcast %57 : vector<1x512xf32> to vector<4x512xf32>
    %59 = arith.mulf %56, %58 : vector<4x512xf32>
    %c7 = arith.constant 7 : index
    %c0_26 = arith.constant 0 : index
    %c0_27 = arith.constant 0 : index
    %60 = vector.load %arg2[%c7, %c0_26, %c0_27] : memref<9x8x4xf32, #tpu.memory_space<vmem>>, vector<1x8x4xf32>
    %61 = vector.shape_cast %60 : vector<1x8x4xf32> to vector<8x4xf32>
    %cst_28 = arith.constant dense<0.000000e+00> : vector<8x512xf32>
    %62 = tpu.matmul %61, %59, %cst_28 {dimension_numbers = #tpu.dot_dimension_numbers<[1], [0], [0], [1], [0, 0, 1, 1], [], []>} : vector<8x4xf32>, vector<4x512xf32>, vector<8x512xf32> -> vector<8x512xf32>
    %63 = arith.addf %55, %62 : vector<8x512xf32>
    %c495_i32 = arith.constant 495 : i32
    %64 = tpu.dynamic_rotate %1 by %c495_i32 dim 1 : vector<4x512xf32>, i32 -> vector<4x512xf32>
    %65 = vector.extract_strided_slice %0 {offsets = [8, 0], sizes = [1, 512], strides = [1, 1]} : vector<9x512xf32> to vector<1x512xf32>
    %66 = vector.broadcast %65 : vector<1x512xf32> to vector<4x512xf32>
    %67 = arith.mulf %64, %66 : vector<4x512xf32>
    %c8 = arith.constant 8 : index
    %c0_29 = arith.constant 0 : index
    %c0_30 = arith.constant 0 : index
    %68 = vector.load %arg2[%c8, %c0_29, %c0_30] : memref<9x8x4xf32, #tpu.memory_space<vmem>>, vector<1x8x4xf32>
    %69 = vector.shape_cast %68 : vector<1x8x4xf32> to vector<8x4xf32>
    %cst_31 = arith.constant dense<0.000000e+00> : vector<8x512xf32>
    %70 = tpu.matmul %69, %67, %cst_31 {dimension_numbers = #tpu.dot_dimension_numbers<[1], [0], [0], [1], [0, 0, 1, 1], [], []>} : vector<8x4xf32>, vector<4x512xf32>, vector<8x512xf32> -> vector<8x512xf32>
    %71 = arith.addf %63, %70 : vector<8x512xf32>
    %cst_32 = arith.constant 0.000000e+00 : f32
    %72 = vector.broadcast %cst_32 : f32 to vector<8x512xf32>
    %73 = arith.maximumf %71, %72 : vector<8x512xf32>
    %c4_33 = arith.constant 4 : index
    %c0_34 = arith.constant 0 : index
    %c0_35 = arith.constant 0 : index
    %74 = vector.load %arg4[%c4_33, %c0_34, %c0_35] : memref<9x8x8xf32, #tpu.memory_space<vmem>>, vector<1x8x8xf32>
    %75 = vector.shape_cast %74 : vector<1x8x8xf32> to vector<8x8xf32>
    %cst_36 = arith.constant dense<0.000000e+00> : vector<8x512xf32>
    %76 = tpu.matmul %75, %73, %cst_36 {dimension_numbers = #tpu.dot_dimension_numbers<[1], [0], [0], [1], [0, 0, 1, 1], [], []>} : vector<8x8xf32>, vector<8x512xf32>, vector<8x512xf32> -> vector<8x512xf32>
    %c0_37 = arith.constant 0 : index
    %c0_38 = arith.constant 0 : index
    %77 = vector.load %arg5[%c0_37, %c0_38] : memref<8x1xf32, #tpu.memory_space<vmem>>, vector<8x1xf32>
    %78 = vector.broadcast %77 : vector<8x1xf32> to vector<8x512xf32>
    %79 = arith.addf %76, %78 : vector<8x512xf32>
    %c17_i32_39 = arith.constant 17 : i32
    %80 = tpu.dynamic_rotate %73 by %c17_i32_39 dim 1 : vector<8x512xf32>, i32 -> vector<8x512xf32>
    %81 = vector.extract_strided_slice %0 {offsets = [0, 0], sizes = [1, 512], strides = [1, 1]} : vector<9x512xf32> to vector<1x512xf32>
    %82 = vector.broadcast %81 : vector<1x512xf32> to vector<8x512xf32>
    %83 = arith.mulf %80, %82 : vector<8x512xf32>
    %c0_40 = arith.constant 0 : index
    %c0_41 = arith.constant 0 : index
    %c0_42 = arith.constant 0 : index
    %84 = vector.load %arg4[%c0_40, %c0_41, %c0_42] : memref<9x8x8xf32, #tpu.memory_space<vmem>>, vector<1x8x8xf32>
    %85 = vector.shape_cast %84 : vector<1x8x8xf32> to vector<8x8xf32>
    %cst_43 = arith.constant dense<0.000000e+00> : vector<8x512xf32>
    %86 = tpu.matmul %85, %83, %cst_43 {dimension_numbers = #tpu.dot_dimension_numbers<[1], [0], [0], [1], [0, 0, 1, 1], [], []>} : vector<8x8xf32>, vector<8x512xf32>, vector<8x512xf32> -> vector<8x512xf32>
    %87 = arith.addf %79, %86 : vector<8x512xf32>
    %c16_i32_44 = arith.constant 16 : i32
    %88 = tpu.dynamic_rotate %73 by %c16_i32_44 dim 1 : vector<8x512xf32>, i32 -> vector<8x512xf32>
    %89 = vector.extract_strided_slice %0 {offsets = [1, 0], sizes = [1, 512], strides = [1, 1]} : vector<9x512xf32> to vector<1x512xf32>
    %90 = vector.broadcast %89 : vector<1x512xf32> to vector<8x512xf32>
    %91 = arith.mulf %88, %90 : vector<8x512xf32>
    %c1_45 = arith.constant 1 : index
    %c0_46 = arith.constant 0 : index
    %c0_47 = arith.constant 0 : index
    %92 = vector.load %arg4[%c1_45, %c0_46, %c0_47] : memref<9x8x8xf32, #tpu.memory_space<vmem>>, vector<1x8x8xf32>
    %93 = vector.shape_cast %92 : vector<1x8x8xf32> to vector<8x8xf32>
    %cst_48 = arith.constant dense<0.000000e+00> : vector<8x512xf32>
    %94 = tpu.matmul %93, %91, %cst_48 {dimension_numbers = #tpu.dot_dimension_numbers<[1], [0], [0], [1], [0, 0, 1, 1], [], []>} : vector<8x8xf32>, vector<8x512xf32>, vector<8x512xf32> -> vector<8x512xf32>
    %95 = arith.addf %87, %94 : vector<8x512xf32>
    %c15_i32_49 = arith.constant 15 : i32
    %96 = tpu.dynamic_rotate %73 by %c15_i32_49 dim 1 : vector<8x512xf32>, i32 -> vector<8x512xf32>
    %97 = vector.extract_strided_slice %0 {offsets = [2, 0], sizes = [1, 512], strides = [1, 1]} : vector<9x512xf32> to vector<1x512xf32>
    %98 = vector.broadcast %97 : vector<1x512xf32> to vector<8x512xf32>
    %99 = arith.mulf %96, %98 : vector<8x512xf32>
    %c2_50 = arith.constant 2 : index
    %c0_51 = arith.constant 0 : index
    %c0_52 = arith.constant 0 : index
    %100 = vector.load %arg4[%c2_50, %c0_51, %c0_52] : memref<9x8x8xf32, #tpu.memory_space<vmem>>, vector<1x8x8xf32>
    %101 = vector.shape_cast %100 : vector<1x8x8xf32> to vector<8x8xf32>
    %cst_53 = arith.constant dense<0.000000e+00> : vector<8x512xf32>
    %102 = tpu.matmul %101, %99, %cst_53 {dimension_numbers = #tpu.dot_dimension_numbers<[1], [0], [0], [1], [0, 0, 1, 1], [], []>} : vector<8x8xf32>, vector<8x512xf32>, vector<8x512xf32> -> vector<8x512xf32>
    %103 = arith.addf %95, %102 : vector<8x512xf32>
    %c1_i32_54 = arith.constant 1 : i32
    %104 = tpu.dynamic_rotate %73 by %c1_i32_54 dim 1 : vector<8x512xf32>, i32 -> vector<8x512xf32>
    %105 = vector.extract_strided_slice %0 {offsets = [3, 0], sizes = [1, 512], strides = [1, 1]} : vector<9x512xf32> to vector<1x512xf32>
    %106 = vector.broadcast %105 : vector<1x512xf32> to vector<8x512xf32>
    %107 = arith.mulf %104, %106 : vector<8x512xf32>
    %c3_55 = arith.constant 3 : index
    %c0_56 = arith.constant 0 : index
    %c0_57 = arith.constant 0 : index
    %108 = vector.load %arg4[%c3_55, %c0_56, %c0_57] : memref<9x8x8xf32, #tpu.memory_space<vmem>>, vector<1x8x8xf32>
    %109 = vector.shape_cast %108 : vector<1x8x8xf32> to vector<8x8xf32>
    %cst_58 = arith.constant dense<0.000000e+00> : vector<8x512xf32>
    %110 = tpu.matmul %109, %107, %cst_58 {dimension_numbers = #tpu.dot_dimension_numbers<[1], [0], [0], [1], [0, 0, 1, 1], [], []>} : vector<8x8xf32>, vector<8x512xf32>, vector<8x512xf32> -> vector<8x512xf32>
    %111 = arith.addf %103, %110 : vector<8x512xf32>
    %c511_i32_59 = arith.constant 511 : i32
    %112 = tpu.dynamic_rotate %73 by %c511_i32_59 dim 1 : vector<8x512xf32>, i32 -> vector<8x512xf32>
    %113 = vector.extract_strided_slice %0 {offsets = [5, 0], sizes = [1, 512], strides = [1, 1]} : vector<9x512xf32> to vector<1x512xf32>
    %114 = vector.broadcast %113 : vector<1x512xf32> to vector<8x512xf32>
    %115 = arith.mulf %112, %114 : vector<8x512xf32>
    %c5_60 = arith.constant 5 : index
    %c0_61 = arith.constant 0 : index
    %c0_62 = arith.constant 0 : index
    %116 = vector.load %arg4[%c5_60, %c0_61, %c0_62] : memref<9x8x8xf32, #tpu.memory_space<vmem>>, vector<1x8x8xf32>
    %117 = vector.shape_cast %116 : vector<1x8x8xf32> to vector<8x8xf32>
    %cst_63 = arith.constant dense<0.000000e+00> : vector<8x512xf32>
    %118 = tpu.matmul %117, %115, %cst_63 {dimension_numbers = #tpu.dot_dimension_numbers<[1], [0], [0], [1], [0, 0, 1, 1], [], []>} : vector<8x8xf32>, vector<8x512xf32>, vector<8x512xf32> -> vector<8x512xf32>
    %119 = arith.addf %111, %118 : vector<8x512xf32>
    %c497_i32_64 = arith.constant 497 : i32
    %120 = tpu.dynamic_rotate %73 by %c497_i32_64 dim 1 : vector<8x512xf32>, i32 -> vector<8x512xf32>
    %121 = vector.extract_strided_slice %0 {offsets = [6, 0], sizes = [1, 512], strides = [1, 1]} : vector<9x512xf32> to vector<1x512xf32>
    %122 = vector.broadcast %121 : vector<1x512xf32> to vector<8x512xf32>
    %123 = arith.mulf %120, %122 : vector<8x512xf32>
    %c6_65 = arith.constant 6 : index
    %c0_66 = arith.constant 0 : index
    %c0_67 = arith.constant 0 : index
    %124 = vector.load %arg4[%c6_65, %c0_66, %c0_67] : memref<9x8x8xf32, #tpu.memory_space<vmem>>, vector<1x8x8xf32>
    %125 = vector.shape_cast %124 : vector<1x8x8xf32> to vector<8x8xf32>
    %cst_68 = arith.constant dense<0.000000e+00> : vector<8x512xf32>
    %126 = tpu.matmul %125, %123, %cst_68 {dimension_numbers = #tpu.dot_dimension_numbers<[1], [0], [0], [1], [0, 0, 1, 1], [], []>} : vector<8x8xf32>, vector<8x512xf32>, vector<8x512xf32> -> vector<8x512xf32>
    %127 = arith.addf %119, %126 : vector<8x512xf32>
    %c496_i32_69 = arith.constant 496 : i32
    %128 = tpu.dynamic_rotate %73 by %c496_i32_69 dim 1 : vector<8x512xf32>, i32 -> vector<8x512xf32>
    %129 = vector.extract_strided_slice %0 {offsets = [7, 0], sizes = [1, 512], strides = [1, 1]} : vector<9x512xf32> to vector<1x512xf32>
    %130 = vector.broadcast %129 : vector<1x512xf32> to vector<8x512xf32>
    %131 = arith.mulf %128, %130 : vector<8x512xf32>
    %c7_70 = arith.constant 7 : index
    %c0_71 = arith.constant 0 : index
    %c0_72 = arith.constant 0 : index
    %132 = vector.load %arg4[%c7_70, %c0_71, %c0_72] : memref<9x8x8xf32, #tpu.memory_space<vmem>>, vector<1x8x8xf32>
    %133 = vector.shape_cast %132 : vector<1x8x8xf32> to vector<8x8xf32>
    %cst_73 = arith.constant dense<0.000000e+00> : vector<8x512xf32>
    %134 = tpu.matmul %133, %131, %cst_73 {dimension_numbers = #tpu.dot_dimension_numbers<[1], [0], [0], [1], [0, 0, 1, 1], [], []>} : vector<8x8xf32>, vector<8x512xf32>, vector<8x512xf32> -> vector<8x512xf32>
    %135 = arith.addf %127, %134 : vector<8x512xf32>
    %c495_i32_74 = arith.constant 495 : i32
    %136 = tpu.dynamic_rotate %73 by %c495_i32_74 dim 1 : vector<8x512xf32>, i32 -> vector<8x512xf32>
    %137 = vector.extract_strided_slice %0 {offsets = [8, 0], sizes = [1, 512], strides = [1, 1]} : vector<9x512xf32> to vector<1x512xf32>
    %138 = vector.broadcast %137 : vector<1x512xf32> to vector<8x512xf32>
    %139 = arith.mulf %136, %138 : vector<8x512xf32>
    %c8_75 = arith.constant 8 : index
    %c0_76 = arith.constant 0 : index
    %c0_77 = arith.constant 0 : index
    %140 = vector.load %arg4[%c8_75, %c0_76, %c0_77] : memref<9x8x8xf32, #tpu.memory_space<vmem>>, vector<1x8x8xf32>
    %141 = vector.shape_cast %140 : vector<1x8x8xf32> to vector<8x8xf32>
    %cst_78 = arith.constant dense<0.000000e+00> : vector<8x512xf32>
    %142 = tpu.matmul %141, %139, %cst_78 {dimension_numbers = #tpu.dot_dimension_numbers<[1], [0], [0], [1], [0, 0, 1, 1], [], []>} : vector<8x8xf32>, vector<8x512xf32>, vector<8x512xf32> -> vector<8x512xf32>
    %143 = arith.addf %135, %142 : vector<8x512xf32>
    %cst_79 = arith.constant 0.000000e+00 : f32
    %144 = vector.broadcast %cst_79 : f32 to vector<8x512xf32>
    %145 = arith.maximumf %143, %144 : vector<8x512xf32>
    %146 = arith.addf %145, %73 : vector<8x512xf32>
    %c4_80 = arith.constant 4 : index
    %c0_81 = arith.constant 0 : index
    %c0_82 = arith.constant 0 : index
    %147 = vector.load %arg6[%c4_80, %c0_81, %c0_82] : memref<9x8x8xf32, #tpu.memory_space<vmem>>, vector<1x8x8xf32>
    %148 = vector.shape_cast %147 : vector<1x8x8xf32> to vector<8x8xf32>
    %cst_83 = arith.constant dense<0.000000e+00> : vector<8x512xf32>
    %149 = tpu.matmul %148, %146, %cst_83 {dimension_numbers = #tpu.dot_dimension_numbers<[1], [0], [0], [1], [0, 0, 1, 1], [], []>} : vector<8x8xf32>, vector<8x512xf32>, vector<8x512xf32> -> vector<8x512xf32>
    %c0_84 = arith.constant 0 : index
    %c0_85 = arith.constant 0 : index
    %150 = vector.load %arg7[%c0_84, %c0_85] : memref<8x1xf32, #tpu.memory_space<vmem>>, vector<8x1xf32>
    %151 = vector.broadcast %150 : vector<8x1xf32> to vector<8x512xf32>
    %152 = arith.addf %149, %151 : vector<8x512xf32>
    %c17_i32_86 = arith.constant 17 : i32
    %153 = tpu.dynamic_rotate %146 by %c17_i32_86 dim 1 : vector<8x512xf32>, i32 -> vector<8x512xf32>
    %154 = vector.extract_strided_slice %0 {offsets = [0, 0], sizes = [1, 512], strides = [1, 1]} : vector<9x512xf32> to vector<1x512xf32>
    %155 = vector.broadcast %154 : vector<1x512xf32> to vector<8x512xf32>
    %156 = arith.mulf %153, %155 : vector<8x512xf32>
    %c0_87 = arith.constant 0 : index
    %c0_88 = arith.constant 0 : index
    %c0_89 = arith.constant 0 : index
    %157 = vector.load %arg6[%c0_87, %c0_88, %c0_89] : memref<9x8x8xf32, #tpu.memory_space<vmem>>, vector<1x8x8xf32>
    %158 = vector.shape_cast %157 : vector<1x8x8xf32> to vector<8x8xf32>
    %cst_90 = arith.constant dense<0.000000e+00> : vector<8x512xf32>
    %159 = tpu.matmul %158, %156, %cst_90 {dimension_numbers = #tpu.dot_dimension_numbers<[1], [0], [0], [1], [0, 0, 1, 1], [], []>} : vector<8x8xf32>, vector<8x512xf32>, vector<8x512xf32> -> vector<8x512xf32>
    %160 = arith.addf %152, %159 : vector<8x512xf32>
    %c16_i32_91 = arith.constant 16 : i32
    %161 = tpu.dynamic_rotate %146 by %c16_i32_91 dim 1 : vector<8x512xf32>, i32 -> vector<8x512xf32>
    %162 = vector.extract_strided_slice %0 {offsets = [1, 0], sizes = [1, 512], strides = [1, 1]} : vector<9x512xf32> to vector<1x512xf32>
    %163 = vector.broadcast %162 : vector<1x512xf32> to vector<8x512xf32>
    %164 = arith.mulf %161, %163 : vector<8x512xf32>
    %c1_92 = arith.constant 1 : index
    %c0_93 = arith.constant 0 : index
    %c0_94 = arith.constant 0 : index
    %165 = vector.load %arg6[%c1_92, %c0_93, %c0_94] : memref<9x8x8xf32, #tpu.memory_space<vmem>>, vector<1x8x8xf32>
    %166 = vector.shape_cast %165 : vector<1x8x8xf32> to vector<8x8xf32>
    %cst_95 = arith.constant dense<0.000000e+00> : vector<8x512xf32>
    %167 = tpu.matmul %166, %164, %cst_95 {dimension_numbers = #tpu.dot_dimension_numbers<[1], [0], [0], [1], [0, 0, 1, 1], [], []>} : vector<8x8xf32>, vector<8x512xf32>, vector<8x512xf32> -> vector<8x512xf32>
    %168 = arith.addf %160, %167 : vector<8x512xf32>
    %c15_i32_96 = arith.constant 15 : i32
    %169 = tpu.dynamic_rotate %146 by %c15_i32_96 dim 1 : vector<8x512xf32>, i32 -> vector<8x512xf32>
    %170 = vector.extract_strided_slice %0 {offsets = [2, 0], sizes = [1, 512], strides = [1, 1]} : vector<9x512xf32> to vector<1x512xf32>
    %171 = vector.broadcast %170 : vector<1x512xf32> to vector<8x512xf32>
    %172 = arith.mulf %169, %171 : vector<8x512xf32>
    %c2_97 = arith.constant 2 : index
    %c0_98 = arith.constant 0 : index
    %c0_99 = arith.constant 0 : index
    %173 = vector.load %arg6[%c2_97, %c0_98, %c0_99] : memref<9x8x8xf32, #tpu.memory_space<vmem>>, vector<1x8x8xf32>
    %174 = vector.shape_cast %173 : vector<1x8x8xf32> to vector<8x8xf32>
    %cst_100 = arith.constant dense<0.000000e+00> : vector<8x512xf32>
    %175 = tpu.matmul %174, %172, %cst_100 {dimension_numbers = #tpu.dot_dimension_numbers<[1], [0], [0], [1], [0, 0, 1, 1], [], []>} : vector<8x8xf32>, vector<8x512xf32>, vector<8x512xf32> -> vector<8x512xf32>
    %176 = arith.addf %168, %175 : vector<8x512xf32>
    %c1_i32_101 = arith.constant 1 : i32
    %177 = tpu.dynamic_rotate %146 by %c1_i32_101 dim 1 : vector<8x512xf32>, i32 -> vector<8x512xf32>
    %178 = vector.extract_strided_slice %0 {offsets = [3, 0], sizes = [1, 512], strides = [1, 1]} : vector<9x512xf32> to vector<1x512xf32>
    %179 = vector.broadcast %178 : vector<1x512xf32> to vector<8x512xf32>
    %180 = arith.mulf %177, %179 : vector<8x512xf32>
    %c3_102 = arith.constant 3 : index
    %c0_103 = arith.constant 0 : index
    %c0_104 = arith.constant 0 : index
    %181 = vector.load %arg6[%c3_102, %c0_103, %c0_104] : memref<9x8x8xf32, #tpu.memory_space<vmem>>, vector<1x8x8xf32>
    %182 = vector.shape_cast %181 : vector<1x8x8xf32> to vector<8x8xf32>
    %cst_105 = arith.constant dense<0.000000e+00> : vector<8x512xf32>
    %183 = tpu.matmul %182, %180, %cst_105 {dimension_numbers = #tpu.dot_dimension_numbers<[1], [0], [0], [1], [0, 0, 1, 1], [], []>} : vector<8x8xf32>, vector<8x512xf32>, vector<8x512xf32> -> vector<8x512xf32>
    %184 = arith.addf %176, %183 : vector<8x512xf32>
    %c511_i32_106 = arith.constant 511 : i32
    %185 = tpu.dynamic_rotate %146 by %c511_i32_106 dim 1 : vector<8x512xf32>, i32 -> vector<8x512xf32>
    %186 = vector.extract_strided_slice %0 {offsets = [5, 0], sizes = [1, 512], strides = [1, 1]} : vector<9x512xf32> to vector<1x512xf32>
    %187 = vector.broadcast %186 : vector<1x512xf32> to vector<8x512xf32>
    %188 = arith.mulf %185, %187 : vector<8x512xf32>
    %c5_107 = arith.constant 5 : index
    %c0_108 = arith.constant 0 : index
    %c0_109 = arith.constant 0 : index
    %189 = vector.load %arg6[%c5_107, %c0_108, %c0_109] : memref<9x8x8xf32, #tpu.memory_space<vmem>>, vector<1x8x8xf32>
    %190 = vector.shape_cast %189 : vector<1x8x8xf32> to vector<8x8xf32>
    %cst_110 = arith.constant dense<0.000000e+00> : vector<8x512xf32>
    %191 = tpu.matmul %190, %188, %cst_110 {dimension_numbers = #tpu.dot_dimension_numbers<[1], [0], [0], [1], [0, 0, 1, 1], [], []>} : vector<8x8xf32>, vector<8x512xf32>, vector<8x512xf32> -> vector<8x512xf32>
    %192 = arith.addf %184, %191 : vector<8x512xf32>
    %c497_i32_111 = arith.constant 497 : i32
    %193 = tpu.dynamic_rotate %146 by %c497_i32_111 dim 1 : vector<8x512xf32>, i32 -> vector<8x512xf32>
    %194 = vector.extract_strided_slice %0 {offsets = [6, 0], sizes = [1, 512], strides = [1, 1]} : vector<9x512xf32> to vector<1x512xf32>
    %195 = vector.broadcast %194 : vector<1x512xf32> to vector<8x512xf32>
    %196 = arith.mulf %193, %195 : vector<8x512xf32>
    %c6_112 = arith.constant 6 : index
    %c0_113 = arith.constant 0 : index
    %c0_114 = arith.constant 0 : index
    %197 = vector.load %arg6[%c6_112, %c0_113, %c0_114] : memref<9x8x8xf32, #tpu.memory_space<vmem>>, vector<1x8x8xf32>
    %198 = vector.shape_cast %197 : vector<1x8x8xf32> to vector<8x8xf32>
    %cst_115 = arith.constant dense<0.000000e+00> : vector<8x512xf32>
    %199 = tpu.matmul %198, %196, %cst_115 {dimension_numbers = #tpu.dot_dimension_numbers<[1], [0], [0], [1], [0, 0, 1, 1], [], []>} : vector<8x8xf32>, vector<8x512xf32>, vector<8x512xf32> -> vector<8x512xf32>
    %200 = arith.addf %192, %199 : vector<8x512xf32>
    %c496_i32_116 = arith.constant 496 : i32
    %201 = tpu.dynamic_rotate %146 by %c496_i32_116 dim 1 : vector<8x512xf32>, i32 -> vector<8x512xf32>
    %202 = vector.extract_strided_slice %0 {offsets = [7, 0], sizes = [1, 512], strides = [1, 1]} : vector<9x512xf32> to vector<1x512xf32>
    %203 = vector.broadcast %202 : vector<1x512xf32> to vector<8x512xf32>
    %204 = arith.mulf %201, %203 : vector<8x512xf32>
    %c7_117 = arith.constant 7 : index
    %c0_118 = arith.constant 0 : index
    %c0_119 = arith.constant 0 : index
    %205 = vector.load %arg6[%c7_117, %c0_118, %c0_119] : memref<9x8x8xf32, #tpu.memory_space<vmem>>, vector<1x8x8xf32>
    %206 = vector.shape_cast %205 : vector<1x8x8xf32> to vector<8x8xf32>
    %cst_120 = arith.constant dense<0.000000e+00> : vector<8x512xf32>
    %207 = tpu.matmul %206, %204, %cst_120 {dimension_numbers = #tpu.dot_dimension_numbers<[1], [0], [0], [1], [0, 0, 1, 1], [], []>} : vector<8x8xf32>, vector<8x512xf32>, vector<8x512xf32> -> vector<8x512xf32>
    %208 = arith.addf %200, %207 : vector<8x512xf32>
    %c495_i32_121 = arith.constant 495 : i32
    %209 = tpu.dynamic_rotate %146 by %c495_i32_121 dim 1 : vector<8x512xf32>, i32 -> vector<8x512xf32>
    %210 = vector.extract_strided_slice %0 {offsets = [8, 0], sizes = [1, 512], strides = [1, 1]} : vector<9x512xf32> to vector<1x512xf32>
    %211 = vector.broadcast %210 : vector<1x512xf32> to vector<8x512xf32>
    %212 = arith.mulf %209, %211 : vector<8x512xf32>
    %c8_122 = arith.constant 8 : index
    %c0_123 = arith.constant 0 : index
    %c0_124 = arith.constant 0 : index
    %213 = vector.load %arg6[%c8_122, %c0_123, %c0_124] : memref<9x8x8xf32, #tpu.memory_space<vmem>>, vector<1x8x8xf32>
    %214 = vector.shape_cast %213 : vector<1x8x8xf32> to vector<8x8xf32>
    %cst_125 = arith.constant dense<0.000000e+00> : vector<8x512xf32>
    %215 = tpu.matmul %214, %212, %cst_125 {dimension_numbers = #tpu.dot_dimension_numbers<[1], [0], [0], [1], [0, 0, 1, 1], [], []>} : vector<8x8xf32>, vector<8x512xf32>, vector<8x512xf32> -> vector<8x512xf32>
    %216 = arith.addf %208, %215 : vector<8x512xf32>
    %cst_126 = arith.constant 0.000000e+00 : f32
    %217 = vector.broadcast %cst_126 : f32 to vector<8x512xf32>
    %218 = arith.maximumf %216, %217 : vector<8x512xf32>
    %219 = arith.addf %218, %146 : vector<8x512xf32>
    %c4_127 = arith.constant 4 : index
    %c0_128 = arith.constant 0 : index
    %c0_129 = arith.constant 0 : index
    %220 = vector.load %arg8[%c4_127, %c0_128, %c0_129] : memref<9x8x8xf32, #tpu.memory_space<vmem>>, vector<1x8x8xf32>
    %221 = vector.shape_cast %220 : vector<1x8x8xf32> to vector<8x8xf32>
    %cst_130 = arith.constant dense<0.000000e+00> : vector<8x512xf32>
    %222 = tpu.matmul %221, %219, %cst_130 {dimension_numbers = #tpu.dot_dimension_numbers<[1], [0], [0], [1], [0, 0, 1, 1], [], []>} : vector<8x8xf32>, vector<8x512xf32>, vector<8x512xf32> -> vector<8x512xf32>
    %c0_131 = arith.constant 0 : index
    %c0_132 = arith.constant 0 : index
    %223 = vector.load %arg9[%c0_131, %c0_132] : memref<8x1xf32, #tpu.memory_space<vmem>>, vector<8x1xf32>
    %224 = vector.broadcast %223 : vector<8x1xf32> to vector<8x512xf32>
    %225 = arith.addf %222, %224 : vector<8x512xf32>
    %c17_i32_133 = arith.constant 17 : i32
    %226 = tpu.dynamic_rotate %219 by %c17_i32_133 dim 1 : vector<8x512xf32>, i32 -> vector<8x512xf32>
    %227 = vector.extract_strided_slice %0 {offsets = [0, 0], sizes = [1, 512], strides = [1, 1]} : vector<9x512xf32> to vector<1x512xf32>
    %228 = vector.broadcast %227 : vector<1x512xf32> to vector<8x512xf32>
    %229 = arith.mulf %226, %228 : vector<8x512xf32>
    %c0_134 = arith.constant 0 : index
    %c0_135 = arith.constant 0 : index
    %c0_136 = arith.constant 0 : index
    %230 = vector.load %arg8[%c0_134, %c0_135, %c0_136] : memref<9x8x8xf32, #tpu.memory_space<vmem>>, vector<1x8x8xf32>
    %231 = vector.shape_cast %230 : vector<1x8x8xf32> to vector<8x8xf32>
    %cst_137 = arith.constant dense<0.000000e+00> : vector<8x512xf32>
    %232 = tpu.matmul %231, %229, %cst_137 {dimension_numbers = #tpu.dot_dimension_numbers<[1], [0], [0], [1], [0, 0, 1, 1], [], []>} : vector<8x8xf32>, vector<8x512xf32>, vector<8x512xf32> -> vector<8x512xf32>
    %233 = arith.addf %225, %232 : vector<8x512xf32>
    %c16_i32_138 = arith.constant 16 : i32
    %234 = tpu.dynamic_rotate %219 by %c16_i32_138 dim 1 : vector<8x512xf32>, i32 -> vector<8x512xf32>
    %235 = vector.extract_strided_slice %0 {offsets = [1, 0], sizes = [1, 512], strides = [1, 1]} : vector<9x512xf32> to vector<1x512xf32>
    %236 = vector.broadcast %235 : vector<1x512xf32> to vector<8x512xf32>
    %237 = arith.mulf %234, %236 : vector<8x512xf32>
    %c1_139 = arith.constant 1 : index
    %c0_140 = arith.constant 0 : index
    %c0_141 = arith.constant 0 : index
    %238 = vector.load %arg8[%c1_139, %c0_140, %c0_141] : memref<9x8x8xf32, #tpu.memory_space<vmem>>, vector<1x8x8xf32>
    %239 = vector.shape_cast %238 : vector<1x8x8xf32> to vector<8x8xf32>
    %cst_142 = arith.constant dense<0.000000e+00> : vector<8x512xf32>
    %240 = tpu.matmul %239, %237, %cst_142 {dimension_numbers = #tpu.dot_dimension_numbers<[1], [0], [0], [1], [0, 0, 1, 1], [], []>} : vector<8x8xf32>, vector<8x512xf32>, vector<8x512xf32> -> vector<8x512xf32>
    %241 = arith.addf %233, %240 : vector<8x512xf32>
    %c15_i32_143 = arith.constant 15 : i32
    %242 = tpu.dynamic_rotate %219 by %c15_i32_143 dim 1 : vector<8x512xf32>, i32 -> vector<8x512xf32>
    %243 = vector.extract_strided_slice %0 {offsets = [2, 0], sizes = [1, 512], strides = [1, 1]} : vector<9x512xf32> to vector<1x512xf32>
    %244 = vector.broadcast %243 : vector<1x512xf32> to vector<8x512xf32>
    %245 = arith.mulf %242, %244 : vector<8x512xf32>
    %c2_144 = arith.constant 2 : index
    %c0_145 = arith.constant 0 : index
    %c0_146 = arith.constant 0 : index
    %246 = vector.load %arg8[%c2_144, %c0_145, %c0_146] : memref<9x8x8xf32, #tpu.memory_space<vmem>>, vector<1x8x8xf32>
    %247 = vector.shape_cast %246 : vector<1x8x8xf32> to vector<8x8xf32>
    %cst_147 = arith.constant dense<0.000000e+00> : vector<8x512xf32>
    %248 = tpu.matmul %247, %245, %cst_147 {dimension_numbers = #tpu.dot_dimension_numbers<[1], [0], [0], [1], [0, 0, 1, 1], [], []>} : vector<8x8xf32>, vector<8x512xf32>, vector<8x512xf32> -> vector<8x512xf32>
    %249 = arith.addf %241, %248 : vector<8x512xf32>
    %c1_i32_148 = arith.constant 1 : i32
    %250 = tpu.dynamic_rotate %219 by %c1_i32_148 dim 1 : vector<8x512xf32>, i32 -> vector<8x512xf32>
    %251 = vector.extract_strided_slice %0 {offsets = [3, 0], sizes = [1, 512], strides = [1, 1]} : vector<9x512xf32> to vector<1x512xf32>
    %252 = vector.broadcast %251 : vector<1x512xf32> to vector<8x512xf32>
    %253 = arith.mulf %250, %252 : vector<8x512xf32>
    %c3_149 = arith.constant 3 : index
    %c0_150 = arith.constant 0 : index
    %c0_151 = arith.constant 0 : index
    %254 = vector.load %arg8[%c3_149, %c0_150, %c0_151] : memref<9x8x8xf32, #tpu.memory_space<vmem>>, vector<1x8x8xf32>
    %255 = vector.shape_cast %254 : vector<1x8x8xf32> to vector<8x8xf32>
    %cst_152 = arith.constant dense<0.000000e+00> : vector<8x512xf32>
    %256 = tpu.matmul %255, %253, %cst_152 {dimension_numbers = #tpu.dot_dimension_numbers<[1], [0], [0], [1], [0, 0, 1, 1], [], []>} : vector<8x8xf32>, vector<8x512xf32>, vector<8x512xf32> -> vector<8x512xf32>
    %257 = arith.addf %249, %256 : vector<8x512xf32>
    %c511_i32_153 = arith.constant 511 : i32
    %258 = tpu.dynamic_rotate %219 by %c511_i32_153 dim 1 : vector<8x512xf32>, i32 -> vector<8x512xf32>
    %259 = vector.extract_strided_slice %0 {offsets = [5, 0], sizes = [1, 512], strides = [1, 1]} : vector<9x512xf32> to vector<1x512xf32>
    %260 = vector.broadcast %259 : vector<1x512xf32> to vector<8x512xf32>
    %261 = arith.mulf %258, %260 : vector<8x512xf32>
    %c5_154 = arith.constant 5 : index
    %c0_155 = arith.constant 0 : index
    %c0_156 = arith.constant 0 : index
    %262 = vector.load %arg8[%c5_154, %c0_155, %c0_156] : memref<9x8x8xf32, #tpu.memory_space<vmem>>, vector<1x8x8xf32>
    %263 = vector.shape_cast %262 : vector<1x8x8xf32> to vector<8x8xf32>
    %cst_157 = arith.constant dense<0.000000e+00> : vector<8x512xf32>
    %264 = tpu.matmul %263, %261, %cst_157 {dimension_numbers = #tpu.dot_dimension_numbers<[1], [0], [0], [1], [0, 0, 1, 1], [], []>} : vector<8x8xf32>, vector<8x512xf32>, vector<8x512xf32> -> vector<8x512xf32>
    %265 = arith.addf %257, %264 : vector<8x512xf32>
    %c497_i32_158 = arith.constant 497 : i32
    %266 = tpu.dynamic_rotate %219 by %c497_i32_158 dim 1 : vector<8x512xf32>, i32 -> vector<8x512xf32>
    %267 = vector.extract_strided_slice %0 {offsets = [6, 0], sizes = [1, 512], strides = [1, 1]} : vector<9x512xf32> to vector<1x512xf32>
    %268 = vector.broadcast %267 : vector<1x512xf32> to vector<8x512xf32>
    %269 = arith.mulf %266, %268 : vector<8x512xf32>
    %c6_159 = arith.constant 6 : index
    %c0_160 = arith.constant 0 : index
    %c0_161 = arith.constant 0 : index
    %270 = vector.load %arg8[%c6_159, %c0_160, %c0_161] : memref<9x8x8xf32, #tpu.memory_space<vmem>>, vector<1x8x8xf32>
    %271 = vector.shape_cast %270 : vector<1x8x8xf32> to vector<8x8xf32>
    %cst_162 = arith.constant dense<0.000000e+00> : vector<8x512xf32>
    %272 = tpu.matmul %271, %269, %cst_162 {dimension_numbers = #tpu.dot_dimension_numbers<[1], [0], [0], [1], [0, 0, 1, 1], [], []>} : vector<8x8xf32>, vector<8x512xf32>, vector<8x512xf32> -> vector<8x512xf32>
    %273 = arith.addf %265, %272 : vector<8x512xf32>
    %c496_i32_163 = arith.constant 496 : i32
    %274 = tpu.dynamic_rotate %219 by %c496_i32_163 dim 1 : vector<8x512xf32>, i32 -> vector<8x512xf32>
    %275 = vector.extract_strided_slice %0 {offsets = [7, 0], sizes = [1, 512], strides = [1, 1]} : vector<9x512xf32> to vector<1x512xf32>
    %276 = vector.broadcast %275 : vector<1x512xf32> to vector<8x512xf32>
    %277 = arith.mulf %274, %276 : vector<8x512xf32>
    %c7_164 = arith.constant 7 : index
    %c0_165 = arith.constant 0 : index
    %c0_166 = arith.constant 0 : index
    %278 = vector.load %arg8[%c7_164, %c0_165, %c0_166] : memref<9x8x8xf32, #tpu.memory_space<vmem>>, vector<1x8x8xf32>
    %279 = vector.shape_cast %278 : vector<1x8x8xf32> to vector<8x8xf32>
    %cst_167 = arith.constant dense<0.000000e+00> : vector<8x512xf32>
    %280 = tpu.matmul %279, %277, %cst_167 {dimension_numbers = #tpu.dot_dimension_numbers<[1], [0], [0], [1], [0, 0, 1, 1], [], []>} : vector<8x8xf32>, vector<8x512xf32>, vector<8x512xf32> -> vector<8x512xf32>
    %281 = arith.addf %273, %280 : vector<8x512xf32>
    %c495_i32_168 = arith.constant 495 : i32
    %282 = tpu.dynamic_rotate %219 by %c495_i32_168 dim 1 : vector<8x512xf32>, i32 -> vector<8x512xf32>
    %283 = vector.extract_strided_slice %0 {offsets = [8, 0], sizes = [1, 512], strides = [1, 1]} : vector<9x512xf32> to vector<1x512xf32>
    %284 = vector.broadcast %283 : vector<1x512xf32> to vector<8x512xf32>
    %285 = arith.mulf %282, %284 : vector<8x512xf32>
    %c8_169 = arith.constant 8 : index
    %c0_170 = arith.constant 0 : index
    %c0_171 = arith.constant 0 : index
    %286 = vector.load %arg8[%c8_169, %c0_170, %c0_171] : memref<9x8x8xf32, #tpu.memory_space<vmem>>, vector<1x8x8xf32>
    %287 = vector.shape_cast %286 : vector<1x8x8xf32> to vector<8x8xf32>
    %cst_172 = arith.constant dense<0.000000e+00> : vector<8x512xf32>
    %288 = tpu.matmul %287, %285, %cst_172 {dimension_numbers = #tpu.dot_dimension_numbers<[1], [0], [0], [1], [0, 0, 1, 1], [], []>} : vector<8x8xf32>, vector<8x512xf32>, vector<8x512xf32> -> vector<8x512xf32>
    %289 = arith.addf %281, %288 : vector<8x512xf32>
    %cst_173 = arith.constant 0.000000e+00 : f32
    %290 = vector.broadcast %cst_173 : f32 to vector<8x512xf32>
    %291 = arith.maximumf %289, %290 : vector<8x512xf32>
    %292 = arith.addf %291, %219 : vector<8x512xf32>
    %c0_174 = arith.constant 0 : index
    %c0_175 = arith.constant 0 : index
    %293 = vector.load %arg10[%c0_174, %c0_175] : memref<4x8xf32, #tpu.memory_space<vmem>>, vector<4x8xf32>
    %cst_176 = arith.constant dense<0.000000e+00> : vector<4x512xf32>
    %294 = tpu.matmul %293, %292, %cst_176 {dimension_numbers = #tpu.dot_dimension_numbers<[1], [0], [0], [1], [0, 0, 1, 1], [], []>} : vector<4x8xf32>, vector<8x512xf32>, vector<4x512xf32> -> vector<4x512xf32>
    %c0_177 = arith.constant 0 : index
    %c0_178 = arith.constant 0 : index
    %295 = vector.load %arg11[%c0_177, %c0_178] : memref<4x1xf32, #tpu.memory_space<vmem>>, vector<4x1xf32>
    %296 = vector.broadcast %295 : vector<4x1xf32> to vector<4x512xf32>
    %297 = arith.addf %294, %296 : vector<4x512xf32>
    %c0_179 = arith.constant 0 : index
    %c0_180 = arith.constant 0 : index
    %298 = vector.load %arg12[%c0_179, %c0_180] : memref<4x512xf32, #tpu.memory_space<vmem>>, vector<4x512xf32>
    tpu.vector_store %arg12[%c0_179, %c0_180], %297 {strides = array<i32>} : memref<4x512xf32, #tpu.memory_space<vmem>>, vector<4x512xf32>,
    return
  }
}

</mosaic_0001>

<llo_original>
// kernel: _lambda_.1
$region0: #{_lambda_.1}
  #allocation0 [shape = 'u32[]', space=smem, size = 0x4, offset = 0x4, fixed_abs, tag = 'smem constant byte address 0x4 - core index']
  #allocation1 [shape = 'u32[72,128]{1,0:T(1,128)}', space=vmem, size = 0x9000, scoped, tag = 'internal scratch']
  %s0 = inlined_call_operand.vmem [shape: f32[4,512], index: 0, kind: input, shape index: {}]
  %s1 = inlined_call_operand.vmem [shape: f32[9,512], index: 1, kind: input, shape index: {}]
  %s2 = inlined_call_operand.vmem [shape: f32[9,8,4], index: 2, kind: input, shape index: {}]
  %s3 = inlined_call_operand.vmem [shape: f32[8,1], index: 3, kind: input, shape index: {}]
  %s4 = inlined_call_operand.vmem [shape: f32[9,8,8], index: 4, kind: input, shape index: {}]
  %s5 = inlined_call_operand.vmem [shape: f32[8,1], index: 5, kind: input, shape index: {}]
  %s6 = inlined_call_operand.vmem [shape: f32[9,8,8], index: 6, kind: input, shape index: {}]
  %s7 = inlined_call_operand.vmem [shape: f32[8,1], index: 7, kind: input, shape index: {}]
  %s8 = inlined_call_operand.vmem [shape: f32[9,8,8], index: 8, kind: input, shape index: {}]
  %s9 = inlined_call_operand.vmem [shape: f32[8,1], index: 9, kind: input, shape index: {}]
  %s10 = inlined_call_operand.vmem [shape: f32[4,8], index: 10, kind: input, shape index: {}]
  %s11 = inlined_call_operand.vmem [shape: f32[4,1], index: 11, kind: input, shape index: {}]
  %s12 = inlined_call_operand.vmem [shape: f32[4,512], index: 12, kind: output, shape index: {}]
  %s13 = sld [smem:[#allocation0]]
  $region58: #{_lambda_.1} parent=0
    _
  %s15 = ssub.s32 1, %s13
  %s16 = scalar_select 0, %s15, %s13
  // Predicated region
  $region2: #{_lambda_.1} parent=0 // pred_check
    _
  $region3: #{_lambda_.1} parent=0 // pred_check_branch
    %18 = sbr.rel (0) target = $region5
  $region4: #{_lambda_.1} parent=0 // pred_region
    _
  $region5: #{_lambda_.1} parent=0 // pred_fallthru
    _
  // Predicated region
  $region6: #{_lambda_.1} parent=0 // pred_check
    _
  $region7: #{_lambda_.1} parent=0 // pred_check_branch
    %20 = sbr.rel (0) target = $region9
  $region8: #{_lambda_.1} parent=0 // pred_region
    _
  $region9: #{_lambda_.1} parent=0 // pred_fallthru
    _
  // Predicated region
  $region10: #{_lambda_.1} parent=0 // pred_check
    _
  $region11: #{_lambda_.1} parent=0 // pred_check_branch
    %22 = sbr.rel (0) target = $region13
  $region12: #{_lambda_.1} parent=0 // pred_region
    _
  $region13: #{_lambda_.1} parent=0 // pred_fallthru
    _
  // Predicated region
  $region14: #{_lambda_.1} parent=0 // pred_check
    _
  $region15: #{_lambda_.1} parent=0 // pred_check_branch
    %24 = sbr.rel (0) target = $region17
  $region16: #{_lambda_.1} parent=0 // pred_region
    _
  $region17: #{_lambda_.1} parent=0 // pred_fallthru
    _
  // Predicated region
  $region18: #{_lambda_.1} parent=0 // pred_check
    _
  $region19: #{_lambda_.1} parent=0 // pred_check_branch
    %26 = sbr.rel (0) target = $region21
  $region20: #{_lambda_.1} parent=0 // pred_region
    _
  $region21: #{_lambda_.1} parent=0 // pred_fallthru
    _
  // Predicated region
  $region22: #{_lambda_.1} parent=0 // pred_check
    _
  $region23: #{_lambda_.1} parent=0 // pred_check_branch
    %28 = sbr.rel (0) target = $region25
  $region24: #{_lambda_.1} parent=0 // pred_region
    _
  $region25: #{_lambda_.1} parent=0 // pred_fallthru
    _
  // Predicated region
  $region26: #{_lambda_.1} parent=0 // pred_check
    _
  $region27: #{_lambda_.1} parent=0 // pred_check_branch
    %30 = sbr.rel (0) target = $region29
  $region28: #{_lambda_.1} parent=0 // pred_region
    _
  $region29: #{_lambda_.1} parent=0 // pred_fallthru
    _
  // Predicated region
  $region30: #{_lambda_.1} parent=0 // pred_check
    _
  $region31: #{_lambda_.1} parent=0 // pred_check_branch
    %32 = sbr.rel (0) target = $region33
  $region32: #{_lambda_.1} parent=0 // pred_region
    _
  $region33: #{_lambda_.1} parent=0 // pred_fallthru
    _
  // Predicated region
  $region34: #{_lambda_.1} parent=0 // pred_check
    _
  $region35: #{_lambda_.1} parent=0 // pred_check_branch
    %34 = sbr.rel (0) target = $region37
  $region36: #{_lambda_.1} parent=0 // pred_region
    _
  $region37: #{_lambda_.1} parent=0 // pred_fallthru
    _
  // Predicated region
  $region38: #{_lambda_.1} parent=0 // pred_check
    _
  $region39: #{_lambda_.1} parent=0 // pred_check_branch
    %36 = sbr.rel (0) target = $region41
  $region40: #{_lambda_.1} parent=0 // pred_region
    _
  $region41: #{_lambda_.1} parent=0 // pred_fallthru
    _
  // Predicated region
  $region42: #{_lambda_.1} parent=0 // pred_check
    _
  $region43: #{_lambda_.1} parent=0 // pred_check_branch
    %38 = sbr.rel (0) target = $region45
  $region44: #{_lambda_.1} parent=0 // pred_region
    _
  $region45: #{_lambda_.1} parent=0 // pred_fallthru
    _
  // Predicated region
  $region46: #{_lambda_.1} parent=0 // pred_check
    _
  $region47: #{_lambda_.1} parent=0 // pred_check_branch
    %40 = sbr.rel (0) target = $region49
  $region48: #{_lambda_.1} parent=0 // pred_region
    _
  $region49: #{_lambda_.1} parent=0 // pred_fallthru
    _
  %v41 = vld [vmem:[%s1] sm:$0xff]
  %v42 = vld [vmem:[%s1 + $0x8] sm:$0xff]
  %v43 = vld [vmem:[%s1 + $0x10] sm:$0xff]
  %v44 = vld [vmem:[%s1 + $0x18] sm:$0xff]
  %v45 = vld [vmem:[%s1 + $0x20] sm:$0x1]
  %v46 = vld [vmem:[%s1 + $0x28] sm:$0x1]
  %v47 = vld [vmem:[%s1 + $0x30] sm:$0x1]
  %v48 = vld [vmem:[%s1 + $0x38] sm:$0x1]
  %v49 = vld [vmem:[%s0] sm:$0xff]
  %v50 = vld [vmem:[%s0 + $0x8] sm:$0xff]
  %s51 = scalar_lea.vmem %s2, 32
  %v52 = vld [vmem:[%s51] sm:$0xff]
  %v53 = vld [vmem:[%s3] sm:$0xff]
  %55 = vset.pattern.permute.xlu0 0
  %56 = vperm.xlu0 %55, %v53
  %v57 = vpop.permute.xlu0 %56
  %61 = vst [vmem:[#allocation1] ss:$2 sm:$0xff] %v49
  %s62 = scalar_lea.vmem [#allocation1], 16
  %63 = vst [vmem:[%s62] ss:$2 sm:$0xff] %v50
  %v64 = vld.sshfl [vmem:[#allocation1] sm:$0xff pattern:$0x75316420]
  %v65 = vld.sshfl [vmem:[#allocation1 + $0x8] sm:$0xff pattern:$0x75316420]
  %v66 = vld.sshfl [vmem:[#allocation1 + $0x10] sm:$0xff pattern:$0x75316420]
  %v67 = vld.sshfl [vmem:[#allocation1 + $0x18] sm:$0xff pattern:$0x75316420]
  %vm68 = vcmask 31744
  %v70 = vsel %vm68, %v52, 0
  %vm72 = vcmask 1043456
  %v73 = vsel %vm72, %v64, 0
  %v75 = vsel %vm72, %v65, 0
  %v77 = vsel %vm72, %v66, 0
  %v79 = vsel %vm72, %v67, 0
  %81 = vmatpush.msra.mxu0 0.0
  %82 = vmatpush.msra.mxu0 0.0
  %83 = vmatpush.msra.mxu0 0.0
  %84 = vmatpush.msra.mxu0 0.0
  %85 = vmatpush.msra.mxu0 0.0
  %86 = vmatpush.msra.mxu0 0.0
  %87 = vmatpush.msra.mxu0 0.0
  %88 = vmatpush.msra.mxu0 0.0
  %89 = vmatpush.msra.mxu0 0.0
  %90 = vmatpush.msra.mxu0 0.0
  %91 = vmatpush.msra.mxu0 0.0
  %92 = vmatpush.msra.mxu0 0.0
  %93 = vmatpush.msra.mxu0 0.0
  %94 = vmatpush.msra.mxu0 0.0
  %95 = vmatpush.msra.mxu0 0.0
  %96 = vmatpush.msra.mxu0 %v73
  %97 = vmatmul.f32.gmra.mxu0 %v70
  %v98 = vpop.f32.mrf.mxu0
  %v99 = vadd.f32 %v57, %v98
  %100 = vdwg.mxu0
  %101 = vmatpush.msra.mxu0 0.0
  %102 = vmatpush.msra.mxu0 0.0
  %103 = vmatpush.msra.mxu0 0.0
  %104 = vmatpush.msra.mxu0 0.0
  %105 = vmatpush.msra.mxu0 0.0
  %106 = vmatpush.msra.mxu0 0.0
  %107 = vmatpush.msra.mxu0 0.0
  %108 = vmatpush.msra.mxu0 0.0
  %109 = vmatpush.msra.mxu0 0.0
  %110 = vmatpush.msra.mxu0 0.0
  %111 = vmatpush.msra.mxu0 0.0
  %112 = vmatpush.msra.mxu0 0.0
  %113 = vmatpush.msra.mxu0 0.0
  %114 = vmatpush.msra.mxu0 0.0
  %115 = vmatpush.msra.mxu0 0.0
  %116 = vmatpush.msra.mxu0 %v75
  %117 = vmatmul.f32.gmra.mxu0 %v70
  %v118 = vpop.f32.mrf.mxu0
  %v119 = vadd.f32 %v57, %v118
  %120 = vdwg.mxu0
  %121 = vmatpush.msra.mxu0 0.0
  %122 = vmatpush.msra.mxu0 0.0
  %123 = vmatpush.msra.mxu0 0.0
  %124 = vmatpush.msra.mxu0 0.0
  %125 = vmatpush.msra.mxu0 0.0
  %126 = vmatpush.msra.mxu0 0.0
  %127 = vmatpush.msra.mxu0 0.0
  %128 = vmatpush.msra.mxu0 0.0
  %129 = vmatpush.msra.mxu0 0.0
  %130 = vmatpush.msra.mxu0 0.0
  %131 = vmatpush.msra.mxu0 0.0
  %132 = vmatpush.msra.mxu0 0.0
  %133 = vmatpush.msra.mxu0 0.0
  %134 = vmatpush.msra.mxu0 0.0
  %135 = vmatpush.msra.mxu0 0.0
  %136 = vmatpush.msra.mxu0 %v77
  %137 = vmatmul.f32.gmra.mxu0 %v70
  %v138 = vpop.f32.mrf.mxu0
  %v139 = vadd.f32 %v57, %v138
  %140 = vdwg.mxu0
  %141 = vmatpush.msra.mxu0 0.0
  %142 = vmatpush.msra.mxu0 0.0
  %143 = vmatpush.msra.mxu0 0.0
  %144 = vmatpush.msra.mxu0 0.0
  %145 = vmatpush.msra.mxu0 0.0
  %146 = vmatpush.msra.mxu0 0.0
  %147 = vmatpush.msra.mxu0 0.0
  %148 = vmatpush.msra.mxu0 0.0
  %149 = vmatpush.msra.mxu0 0.0
  %150 = vmatpush.msra.mxu0 0.0
  %151 = vmatpush.msra.mxu0 0.0
  %152 = vmatpush.msra.mxu0 0.0
  %153 = vmatpush.msra.mxu0 0.0
  %154 = vmatpush.msra.mxu0 0.0
  %155 = vmatpush.msra.mxu0 0.0
  %156 = vmatpush.msra.mxu0 %v79
  %157 = vmatmul.f32.gmra.mxu0 %v70
  %v158 = vpop.f32.mrf.mxu0
  %v159 = vadd.f32 %v57, %v158
  %160 = vdwg.mxu0
  %161 = vst [vmem:[#allocation1] ss:$2 sm:$0xff] %v49
  %s162 = scalar_lea.vmem [#allocation1], 16
  %163 = vst [vmem:[%s162] ss:$2 sm:$0xff] %v50
  %v164 = vld.sshfl [vmem:[#allocation1] sm:$0xff pattern:$0x75316420]
  %v165 = vld.sshfl [vmem:[#allocation1 + $0x8] sm:$0xff pattern:$0x75316420]
  %v166 = vld.sshfl [vmem:[#allocation1 + $0x10] sm:$0xff pattern:$0x75316420]
  %v167 = vld.sshfl [vmem:[#allocation1 + $0x18] sm:$0xff pattern:$0x75316420]
  %172 = vrot.lane.b32.xlu0 %v164, 17
  %v173 = vpop.permute.xlu0 %172
  %174 = vrot.lane.b32.xlu0 %v165, 17
  %v175 = vpop.permute.xlu0 %174
  %176 = vrot.lane.b32.xlu0 %v166, 17
  %v177 = vpop.permute.xlu0 %176
  %178 = vrot.lane.b32.xlu0 %v167, 17
  %v179 = vpop.permute.xlu0 %178
  %v180 = vlaneseq
  %v181 = vand.u32 %v180, 127
  %vm182 = vcmp.lt.s32.totalorder %v181, 17
  %v183 = vsel %vm182, %v177, %v179
  %v184 = vsel %vm182, %v175, %v177
  %v185 = vsel %vm182, %v173, %v175
  %v186 = vsel %vm182, %v179, %v173
  %v187 = vperm.slane %v41, 0
  %v188 = vperm.slane %v42, 0
  %v189 = vperm.slane %v43, 0
  %v190 = vperm.slane %v44, 0
  %v191 = vmul.f32 %v186, %v187
  %v192 = vmul.f32 %v185, %v188
  %v193 = vmul.f32 %v184, %v189
  %v194 = vmul.f32 %v183, %v190
  %v195 = vld [vmem:[%s2] sm:$0xff]
  %v197 = vsel %vm68, %v195, 0
  %v200 = vsel %vm72, %v191, 0
  %v203 = vsel %vm72, %v192, 0
  %v206 = vsel %vm72, %v193, 0
  %v209 = vsel %vm72, %v194, 0
  %211 = vmatpush.msra.mxu0 0.0
  %212 = vmatpush.msra.mxu0 0.0
  %213 = vmatpush.msra.mxu0 0.0
  %214 = vmatpush.msra.mxu0 0.0
  %215 = vmatpush.msra.mxu0 0.0
  %216 = vmatpush.msra.mxu0 0.0
  %217 = vmatpush.msra.mxu0 0.0
  %218 = vmatpush.msra.mxu0 0.0
  %219 = vmatpush.msra.mxu0 0.0
  %220 = vmatpush.msra.mxu0 0.0
  %221 = vmatpush.msra.mxu0 0.0
  %222 = vmatpush.msra.mxu0 0.0
  %223 = vmatpush.msra.mxu0 0.0
  %224 = vmatpush.msra.mxu0 0.0
  %225 = vmatpush.msra.mxu0 0.0
  %226 = vmatpush.msra.mxu0 %v200
  %227 = vmatmul.f32.gmra.mxu0 %v197
  %v228 = vpop.f32.mrf.mxu0
  %v229 = vadd.f32 0.0, %v228
  %230 = vdwg.mxu0
  %231 = vmatpush.msra.mxu0 0.0
  %232 = vmatpush.msra.mxu0 0.0
  %233 = vmatpush.msra.mxu0 0.0
  %234 = vmatpush.msra.mxu0 0.0
  %235 = vmatpush.msra.mxu0 0.0
  %236 = vmatpush.msra.mxu0 0.0
  %237 = vmatpush.msra.mxu0 0.0
  %238 = vmatpush.msra.mxu0 0.0
  %239 = vmatpush.msra.mxu0 0.0
  %240 = vmatpush.msra.mxu0 0.0
  %241 = vmatpush.msra.mxu0 0.0
  %242 = vmatpush.msra.mxu0 0.0
  %243 = vmatpush.msra.mxu0 0.0
  %244 = vmatpush.msra.mxu0 0.0
  %245 = vmatpush.msra.mxu0 0.0
  %246 = vmatpush.msra.mxu0 %v203
  %247 = vmatmul.f32.gmra.mxu0 %v197
  %v248 = vpop.f32.mrf.mxu0
  %v249 = vadd.f32 0.0, %v248
  %250 = vdwg.mxu0
  %251 = vmatpush.msra.mxu0 0.0
  %252 = vmatpush.msra.mxu0 0.0
  %253 = vmatpush.msra.mxu0 0.0
  %254 = vmatpush.msra.mxu0 0.0
  %255 = vmatpush.msra.mxu0 0.0
  %256 = vmatpush.msra.mxu0 0.0
  %257 = vmatpush.msra.mxu0 0.0
  %258 = vmatpush.msra.mxu0 0.0
  %259 = vmatpush.msra.mxu0 0.0
  %260 = vmatpush.msra.mxu0 0.0
  %261 = vmatpush.msra.mxu0 0.0
  %262 = vmatpush.msra.mxu0 0.0
  %263 = vmatpush.msra.mxu0 0.0
  %264 = vmatpush.msra.mxu0 0.0
  %265 = vmatpush.msra.mxu0 0.0
  %266 = vmatpush.msra.mxu0 %v206
  %267 = vmatmul.f32.gmra.mxu0 %v197
  %v268 = vpop.f32.mrf.mxu0
  %v269 = vadd.f32 0.0, %v268
  %270 = vdwg.mxu0
  %271 = vmatpush.msra.mxu0 0.0
  %272 = vmatpush.msra.mxu0 0.0
  %273 = vmatpush.msra.mxu0 0.0
  %274 = vmatpush.msra.mxu0 0.0
  %275 = vmatpush.msra.mxu0 0.0
  %276 = vmatpush.msra.mxu0 0.0
  %277 = vmatpush.msra.mxu0 0.0
  %278 = vmatpush.msra.mxu0 0.0
  %279 = vmatpush.msra.mxu0 0.0
  %280 = vmatpush.msra.mxu0 0.0
  %281 = vmatpush.msra.mxu0 0.0
  %282 = vmatpush.msra.mxu0 0.0
  %283 = vmatpush.msra.mxu0 0.0
  %284 = vmatpush.msra.mxu0 0.0
  %285 = vmatpush.msra.mxu0 0.0
  %286 = vmatpush.msra.mxu0 %v209
  %287 = vmatmul.f32.gmra.mxu0 %v197
  %v288 = vpop.f32.mrf.mxu0
  %v289 = vadd.f32 0.0, %v288
  %290 = vdwg.mxu0
  %v291 = vadd.f32 %v99, %v229
  %v292 = vadd.f32 %v119, %v249
  %v293 = vadd.f32 %v139, %v269
  %v294 = vadd.f32 %v159, %v289
  %295 = vst [vmem:[#allocation1] ss:$2 sm:$0xff] %v49
  %s296 = scalar_lea.vmem [#allocation1], 16
  %297 = vst [vmem:[%s296] ss:$2 sm:$0xff] %v50
  %v298 = vld.sshfl [vmem:[#allocation1] sm:$0xff pattern:$0x75316420]
  %v299 = vld.sshfl [vmem:[#allocation1 + $0x8] sm:$0xff pattern:$0x75316420]
  %v300 = vld.sshfl [vmem:[#allocation1 + $0x10] sm:$0xff pattern:$0x75316420]
  %v301 = vld.sshfl [vmem:[#allocation1 + $0x18] sm:$0xff pattern:$0x75316420]
  %306 = vrot.lane.b32.xlu0 %v298, 16
  %v307 = vpop.permute.xlu0 %306
  %308 = vrot.lane.b32.xlu0 %v299, 16
  %v309 = vpop.permute.xlu0 %308
  %310 = vrot.lane.b32.xlu0 %v300, 16
  %v311 = vpop.permute.xlu0 %310
  %312 = vrot.lane.b32.xlu0 %v301, 16
  %v313 = vpop.permute.xlu0 %312
  %vm314 = vcmp.lt.s32.totalorder %v181, 16
  %v315 = vsel %vm314, %v311, %v313
  %v316 = vsel %vm314, %v309, %v311
  %v317 = vsel %vm314, %v307, %v309
  %v318 = vsel %vm314, %v313, %v307
  %v319 = vperm.slane %v41, 1
  %v320 = vperm.slane %v42, 1
  %v321 = vperm.slane %v43, 1
  %v322 = vperm.slane %v44, 1
  %v323 = vmul.f32 %v318, %v319
  %v324 = vmul.f32 %v317, %v320
  %v325 = vmul.f32 %v316, %v321
  %v326 = vmul.f32 %v315, %v322
  %s327 = scalar_lea.vmem %s2, 8
  %v328 = vld [vmem:[%s327] sm:$0xff]
  %v330 = vsel %vm68, %v328, 0
  %v333 = vsel %vm72, %v323, 0
  %v336 = vsel %vm72, %v324, 0
  %v339 = vsel %vm72, %v325, 0
  %v342 = vsel %vm72, %v326, 0
  %344 = vmatpush.msra.mxu0 0.0
  %345 = vmatpush.msra.mxu0 0.0
  %346 = vmatpush.msra.mxu0 0.0
  %347 = vmatpush.msra.mxu0 0.0
  %348 = vmatpush.msra.mxu0 0.0
  %349 = vmatpush.msra.mxu0 0.0
  %350 = vmatpush.msra.mxu0 0.0
  %351 = vmatpush.msra.mxu0 0.0
  %352 = vmatpush.msra.mxu0 0.0
  %353 = vmatpush.msra.mxu0 0.0
  %354 = vmatpush.msra.mxu0 0.0
  %355 = vmatpush.msra.mxu0 0.0
  %356 = vmatpush.msra.mxu0 0.0
  %357 = vmatpush.msra.mxu0 0.0
  %358 = vmatpush.msra.mxu0 0.0
  %359 = vmatpush.msra.mxu0 %v333
  %360 = vmatmul.f32.gmra.mxu0 %v330
  %v361 = vpop.f32.mrf.mxu0
  %v362 = vadd.f32 0.0, %v361
  %363 = vdwg.mxu0
  %364 = vmatpush.msra.mxu0 0.0
  %365 = vmatpush.msra.mxu0 0.0
  %366 = vmatpush.msra.mxu0 0.0
  %367 = vmatpush.msra.mxu0 0.0
  %368 = vmatpush.msra.mxu0 0.0
  %369 = vmatpush.msra.mxu0 0.0
  %370 = vmatpush.msra.mxu0 0.0
  %371 = vmatpush.msra.mxu0 0.0
  %372 = vmatpush.msra.mxu0 0.0
  %373 = vmatpush.msra.mxu0 0.0
  %374 = vmatpush.msra.mxu0 0.0
  %375 = vmatpush.msra.mxu0 0.0
  %376 = vmatpush.msra.mxu0 0.0
  %377 = vmatpush.msra.mxu0 0.0
  %378 = vmatpush.msra.mxu0 0.0
  %379 = vmatpush.msra.mxu0 %v336
  %380 = vmatmul.f32.gmra.mxu0 %v330
  %v381 = vpop.f32.mrf.mxu0
  %v382 = vadd.f32 0.0, %v381
  %383 = vdwg.mxu0
  %384 = vmatpush.msra.mxu0 0.0
  %385 = vmatpush.msra.mxu0 0.0
  %386 = vmatpush.msra.mxu0 0.0
  %387 = vmatpush.msra.mxu0 0.0
  %388 = vmatpush.msra.mxu0 0.0
  %389 = vmatpush.msra.mxu0 0.0
  %390 = vmatpush.msra.mxu0 0.0
  %391 = vmatpush.msra.mxu0 0.0
  %392 = vmatpush.msra.mxu0 0.0
  %393 = vmatpush.msra.mxu0 0.0
  %394 = vmatpush.msra.mxu0 0.0
  %395 = vmatpush.msra.mxu0 0.0
  %396 = vmatpush.msra.mxu0 0.0
  %397 = vmatpush.msra.mxu0 0.0
  %398 = vmatpush.msra.mxu0 0.0
  %399 = vmatpush.msra.mxu0 %v339
  %400 = vmatmul.f32.gmra.mxu0 %v330
  %v401 = vpop.f32.mrf.mxu0
  %v402 = vadd.f32 0.0, %v401
  %403 = vdwg.mxu0
  %404 = vmatpush.msra.mxu0 0.0
  %405 = vmatpush.msra.mxu0 0.0
  %406 = vmatpush.msra.mxu0 0.0
  %407 = vmatpush.msra.mxu0 0.0
  %408 = vmatpush.msra.mxu0 0.0
  %409 = vmatpush.msra.mxu0 0.0
  %410 = vmatpush.msra.mxu0 0.0
  %411 = vmatpush.msra.mxu0 0.0
  %412 = vmatpush.msra.mxu0 0.0
  %413 = vmatpush.msra.mxu0 0.0
  %414 = vmatpush.msra.mxu0 0.0
  %415 = vmatpush.msra.mxu0 0.0
  %416 = vmatpush.msra.mxu0 0.0
  %417 = vmatpush.msra.mxu0 0.0
  %418 = vmatpush.msra.mxu0 0.0
  %419 = vmatpush.msra.mxu0 %v342
  %420 = vmatmul.f32.gmra.mxu0 %v330
  %v421 = vpop.f32.mrf.mxu0
  %v422 = vadd.f32 0.0, %v421
  %423 = vdwg.mxu0
  %v424 = vadd.f32 %v291, %v362
  %v425 = vadd.f32 %v292, %v382
  %v426 = vadd.f32 %v293, %v402
  %v427 = vadd.f32 %v294, %v422
  %428 = vst [vmem:[#allocation1] ss:$2 sm:$0xff] %v49
  %s429 = scalar_lea.vmem [#allocation1], 16
  %430 = vst [vmem:[%s429] ss:$2 sm:$0xff] %v50
  %v431 = vld.sshfl [vmem:[#allocation1] sm:$0xff pattern:$0x75316420]
  %v432 = vld.sshfl [vmem:[#allocation1 + $0x8] sm:$0xff pattern:$0x75316420]
  %v433 = vld.sshfl [vmem:[#allocation1 + $0x10] sm:$0xff pattern:$0x75316420]
  %v434 = vld.sshfl [vmem:[#allocation1 + $0x18] sm:$0xff pattern:$0x75316420]
  %439 = vrot.lane.b32.xlu0 %v431, 15
  %v440 = vpop.permute.xlu0 %439
  %441 = vrot.lane.b32.xlu0 %v432, 15
  %v442 = vpop.permute.xlu0 %441
  %443 = vrot.lane.b32.xlu0 %v433, 15
  %v444 = vpop.permute.xlu0 %443
  %445 = vrot.lane.b32.xlu0 %v434, 15
  %v446 = vpop.permute.xlu0 %445
  %vm447 = vcmp.lt.s32.totalorder %v181, 15
  %v448 = vsel %vm447, %v444, %v446
  %v449 = vsel %vm447, %v442, %v444
  %v450 = vsel %vm447, %v440, %v442
  %v451 = vsel %vm447, %v446, %v440
  %v452 = vperm.slane %v41, 2
  %v453 = vperm.slane %v42, 2
  %v454 = vperm.slane %v43, 2
  %v455 = vperm.slane %v44, 2
  %v456 = vmul.f32 %v451, %v452
  %v457 = vmul.f32 %v450, %v453
  %v458 = vmul.f32 %v449, %v454
  %v459 = vmul.f32 %v448, %v455
  %s460 = scalar_lea.vmem %s2, 16
  %v461 = vld [vmem:[%s460] sm:$0xff]
  %v463 = vsel %vm68, %v461, 0
  %v466 = vsel %vm72, %v456, 0
  %v469 = vsel %vm72, %v457, 0
  %v472 = vsel %vm72, %v458, 0
  %v475 = vsel %vm72, %v459, 0
  %477 = vmatpush.msra.mxu0 0.0
  %478 = vmatpush.msra.mxu0 0.0
  %479 = vmatpush.msra.mxu0 0.0
  %480 = vmatpush.msra.mxu0 0.0
  %481 = vmatpush.msra.mxu0 0.0
  %482 = vmatpush.msra.mxu0 0.0
  %483 = vmatpush.msra.mxu0 0.0
  %484 = vmatpush.msra.mxu0 0.0
  %485 = vmatpush.msra.mxu0 0.0
  %486 = vmatpush.msra.mxu0 0.0
  %487 = vmatpush.msra.mxu0 0.0
  %488 = vmatpush.msra.mxu0 0.0
  %489 = vmatpush.msra.mxu0 0.0
  %490 = vmatpush.msra.mxu0 0.0
  %491 = vmatpush.msra.mxu0 0.0
  %492 = vmatpush.msra.mxu0 %v466
  %493 = vmatmul.f32.gmra.mxu0 %v463
  %v494 = vpop.f32.mrf.mxu0
  %v495 = vadd.f32 0.0, %v494
  %496 = vdwg.mxu0
  %497 = vmatpush.msra.mxu0 0.0
  %498 = vmatpush.msra.mxu0 0.0
  %499 = vmatpush.msra.mxu0 0.0
  %500 = vmatpush.msra.mxu0 0.0
  %501 = vmatpush.msra.mxu0 0.0
  %502 = vmatpush.msra.mxu0 0.0
  %503 = vmatpush.msra.mxu0 0.0
  %504 = vmatpush.msra.mxu0 0.0
  %505 = vmatpush.msra.mxu0 0.0
  %506 = vmatpush.msra.mxu0 0.0
  %507 = vmatpush.msra.mxu0 0.0
  %508 = vmatpush.msra.mxu0 0.0
  %509 = vmatpush.msra.mxu0 0.0
  %510 = vmatpush.msra.mxu0 0.0
  %511 = vmatpush.msra.mxu0 0.0
  %512 = vmatpush.msra.mxu0 %v469
  %513 = vmatmul.f32.gmra.mxu0 %v463
  %v514 = vpop.f32.mrf.mxu0
  %v515 = vadd.f32 0.0, %v514
  %516 = vdwg.mxu0
  %517 = vmatpush.msra.mxu0 0.0
  %518 = vmatpush.msra.mxu0 0.0
  %519 = vmatpush.msra.mxu0 0.0
  %520 = vmatpush.msra.mxu0 0.0
  %521 = vmatpush.msra.mxu0 0.0
  %522 = vmatpush.msra.mxu0 0.0
  %523 = vmatpush.msra.mxu0 0.0
  %524 = vmatpush.msra.mxu0 0.0
  %525 = vmatpush.msra.mxu0 0.0
  %526 = vmatpush.msra.mxu0 0.0
  %527 = vmatpush.msra.mxu0 0.0
  %528 = vmatpush.msra.mxu0 0.0
  %529 = vmatpush.msra.mxu0 0.0
  %530 = vmatpush.msra.mxu0 0.0
  %531 = vmatpush.msra.mxu0 0.0
  %532 = vmatpush.msra.mxu0 %v472
  %533 = vmatmul.f32.gmra.mxu0 %v463
  %v534 = vpop.f32.mrf.mxu0
  %v535 = vadd.f32 0.0, %v534
  %536 = vdwg.mxu0
  %537 = vmatpush.msra.mxu0 0.0
  %538 = vmatpush.msra.mxu0 0.0
  %539 = vmatpush.msra.mxu0 0.0
  %540 = vmatpush.msra.mxu0 0.0
  %541 = vmatpush.msra.mxu0 0.0
  %542 = vmatpush.msra.mxu0 0.0
  %543 = vmatpush.msra.mxu0 0.0
  %544 = vmatpush.msra.mxu0 0.0
  %545 = vmatpush.msra.mxu0 0.0
  %546 = vmatpush.msra.mxu0 0.0
  %547 = vmatpush.msra.mxu0 0.0
  %548 = vmatpush.msra.mxu0 0.0
  %549 = vmatpush.msra.mxu0 0.0
  %550 = vmatpush.msra.mxu0 0.0
  %551 = vmatpush.msra.mxu0 0.0
  %552 = vmatpush.msra.mxu0 %v475
  %553 = vmatmul.f32.gmra.mxu0 %v463
  %v554 = vpop.f32.mrf.mxu0
  %v555 = vadd.f32 0.0, %v554
  %556 = vdwg.mxu0
  %v557 = vadd.f32 %v424, %v495
  %v558 = vadd.f32 %v425, %v515
  %v559 = vadd.f32 %v426, %v535
  %v560 = vadd.f32 %v427, %v555
  %561 = vst [vmem:[#allocation1] ss:$2 sm:$0xff] %v49
  %s562 = scalar_lea.vmem [#allocation1], 16
  %563 = vst [vmem:[%s562] ss:$2 sm:$0xff] %v50
  %v564 = vld.sshfl [vmem:[#allocation1] sm:$0xff pattern:$0x75316420]
  %v565 = vld.sshfl [vmem:[#allocation1 + $0x8] sm:$0xff pattern:$0x75316420]
  %v566 = vld.sshfl [vmem:[#allocation1 + $0x10] sm:$0xff pattern:$0x75316420]
  %v567 = vld.sshfl [vmem:[#allocation1 + $0x18] sm:$0xff pattern:$0x75316420]
  %572 = vrot.lane.b32.xlu0 %v564, 1
  %v573 = vpop.permute.xlu0 %572
  %574 = vrot.lane.b32.xlu0 %v565, 1
  %v575 = vpop.permute.xlu0 %574
  %576 = vrot.lane.b32.xlu0 %v566, 1
  %v577 = vpop.permute.xlu0 %576
  %578 = vrot.lane.b32.xlu0 %v567, 1
  %v579 = vpop.permute.xlu0 %578
  %vm580 = vcmp.lt.s32.totalorder %v181, 1
  %v581 = vsel %vm580, %v577, %v579
  %v582 = vsel %vm580, %v575, %v577
  %v583 = vsel %vm580, %v573, %v575
  %v584 = vsel %vm580, %v579, %v573
  %v585 = vperm.slane %v41, 3
  %v586 = vperm.slane %v42, 3
  %v587 = vperm.slane %v43, 3
  %v588 = vperm.slane %v44, 3
  %v589 = vmul.f32 %v584, %v585
  %v590 = vmul.f32 %v583, %v586
  %v591 = vmul.f32 %v582, %v587
  %v592 = vmul.f32 %v581, %v588
  %s593 = scalar_lea.vmem %s2, 24
  %v594 = vld [vmem:[%s593] sm:$0xff]
  %v596 = vsel %vm68, %v594, 0
  %v599 = vsel %vm72, %v589, 0
  %v602 = vsel %vm72, %v590, 0
  %v605 = vsel %vm72, %v591, 0
  %v608 = vsel %vm72, %v592, 0
  %610 = vmatpush.msra.mxu0 0.0
  %611 = vmatpush.msra.mxu0 0.0
  %612 = vmatpush.msra.mxu0 0.0
  %613 = vmatpush.msra.mxu0 0.0
  %614 = vmatpush.msra.mxu0 0.0
  %615 = vmatpush.msra.mxu0 0.0
  %616 = vmatpush.msra.mxu0 0.0
  %617 = vmatpush.msra.mxu0 0.0
  %618 = vmatpush.msra.mxu0 0.0
  %619 = vmatpush.msra.mxu0 0.0
  %620 = vmatpush.msra.mxu0 0.0
  %621 = vmatpush.msra.mxu0 0.0
  %622 = vmatpush.msra.mxu0 0.0
  %623 = vmatpush.msra.mxu0 0.0
  %624 = vmatpush.msra.mxu0 0.0
  %625 = vmatpush.msra.mxu0 %v599
  %626 = vmatmul.f32.gmra.mxu0 %v596
  %v627 = vpop.f32.mrf.mxu0
  %v628 = vadd.f32 0.0, %v627
  %629 = vdwg.mxu0
  %630 = vmatpush.msra.mxu0 0.0
  %631 = vmatpush.msra.mxu0 0.0
  %632 = vmatpush.msra.mxu0 0.0
  %633 = vmatpush.msra.mxu0 0.0
  %634 = vmatpush.msra.mxu0 0.0
  %635 = vmatpush.msra.mxu0 0.0
  %636 = vmatpush.msra.mxu0 0.0
  %637 = vmatpush.msra.mxu0 0.0
  %638 = vmatpush.msra.mxu0 0.0
  %639 = vmatpush.msra.mxu0 0.0
  %640 = vmatpush.msra.mxu0 0.0
  %641 = vmatpush.msra.mxu0 0.0
  %642 = vmatpush.msra.mxu0 0.0
  %643 = vmatpush.msra.mxu0 0.0
  %644 = vmatpush.msra.mxu0 0.0
  %645 = vmatpush.msra.mxu0 %v602
  %646 = vmatmul.f32.gmra.mxu0 %v596
  %v647 = vpop.f32.mrf.mxu0
  %v648 = vadd.f32 0.0, %v647
  %649 = vdwg.mxu0
  %650 = vmatpush.msra.mxu0 0.0
  %651 = vmatpush.msra.mxu0 0.0
  %652 = vmatpush.msra.mxu0 0.0
  %653 = vmatpush.msra.mxu0 0.0
  %654 = vmatpush.msra.mxu0 0.0
  %655 = vmatpush.msra.mxu0 0.0
  %656 = vmatpush.msra.mxu0 0.0
  %657 = vmatpush.msra.mxu0 0.0
  %658 = vmatpush.msra.mxu0 0.0
  %659 = vmatpush.msra.mxu0 0.0
  %660 = vmatpush.msra.mxu0 0.0
  %661 = vmatpush.msra.mxu0 0.0
  %662 = vmatpush.msra.mxu0 0.0
  %663 = vmatpush.msra.mxu0 0.0
  %664 = vmatpush.msra.mxu0 0.0
  %665 = vmatpush.msra.mxu0 %v605
  %666 = vmatmul.f32.gmra.mxu0 %v596
  %v667 = vpop.f32.mrf.mxu0
  %v668 = vadd.f32 0.0, %v667
  %669 = vdwg.mxu0
  %670 = vmatpush.msra.mxu0 0.0
  %671 = vmatpush.msra.mxu0 0.0
  %672 = vmatpush.msra.mxu0 0.0
  %673 = vmatpush.msra.mxu0 0.0
  %674 = vmatpush.msra.mxu0 0.0
  %675 = vmatpush.msra.mxu0 0.0
  %676 = vmatpush.msra.mxu0 0.0
  %677 = vmatpush.msra.mxu0 0.0
  %678 = vmatpush.msra.mxu0 0.0
  %679 = vmatpush.msra.mxu0 0.0
  %680 = vmatpush.msra.mxu0 0.0
  %681 = vmatpush.msra.mxu0 0.0
  %682 = vmatpush.msra.mxu0 0.0
  %683 = vmatpush.msra.mxu0 0.0
  %684 = vmatpush.msra.mxu0 0.0
  %685 = vmatpush.msra.mxu0 %v608
  %686 = vmatmul.f32.gmra.mxu0 %v596
  %v687 = vpop.f32.mrf.mxu0
  %v688 = vadd.f32 0.0, %v687
  %689 = vdwg.mxu0
  %v690 = vadd.f32 %v557, %v628
  %v691 = vadd.f32 %v558, %v648
  %v692 = vadd.f32 %v559, %v668
  %v693 = vadd.f32 %v560, %v688
  %694 = vst [vmem:[#allocation1] ss:$2 sm:$0xff] %v49
  %s695 = scalar_lea.vmem [#allocation1], 16
  %696 = vst [vmem:[%s695] ss:$2 sm:$0xff] %v50
  %v697 = vld.sshfl [vmem:[#allocation1] sm:$0xff pattern:$0x75316420]
  %v698 = vld.sshfl [vmem:[#allocation1 + $0x8] sm:$0xff pattern:$0x75316420]
  %v699 = vld.sshfl [vmem:[#allocation1 + $0x10] sm:$0xff pattern:$0x75316420]
  %v700 = vld.sshfl [vmem:[#allocation1 + $0x18] sm:$0xff pattern:$0x75316420]
  %705 = vrot.lane.b32.xlu0 %v697, 127
  %v706 = vpop.permute.xlu0 %705
  %707 = vrot.lane.b32.xlu0 %v698, 127
  %v708 = vpop.permute.xlu0 %707
  %709 = vrot.lane.b32.xlu0 %v699, 127
  %v710 = vpop.permute.xlu0 %709
  %711 = vrot.lane.b32.xlu0 %v700, 127
  %v712 = vpop.permute.xlu0 %711
  %vm713 = vcmp.lt.s32.totalorder %v181, 127
  %v714 = vsel %vm713, %v710, %v712
  %v715 = vsel %vm713, %v708, %v710
  %v716 = vsel %vm713, %v706, %v708
  %v717 = vsel %vm713, %v712, %v706
  %v718 = vperm.slane %v41, 5
  %v719 = vperm.slane %v42, 5
  %v720 = vperm.slane %v43, 5
  %v721 = vperm.slane %v44, 5
  %v722 = vmul.f32 %v716, %v718
  %v723 = vmul.f32 %v715, %v719
  %v724 = vmul.f32 %v714, %v720
  %v725 = vmul.f32 %v717, %v721
  %s726 = scalar_lea.vmem %s2, 40
  %v727 = vld [vmem:[%s726] sm:$0xff]
  %v729 = vsel %vm68, %v727, 0
  %v732 = vsel %vm72, %v722, 0
  %v735 = vsel %vm72, %v723, 0
  %v738 = vsel %vm72, %v724, 0
  %v741 = vsel %vm72, %v725, 0
  %743 = vmatpush.msra.mxu0 0.0
  %744 = vmatpush.msra.mxu0 0.0
  %745 = vmatpush.msra.mxu0 0.0
  %746 = vmatpush.msra.mxu0 0.0
  %747 = vmatpush.msra.mxu0 0.0
  %748 = vmatpush.msra.mxu0 0.0
  %749 = vmatpush.msra.mxu0 0.0
  %750 = vmatpush.msra.mxu0 0.0
  %751 = vmatpush.msra.mxu0 0.0
  %752 = vmatpush.msra.mxu0 0.0
  %753 = vmatpush.msra.mxu0 0.0
  %754 = vmatpush.msra.mxu0 0.0
  %755 = vmatpush.msra.mxu0 0.0
  %756 = vmatpush.msra.mxu0 0.0
  %757 = vmatpush.msra.mxu0 0.0
  %758 = vmatpush.msra.mxu0 %v732
  %759 = vmatmul.f32.gmra.mxu0 %v729
  %v760 = vpop.f32.mrf.mxu0
  %v761 = vadd.f32 0.0, %v760
  %762 = vdwg.mxu0
  %763 = vmatpush.msra.mxu0 0.0
  %764 = vmatpush.msra.mxu0 0.0
  %765 = vmatpush.msra.mxu0 0.0
  %766 = vmatpush.msra.mxu0 0.0
  %767 = vmatpush.msra.mxu0 0.0
  %768 = vmatpush.msra.mxu0 0.0
  %769 = vmatpush.msra.mxu0 0.0
  %770 = vmatpush.msra.mxu0 0.0
  %771 = vmatpush.msra.mxu0 0.0
  %772 = vmatpush.msra.mxu0 0.0
  %773 = vmatpush.msra.mxu0 0.0
  %774 = vmatpush.msra.mxu0 0.0
  %775 = vmatpush.msra.mxu0 0.0
  %776 = vmatpush.msra.mxu0 0.0
  %777 = vmatpush.msra.mxu0 0.0
  %778 = vmatpush.msra.mxu0 %v735
  %779 = vmatmul.f32.gmra.mxu0 %v729
  %v780 = vpop.f32.mrf.mxu0
  %v781 = vadd.f32 0.0, %v780
  %782 = vdwg.mxu0
  %783 = vmatpush.msra.mxu0 0.0
  %784 = vmatpush.msra.mxu0 0.0
  %785 = vmatpush.msra.mxu0 0.0
  %786 = vmatpush.msra.mxu0 0.0
  %787 = vmatpush.msra.mxu0 0.0
  %788 = vmatpush.msra.mxu0 0.0
  %789 = vmatpush.msra.mxu0 0.0
  %790 = vmatpush.msra.mxu0 0.0
  %791 = vmatpush.msra.mxu0 0.0
  %792 = vmatpush.msra.mxu0 0.0
  %793 = vmatpush.msra.mxu0 0.0
  %794 = vmatpush.msra.mxu0 0.0
  %795 = vmatpush.msra.mxu0 0.0
  %796 = vmatpush.msra.mxu0 0.0
  %797 = vmatpush.msra.mxu0 0.0
  %798 = vmatpush.msra.mxu0 %v738
  %799 = vmatmul.f32.gmra.mxu0 %v729
  %v800 = vpop.f32.mrf.mxu0
  %v801 = vadd.f32 0.0, %v800
  %802 = vdwg.mxu0
  %803 = vmatpush.msra.mxu0 0.0
  %804 = vmatpush.msra.mxu0 0.0
  %805 = vmatpush.msra.mxu0 0.0
  %806 = vmatpush.msra.mxu0 0.0
  %807 = vmatpush.msra.mxu0 0.0
  %808 = vmatpush.msra.mxu0 0.0
  %809 = vmatpush.msra.mxu0 0.0
  %810 = vmatpush.msra.mxu0 0.0
  %811 = vmatpush.msra.mxu0 0.0
  %812 = vmatpush.msra.mxu0 0.0
  %813 = vmatpush.msra.mxu0 0.0
  %814 = vmatpush.msra.mxu0 0.0
  %815 = vmatpush.msra.mxu0 0.0
  %816 = vmatpush.msra.mxu0 0.0
  %817 = vmatpush.msra.mxu0 0.0
  %818 = vmatpush.msra.mxu0 %v741
  %819 = vmatmul.f32.gmra.mxu0 %v729
  %v820 = vpop.f32.mrf.mxu0
  %v821 = vadd.f32 0.0, %v820
  %822 = vdwg.mxu0
  %v823 = vadd.f32 %v690, %v761
  %v824 = vadd.f32 %v691, %v781
  %v825 = vadd.f32 %v692, %v801
  %v826 = vadd.f32 %v693, %v821
  %827 = vst [vmem:[#allocation1] ss:$2 sm:$0xff] %v49
  %s828 = scalar_lea.vmem [#allocation1], 16
  %829 = vst [vmem:[%s828] ss:$2 sm:$0xff] %v50
  %v830 = vld.sshfl [vmem:[#allocation1] sm:$0xff pattern:$0x75316420]
  %v831 = vld.sshfl [vmem:[#allocation1 + $0x8] sm:$0xff pattern:$0x75316420]
  %v832 = vld.sshfl [vmem:[#allocation1 + $0x10] sm:$0xff pattern:$0x75316420]
  %v833 = vld.sshfl [vmem:[#allocation1 + $0x18] sm:$0xff pattern:$0x75316420]
  %838 = vrot.lane.b32.xlu0 %v830, 113
  %v839 = vpop.permute.xlu0 %838
  %840 = vrot.lane.b32.xlu0 %v831, 113
  %v841 = vpop.permute.xlu0 %840
  %842 = vrot.lane.b32.xlu0 %v832, 113
  %v843 = vpop.permute.xlu0 %842
  %844 = vrot.lane.b32.xlu0 %v833, 113
  %v845 = vpop.permute.xlu0 %844
  %vm846 = vcmp.lt.s32.totalorder %v181, 113
  %v847 = vsel %vm846, %v843, %v845
  %v848 = vsel %vm846, %v841, %v843
  %v849 = vsel %vm846, %v839, %v841
  %v850 = vsel %vm846, %v845, %v839
  %v851 = vperm.slane %v41, 6
  %v852 = vperm.slane %v42, 6
  %v853 = vperm.slane %v43, 6
  %v854 = vperm.slane %v44, 6
  %v855 = vmul.f32 %v849, %v851
  %v856 = vmul.f32 %v848, %v852
  %v857 = vmul.f32 %v847, %v853
  %v858 = vmul.f32 %v850, %v854
  %s859 = scalar_lea.vmem %s2, 48
  %v860 = vld [vmem:[%s859] sm:$0xff]
  %v862 = vsel %vm68, %v860, 0
  %v865 = vsel %vm72, %v855, 0
  %v868 = vsel %vm72, %v856, 0
  %v871 = vsel %vm72, %v857, 0
  %v874 = vsel %vm72, %v858, 0
  %876 = vmatpush.msra.mxu0 0.0
  %877 = vmatpush.msra.mxu0 0.0
  %878 = vmatpush.msra.mxu0 0.0
  %879 = vmatpush.msra.mxu0 0.0
  %880 = vmatpush.msra.mxu0 0.0
  %881 = vmatpush.msra.mxu0 0.0
  %882 = vmatpush.msra.mxu0 0.0
  %883 = vmatpush.msra.mxu0 0.0
  %884 = vmatpush.msra.mxu0 0.0
  %885 = vmatpush.msra.mxu0 0.0
  %886 = vmatpush.msra.mxu0 0.0
  %887 = vmatpush.msra.mxu0 0.0
  %888 = vmatpush.msra.mxu0 0.0
  %889 = vmatpush.msra.mxu0 0.0
  %890 = vmatpush.msra.mxu0 0.0
  %891 = vmatpush.msra.mxu0 %v865
  %892 = vmatmul.f32.gmra.mxu0 %v862
  %v893 = vpop.f32.mrf.mxu0
  %v894 = vadd.f32 0.0, %v893
  %895 = vdwg.mxu0
  %896 = vmatpush.msra.mxu0 0.0
  %897 = vmatpush.msra.mxu0 0.0
  %898 = vmatpush.msra.mxu0 0.0
  %899 = vmatpush.msra.mxu0 0.0
  %900 = vmatpush.msra.mxu0 0.0
  %901 = vmatpush.msra.mxu0 0.0
  %902 = vmatpush.msra.mxu0 0.0
  %903 = vmatpush.msra.mxu0 0.0
  %904 = vmatpush.msra.mxu0 0.0
  %905 = vmatpush.msra.mxu0 0.0
  %906 = vmatpush.msra.mxu0 0.0
  %907 = vmatpush.msra.mxu0 0.0
  %908 = vmatpush.msra.mxu0 0.0
  %909 = vmatpush.msra.mxu0 0.0
  %910 = vmatpush.msra.mxu0 0.0
  %911 = vmatpush.msra.mxu0 %v868
  %912 = vmatmul.f32.gmra.mxu0 %v862
  %v913 = vpop.f32.mrf.mxu0
  %v914 = vadd.f32 0.0, %v913
  %915 = vdwg.mxu0
  %916 = vmatpush.msra.mxu0 0.0
  %917 = vmatpush.msra.mxu0 0.0
  %918 = vmatpush.msra.mxu0 0.0
  %919 = vmatpush.msra.mxu0 0.0
  %920 = vmatpush.msra.mxu0 0.0
  %921 = vmatpush.msra.mxu0 0.0
  %922 = vmatpush.msra.mxu0 0.0
  %923 = vmatpush.msra.mxu0 0.0
  %924 = vmatpush.msra.mxu0 0.0
  %925 = vmatpush.msra.mxu0 0.0
  %926 = vmatpush.msra.mxu0 0.0
  %927 = vmatpush.msra.mxu0 0.0
  %928 = vmatpush.msra.mxu0 0.0
  %929 = vmatpush.msra.mxu0 0.0
  %930 = vmatpush.msra.mxu0 0.0
  %931 = vmatpush.msra.mxu0 %v871
  %932 = vmatmul.f32.gmra.mxu0 %v862
  %v933 = vpop.f32.mrf.mxu0
  %v934 = vadd.f32 0.0, %v933
  %935 = vdwg.mxu0
  %936 = vmatpush.msra.mxu0 0.0
  %937 = vmatpush.msra.mxu0 0.0
  %938 = vmatpush.msra.mxu0 0.0
  %939 = vmatpush.msra.mxu0 0.0
  %940 = vmatpush.msra.mxu0 0.0
  %941 = vmatpush.msra.mxu0 0.0
  %942 = vmatpush.msra.mxu0 0.0
  %943 = vmatpush.msra.mxu0 0.0
  %944 = vmatpush.msra.mxu0 0.0
  %945 = vmatpush.msra.mxu0 0.0
  %946 = vmatpush.msra.mxu0 0.0
  %947 = vmatpush.msra.mxu0 0.0
  %948 = vmatpush.msra.mxu0 0.0
  %949 = vmatpush.msra.mxu0 0.0
  %950 = vmatpush.msra.mxu0 0.0
  %951 = vmatpush.msra.mxu0 %v874
  %952 = vmatmul.f32.gmra.mxu0 %v862
  %v953 = vpop.f32.mrf.mxu0
  %v954 = vadd.f32 0.0, %v953
  %955 = vdwg.mxu0
  %v956 = vadd.f32 %v823, %v894
  %v957 = vadd.f32 %v824, %v914
  %v958 = vadd.f32 %v825, %v934
  %v959 = vadd.f32 %v826, %v954
  %960 = vst [vmem:[#allocation1] ss:$2 sm:$0xff] %v49
  %s961 = scalar_lea.vmem [#allocation1], 16
  %962 = vst [vmem:[%s961] ss:$2 sm:$0xff] %v50
  %v963 = vld.sshfl [vmem:[#allocation1] sm:$0xff pattern:$0x75316420]
  %v964 = vld.sshfl [vmem:[#allocation1 + $0x8] sm:$0xff pattern:$0x75316420]
  %v965 = vld.sshfl [vmem:[#allocation1 + $0x10] sm:$0xff pattern:$0x75316420]
  %v966 = vld.sshfl [vmem:[#allocation1 + $0x18] sm:$0xff pattern:$0x75316420]
  %971 = vrot.lane.b32.xlu0 %v963, 112
  %v972 = vpop.permute.xlu0 %971
  %973 = vrot.lane.b32.xlu0 %v964, 112
  %v974 = vpop.permute.xlu0 %973
  %975 = vrot.lane.b32.xlu0 %v965, 112
  %v976 = vpop.permute.xlu0 %975
  %977 = vrot.lane.b32.xlu0 %v966, 112
  %v978 = vpop.permute.xlu0 %977
  %vm979 = vcmp.lt.s32.totalorder %v181, 112
  %v980 = vsel %vm979, %v976, %v978
  %v981 = vsel %vm979, %v974, %v976
  %v982 = vsel %vm979, %v972, %v974
  %v983 = vsel %vm979, %v978, %v972
  %v984 = vperm.slane %v41, 7
  %v985 = vperm.slane %v42, 7
  %v986 = vperm.slane %v43, 7
  %v987 = vperm.slane %v44, 7
  %v988 = vmul.f32 %v982, %v984
  %v989 = vmul.f32 %v981, %v985
  %v990 = vmul.f32 %v980, %v986
  %v991 = vmul.f32 %v983, %v987
  %s992 = scalar_lea.vmem %s2, 56
  %v993 = vld [vmem:[%s992] sm:$0xff]
  %v995 = vsel %vm68, %v993, 0
  %v998 = vsel %vm72, %v988, 0
  %v1001 = vsel %vm72, %v989, 0
  %v1004 = vsel %vm72, %v990, 0
  %v1007 = vsel %vm72, %v991, 0
  %1009 = vmatpush.msra.mxu0 0.0
  %1010 = vmatpush.msra.mxu0 0.0
  %1011 = vmatpush.msra.mxu0 0.0
  %1012 = vmatpush.msra.mxu0 0.0
  %1013 = vmatpush.msra.mxu0 0.0
  %1014 = vmatpush.msra.mxu0 0.0
  %1015 = vmatpush.msra.mxu0 0.0
  %1016 = vmatpush.msra.mxu0 0.0
  %1017 = vmatpush.msra.mxu0 0.0
  %1018 = vmatpush.msra.mxu0 0.0
  %1019 = vmatpush.msra.mxu0 0.0
  %1020 = vmatpush.msra.mxu0 0.0
  %1021 = vmatpush.msra.mxu0 0.0
  %1022 = vmatpush.msra.mxu0 0.0
  %1023 = vmatpush.msra.mxu0 0.0
  %1024 = vmatpush.msra.mxu0 %v998
  %1025 = vmatmul.f32.gmra.mxu0 %v995
  %v1026 = vpop.f32.mrf.mxu0
  %v1027 = vadd.f32 0.0, %v1026
  %1028 = vdwg.mxu0
  %1029 = vmatpush.msra.mxu0 0.0
  %1030 = vmatpush.msra.mxu0 0.0
  %1031 = vmatpush.msra.mxu0 0.0
  %1032 = vmatpush.msra.mxu0 0.0
  %1033 = vmatpush.msra.mxu0 0.0
  %1034 = vmatpush.msra.mxu0 0.0
  %1035 = vmatpush.msra.mxu0 0.0
  %1036 = vmatpush.msra.mxu0 0.0
  %1037 = vmatpush.msra.mxu0 0.0
  %1038 = vmatpush.msra.mxu0 0.0
  %1039 = vmatpush.msra.mxu0 0.0
  %1040 = vmatpush.msra.mxu0 0.0
  %1041 = vmatpush.msra.mxu0 0.0
  %1042 = vmatpush.msra.mxu0 0.0
  %1043 = vmatpush.msra.mxu0 0.0
  %1044 = vmatpush.msra.mxu0 %v1001
  %1045 = vmatmul.f32.gmra.mxu0 %v995
  %v1046 = vpop.f32.mrf.mxu0
  %v1047 = vadd.f32 0.0, %v1046
  %1048 = vdwg.mxu0
  %1049 = vmatpush.msra.mxu0 0.0
  %1050 = vmatpush.msra.mxu0 0.0
  %1051 = vmatpush.msra.mxu0 0.0
  %1052 = vmatpush.msra.mxu0 0.0
  %1053 = vmatpush.msra.mxu0 0.0
  %1054 = vmatpush.msra.mxu0 0.0
  %1055 = vmatpush.msra.mxu0 0.0
  %1056 = vmatpush.msra.mxu0 0.0
  %1057 = vmatpush.msra.mxu0 0.0
  %1058 = vmatpush.msra.mxu0 0.0
  %1059 = vmatpush.msra.mxu0 0.0
  %1060 = vmatpush.msra.mxu0 0.0
  %1061 = vmatpush.msra.mxu0 0.0
  %1062 = vmatpush.msra.mxu0 0.0
  %1063 = vmatpush.msra.mxu0 0.0
  %1064 = vmatpush.msra.mxu0 %v1004
  %1065 = vmatmul.f32.gmra.mxu0 %v995
  %v1066 = vpop.f32.mrf.mxu0
  %v1067 = vadd.f32 0.0, %v1066
  %1068 = vdwg.mxu0
  %1069 = vmatpush.msra.mxu0 0.0
  %1070 = vmatpush.msra.mxu0 0.0
  %1071 = vmatpush.msra.mxu0 0.0
  %1072 = vmatpush.msra.mxu0 0.0
  %1073 = vmatpush.msra.mxu0 0.0
  %1074 = vmatpush.msra.mxu0 0.0
  %1075 = vmatpush.msra.mxu0 0.0
  %1076 = vmatpush.msra.mxu0 0.0
  %1077 = vmatpush.msra.mxu0 0.0
  %1078 = vmatpush.msra.mxu0 0.0
  %1079 = vmatpush.msra.mxu0 0.0
  %1080 = vmatpush.msra.mxu0 0.0
  %1081 = vmatpush.msra.mxu0 0.0
  %1082 = vmatpush.msra.mxu0 0.0
  %1083 = vmatpush.msra.mxu0 0.0
  %1084 = vmatpush.msra.mxu0 %v1007
  %1085 = vmatmul.f32.gmra.mxu0 %v995
  %v1086 = vpop.f32.mrf.mxu0
  %v1087 = vadd.f32 0.0, %v1086
  %1088 = vdwg.mxu0
  %v1089 = vadd.f32 %v956, %v1027
  %v1090 = vadd.f32 %v957, %v1047
  %v1091 = vadd.f32 %v958, %v1067
  %v1092 = vadd.f32 %v959, %v1087
  %1093 = vst [vmem:[#allocation1] ss:$2 sm:$0xff] %v49
  %s1094 = scalar_lea.vmem [#allocation1], 16
  %1095 = vst [vmem:[%s1094] ss:$2 sm:$0xff] %v50
  %v1096 = vld.sshfl [vmem:[#allocation1] sm:$0xff pattern:$0x75316420]
  %v1097 = vld.sshfl [vmem:[#allocation1 + $0x8] sm:$0xff pattern:$0x75316420]
  %v1098 = vld.sshfl [vmem:[#allocation1 + $0x10] sm:$0xff pattern:$0x75316420]
  %v1099 = vld.sshfl [vmem:[#allocation1 + $0x18] sm:$0xff pattern:$0x75316420]
  %1104 = vrot.lane.b32.xlu0 %v1096, 111
  %v1105 = vpop.permute.xlu0 %1104
  %1106 = vrot.lane.b32.xlu0 %v1097, 111
  %v1107 = vpop.permute.xlu0 %1106
  %1108 = vrot.lane.b32.xlu0 %v1098, 111
  %v1109 = vpop.permute.xlu0 %1108
  %1110 = vrot.lane.b32.xlu0 %v1099, 111
  %v1111 = vpop.permute.xlu0 %1110
  %vm1112 = vcmp.lt.s32.totalorder %v181, 111
  %v1113 = vsel %vm1112, %v1109, %v1111
  %v1114 = vsel %vm1112, %v1107, %v1109
  %v1115 = vsel %vm1112, %v1105, %v1107
  %v1116 = vsel %vm1112, %v1111, %v1105
  %v1117 = vperm.slane %v45, 0
  %v1118 = vperm.slane %v46, 0
  %v1119 = vperm.slane %v47, 0
  %v1120 = vperm.slane %v48, 0
  %v1121 = vmul.f32 %v1115, %v1117
  %v1122 = vmul.f32 %v1114, %v1118
  %v1123 = vmul.f32 %v1113, %v1119
  %v1124 = vmul.f32 %v1116, %v1120
  %s1125 = scalar_lea.vmem %s2, 64
  %v1126 = vld [vmem:[%s1125] sm:$0xff]
  %v1128 = vsel %vm68, %v1126, 0
  %v1131 = vsel %vm72, %v1121, 0
  %v1134 = vsel %vm72, %v1122, 0
  %v1137 = vsel %vm72, %v1123, 0
  %v1140 = vsel %vm72, %v1124, 0
  %1142 = vmatpush.msra.mxu0 0.0
  %1143 = vmatpush.msra.mxu0 0.0
  %1144 = vmatpush.msra.mxu0 0.0
  %1145 = vmatpush.msra.mxu0 0.0
  %1146 = vmatpush.msra.mxu0 0.0
  %1147 = vmatpush.msra.mxu0 0.0
  %1148 = vmatpush.msra.mxu0 0.0
  %1149 = vmatpush.msra.mxu0 0.0
  %1150 = vmatpush.msra.mxu0 0.0
  %1151 = vmatpush.msra.mxu0 0.0
  %1152 = vmatpush.msra.mxu0 0.0
  %1153 = vmatpush.msra.mxu0 0.0
  %1154 = vmatpush.msra.mxu0 0.0
  %1155 = vmatpush.msra.mxu0 0.0
  %1156 = vmatpush.msra.mxu0 0.0
  %1157 = vmatpush.msra.mxu0 %v1131
  %1158 = vmatmul.f32.gmra.mxu0 %v1128
  %v1159 = vpop.f32.mrf.mxu0
  %v1160 = vadd.f32 0.0, %v1159
  %1161 = vdwg.mxu0
  %1162 = vmatpush.msra.mxu0 0.0
  %1163 = vmatpush.msra.mxu0 0.0
  %1164 = vmatpush.msra.mxu0 0.0
  %1165 = vmatpush.msra.mxu0 0.0
  %1166 = vmatpush.msra.mxu0 0.0
  %1167 = vmatpush.msra.mxu0 0.0
  %1168 = vmatpush.msra.mxu0 0.0
  %1169 = vmatpush.msra.mxu0 0.0
  %1170 = vmatpush.msra.mxu0 0.0
  %1171 = vmatpush.msra.mxu0 0.0
  %1172 = vmatpush.msra.mxu0 0.0
  %1173 = vmatpush.msra.mxu0 0.0
  %1174 = vmatpush.msra.mxu0 0.0
  %1175 = vmatpush.msra.mxu0 0.0
  %1176 = vmatpush.msra.mxu0 0.0
  %1177 = vmatpush.msra.mxu0 %v1134
  %1178 = vmatmul.f32.gmra.mxu0 %v1128
  %v1179 = vpop.f32.mrf.mxu0
  %v1180 = vadd.f32 0.0, %v1179
  %1181 = vdwg.mxu0
  %1182 = vmatpush.msra.mxu0 0.0
  %1183 = vmatpush.msra.mxu0 0.0
  %1184 = vmatpush.msra.mxu0 0.0
  %1185 = vmatpush.msra.mxu0 0.0
  %1186 = vmatpush.msra.mxu0 0.0
  %1187 = vmatpush.msra.mxu0 0.0
  %1188 = vmatpush.msra.mxu0 0.0
  %1189 = vmatpush.msra.mxu0 0.0
  %1190 = vmatpush.msra.mxu0 0.0
  %1191 = vmatpush.msra.mxu0 0.0
  %1192 = vmatpush.msra.mxu0 0.0
  %1193 = vmatpush.msra.mxu0 0.0
  %1194 = vmatpush.msra.mxu0 0.0
  %1195 = vmatpush.msra.mxu0 0.0
  %1196 = vmatpush.msra.mxu0 0.0
  %1197 = vmatpush.msra.mxu0 %v1137
  %1198 = vmatmul.f32.gmra.mxu0 %v1128
  %v1199 = vpop.f32.mrf.mxu0
  %v1200 = vadd.f32 0.0, %v1199
  %1201 = vdwg.mxu0
  %1202 = vmatpush.msra.mxu0 0.0
  %1203 = vmatpush.msra.mxu0 0.0
  %1204 = vmatpush.msra.mxu0 0.0
  %1205 = vmatpush.msra.mxu0 0.0
  %1206 = vmatpush.msra.mxu0 0.0
  %1207 = vmatpush.msra.mxu0 0.0
  %1208 = vmatpush.msra.mxu0 0.0
  %1209 = vmatpush.msra.mxu0 0.0
  %1210 = vmatpush.msra.mxu0 0.0
  %1211 = vmatpush.msra.mxu0 0.0
  %1212 = vmatpush.msra.mxu0 0.0
  %1213 = vmatpush.msra.mxu0 0.0
  %1214 = vmatpush.msra.mxu0 0.0
  %1215 = vmatpush.msra.mxu0 0.0
  %1216 = vmatpush.msra.mxu0 0.0
  %1217 = vmatpush.msra.mxu0 %v1140
  %1218 = vmatmul.f32.gmra.mxu0 %v1128
  %v1219 = vpop.f32.mrf.mxu0
  %v1220 = vadd.f32 0.0, %v1219
  %1221 = vdwg.mxu0
  %v1222 = vadd.f32 %v1089, %v1160
  %v1223 = vadd.f32 %v1090, %v1180
  %v1224 = vadd.f32 %v1091, %v1200
  %v1225 = vadd.f32 %v1092, %v1220
  %v1226 = vmax.f32 %v1222, 0.0
  %v1227 = vmax.f32 %v1223, 0.0
  %v1228 = vmax.f32 %v1224, 0.0
  %v1229 = vmax.f32 %v1225, 0.0
  %s1230 = scalar_lea.vmem %s4, 32
  %v1231 = vld [vmem:[%s1230] sm:$0xff]
  %v1232 = vld [vmem:[%s5] sm:$0xff]
  %1234 = vset.pattern.permute.xlu0 0
  %1235 = vperm.xlu0 %1234, %v1232
  %v1236 = vpop.permute.xlu0 %1235
  %vm1238 = vcmask 64512
  %v1240 = vsel %vm1238, %v1231, 0
  %1242 = vmatpush.msra.mxu0 0.0
  %1243 = vmatpush.msra.mxu0 0.0
  %1244 = vmatpush.msra.mxu0 0.0
  %1245 = vmatpush.msra.mxu0 0.0
  %1246 = vmatpush.msra.mxu0 0.0
  %1247 = vmatpush.msra.mxu0 0.0
  %1248 = vmatpush.msra.mxu0 0.0
  %1249 = vmatpush.msra.mxu0 0.0
  %1250 = vmatpush.msra.mxu0 0.0
  %1251 = vmatpush.msra.mxu0 0.0
  %1252 = vmatpush.msra.mxu0 0.0
  %1253 = vmatpush.msra.mxu0 0.0
  %1254 = vmatpush.msra.mxu0 0.0
  %1255 = vmatpush.msra.mxu0 0.0
  %1256 = vmatpush.msra.mxu0 0.0
  %1257 = vmatpush.msra.mxu0 %v1226
  %1258 = vmatmul.f32.gmra.mxu0 %v1240
  %v1259 = vpop.f32.mrf.mxu0
  %v1260 = vadd.f32 %v1236, %v1259
  %1261 = vdwg.mxu0
  %1262 = vmatpush.msra.mxu0 0.0
  %1263 = vmatpush.msra.mxu0 0.0
  %1264 = vmatpush.msra.mxu0 0.0
  %1265 = vmatpush.msra.mxu0 0.0
  %1266 = vmatpush.msra.mxu0 0.0
  %1267 = vmatpush.msra.mxu0 0.0
  %1268 = vmatpush.msra.mxu0 0.0
  %1269 = vmatpush.msra.mxu0 0.0
  %1270 = vmatpush.msra.mxu0 0.0
  %1271 = vmatpush.msra.mxu0 0.0
  %1272 = vmatpush.msra.mxu0 0.0
  %1273 = vmatpush.msra.mxu0 0.0
  %1274 = vmatpush.msra.mxu0 0.0
  %1275 = vmatpush.msra.mxu0 0.0
  %1276 = vmatpush.msra.mxu0 0.0
  %1277 = vmatpush.msra.mxu0 %v1227
  %1278 = vmatmul.f32.gmra.mxu0 %v1240
  %v1279 = vpop.f32.mrf.mxu0
  %v1280 = vadd.f32 %v1236, %v1279
  %1281 = vdwg.mxu0
  %1282 = vmatpush.msra.mxu0 0.0
  %1283 = vmatpush.msra.mxu0 0.0
  %1284 = vmatpush.msra.mxu0 0.0
  %1285 = vmatpush.msra.mxu0 0.0
  %1286 = vmatpush.msra.mxu0 0.0
  %1287 = vmatpush.msra.mxu0 0.0
  %1288 = vmatpush.msra.mxu0 0.0
  %1289 = vmatpush.msra.mxu0 0.0
  %1290 = vmatpush.msra.mxu0 0.0
  %1291 = vmatpush.msra.mxu0 0.0
  %1292 = vmatpush.msra.mxu0 0.0
  %1293 = vmatpush.msra.mxu0 0.0
  %1294 = vmatpush.msra.mxu0 0.0
  %1295 = vmatpush.msra.mxu0 0.0
  %1296 = vmatpush.msra.mxu0 0.0
  %1297 = vmatpush.msra.mxu0 %v1228
  %1298 = vmatmul.f32.gmra.mxu0 %v1240
  %v1299 = vpop.f32.mrf.mxu0
  %v1300 = vadd.f32 %v1236, %v1299
  %1301 = vdwg.mxu0
  %1302 = vmatpush.msra.mxu0 0.0
  %1303 = vmatpush.msra.mxu0 0.0
  %1304 = vmatpush.msra.mxu0 0.0
  %1305 = vmatpush.msra.mxu0 0.0
  %1306 = vmatpush.msra.mxu0 0.0
  %1307 = vmatpush.msra.mxu0 0.0
  %1308 = vmatpush.msra.mxu0 0.0
  %1309 = vmatpush.msra.mxu0 0.0
  %1310 = vmatpush.msra.mxu0 0.0
  %1311 = vmatpush.msra.mxu0 0.0
  %1312 = vmatpush.msra.mxu0 0.0
  %1313 = vmatpush.msra.mxu0 0.0
  %1314 = vmatpush.msra.mxu0 0.0
  %1315 = vmatpush.msra.mxu0 0.0
  %1316 = vmatpush.msra.mxu0 0.0
  %1317 = vmatpush.msra.mxu0 %v1229
  %1318 = vmatmul.f32.gmra.mxu0 %v1240
  %v1319 = vpop.f32.mrf.mxu0
  %v1320 = vadd.f32 %v1236, %v1319
  %1321 = vdwg.mxu0
  %1322 = vrot.lane.b32.xlu0 %v1226, 17
  %v1323 = vpop.permute.xlu0 %1322
  %1324 = vrot.lane.b32.xlu0 %v1227, 17
  %v1325 = vpop.permute.xlu0 %1324
  %1326 = vrot.lane.b32.xlu0 %v1228, 17
  %v1327 = vpop.permute.xlu0 %1326
  %1328 = vrot.lane.b32.xlu0 %v1229, 17
  %v1329 = vpop.permute.xlu0 %1328
  %v1330 = vsel %vm182, %v1327, %v1329
  %v1331 = vsel %vm182, %v1325, %v1327
  %v1332 = vsel %vm182, %v1323, %v1325
  %v1333 = vsel %vm182, %v1329, %v1323
  %v1334 = vmul.f32 %v1333, %v187
  %v1335 = vmul.f32 %v1332, %v188
  %v1336 = vmul.f32 %v1331, %v189
  %v1337 = vmul.f32 %v1330, %v190
  %v1338 = vld [vmem:[%s4] sm:$0xff]
  %v1340 = vsel %vm1238, %v1338, 0
  %1342 = vmatpush.msra.mxu0 0.0
  %1343 = vmatpush.msra.mxu0 0.0
  %1344 = vmatpush.msra.mxu0 0.0
  %1345 = vmatpush.msra.mxu0 0.0
  %1346 = vmatpush.msra.mxu0 0.0
  %1347 = vmatpush.msra.mxu0 0.0
  %1348 = vmatpush.msra.mxu0 0.0
  %1349 = vmatpush.msra.mxu0 0.0
  %1350 = vmatpush.msra.mxu0 0.0
  %1351 = vmatpush.msra.mxu0 0.0
  %1352 = vmatpush.msra.mxu0 0.0
  %1353 = vmatpush.msra.mxu0 0.0
  %1354 = vmatpush.msra.mxu0 0.0
  %1355 = vmatpush.msra.mxu0 0.0
  %1356 = vmatpush.msra.mxu0 0.0
  %1357 = vmatpush.msra.mxu0 %v1334
  %1358 = vmatmul.f32.gmra.mxu0 %v1340
  %v1359 = vpop.f32.mrf.mxu0
  %v1360 = vadd.f32 0.0, %v1359
  %1361 = vdwg.mxu0
  %1362 = vmatpush.msra.mxu0 0.0
  %1363 = vmatpush.msra.mxu0 0.0
  %1364 = vmatpush.msra.mxu0 0.0
  %1365 = vmatpush.msra.mxu0 0.0
  %1366 = vmatpush.msra.mxu0 0.0
  %1367 = vmatpush.msra.mxu0 0.0
  %1368 = vmatpush.msra.mxu0 0.0
  %1369 = vmatpush.msra.mxu0 0.0
  %1370 = vmatpush.msra.mxu0 0.0
  %1371 = vmatpush.msra.mxu0 0.0
  %1372 = vmatpush.msra.mxu0 0.0
  %1373 = vmatpush.msra.mxu0 0.0
  %1374 = vmatpush.msra.mxu0 0.0
  %1375 = vmatpush.msra.mxu0 0.0
  %1376 = vmatpush.msra.mxu0 0.0
  %1377 = vmatpush.msra.mxu0 %v1335
  %1378 = vmatmul.f32.gmra.mxu0 %v1340
  %v1379 = vpop.f32.mrf.mxu0
  %v1380 = vadd.f32 0.0, %v1379
  %1381 = vdwg.mxu0
  %1382 = vmatpush.msra.mxu0 0.0
  %1383 = vmatpush.msra.mxu0 0.0
  %1384 = vmatpush.msra.mxu0 0.0
  %1385 = vmatpush.msra.mxu0 0.0
  %1386 = vmatpush.msra.mxu0 0.0
  %1387 = vmatpush.msra.mxu0 0.0
  %1388 = vmatpush.msra.mxu0 0.0
  %1389 = vmatpush.msra.mxu0 0.0
  %1390 = vmatpush.msra.mxu0 0.0
  %1391 = vmatpush.msra.mxu0 0.0
  %1392 = vmatpush.msra.mxu0 0.0
  %1393 = vmatpush.msra.mxu0 0.0
  %1394 = vmatpush.msra.mxu0 0.0
  %1395 = vmatpush.msra.mxu0 0.0
  %1396 = vmatpush.msra.mxu0 0.0
  %1397 = vmatpush.msra.mxu0 %v1336
  %1398 = vmatmul.f32.gmra.mxu0 %v1340
  %v1399 = vpop.f32.mrf.mxu0
  %v1400 = vadd.f32 0.0, %v1399
  %1401 = vdwg.mxu0
  %1402 = vmatpush.msra.mxu0 0.0
  %1403 = vmatpush.msra.mxu0 0.0
  %1404 = vmatpush.msra.mxu0 0.0
  %1405 = vmatpush.msra.mxu0 0.0
  %1406 = vmatpush.msra.mxu0 0.0
  %1407 = vmatpush.msra.mxu0 0.0
  %1408 = vmatpush.msra.mxu0 0.0
  %1409 = vmatpush.msra.mxu0 0.0
  %1410 = vmatpush.msra.mxu0 0.0
  %1411 = vmatpush.msra.mxu0 0.0
  %1412 = vmatpush.msra.mxu0 0.0
  %1413 = vmatpush.msra.mxu0 0.0
  %1414 = vmatpush.msra.mxu0 0.0
  %1415 = vmatpush.msra.mxu0 0.0
  %1416 = vmatpush.msra.mxu0 0.0
  %1417 = vmatpush.msra.mxu0 %v1337
  %1418 = vmatmul.f32.gmra.mxu0 %v1340
  %v1419 = vpop.f32.mrf.mxu0
  %v1420 = vadd.f32 0.0, %v1419
  %1421 = vdwg.mxu0
  %v1422 = vadd.f32 %v1260, %v1360
  %v1423 = vadd.f32 %v1280, %v1380
  %v1424 = vadd.f32 %v1300, %v1400
  %v1425 = vadd.f32 %v1320, %v1420
  %1426 = vrot.lane.b32.xlu0 %v1226, 16
  %v1427 = vpop.permute.xlu0 %1426
  %1428 = vrot.lane.b32.xlu0 %v1227, 16
  %v1429 = vpop.permute.xlu0 %1428
  %1430 = vrot.lane.b32.xlu0 %v1228, 16
  %v1431 = vpop.permute.xlu0 %1430
  %1432 = vrot.lane.b32.xlu0 %v1229, 16
  %v1433 = vpop.permute.xlu0 %1432
  %v1434 = vsel %vm314, %v1431, %v1433
  %v1435 = vsel %vm314, %v1429, %v1431
  %v1436 = vsel %vm314, %v1427, %v1429
  %v1437 = vsel %vm314, %v1433, %v1427
  %v1438 = vmul.f32 %v1437, %v319
  %v1439 = vmul.f32 %v1436, %v320
  %v1440 = vmul.f32 %v1435, %v321
  %v1441 = vmul.f32 %v1434, %v322
  %s1442 = scalar_lea.vmem %s4, 8
  %v1443 = vld [vmem:[%s1442] sm:$0xff]
  %v1445 = vsel %vm1238, %v1443, 0
  %1447 = vmatpush.msra.mxu0 0.0
  %1448 = vmatpush.msra.mxu0 0.0
  %1449 = vmatpush.msra.mxu0 0.0
  %1450 = vmatpush.msra.mxu0 0.0
  %1451 = vmatpush.msra.mxu0 0.0
  %1452 = vmatpush.msra.mxu0 0.0
  %1453 = vmatpush.msra.mxu0 0.0
  %1454 = vmatpush.msra.mxu0 0.0
  %1455 = vmatpush.msra.mxu0 0.0
  %1456 = vmatpush.msra.mxu0 0.0
  %1457 = vmatpush.msra.mxu0 0.0
  %1458 = vmatpush.msra.mxu0 0.0
  %1459 = vmatpush.msra.mxu0 0.0
  %1460 = vmatpush.msra.mxu0 0.0
  %1461 = vmatpush.msra.mxu0 0.0
  %1462 = vmatpush.msra.mxu0 %v1438
  %1463 = vmatmul.f32.gmra.mxu0 %v1445
  %v1464 = vpop.f32.mrf.mxu0
  %v1465 = vadd.f32 0.0, %v1464
  %1466 = vdwg.mxu0
  %1467 = vmatpush.msra.mxu0 0.0
  %1468 = vmatpush.msra.mxu0 0.0
  %1469 = vmatpush.msra.mxu0 0.0
  %1470 = vmatpush.msra.mxu0 0.0
  %1471 = vmatpush.msra.mxu0 0.0
  %1472 = vmatpush.msra.mxu0 0.0
  %1473 = vmatpush.msra.mxu0 0.0
  %1474 = vmatpush.msra.mxu0 0.0
  %1475 = vmatpush.msra.mxu0 0.0
  %1476 = vmatpush.msra.mxu0 0.0
  %1477 = vmatpush.msra.mxu0 0.0
  %1478 = vmatpush.msra.mxu0 0.0
  %1479 = vmatpush.msra.mxu0 0.0
  %1480 = vmatpush.msra.mxu0 0.0
  %1481 = vmatpush.msra.mxu0 0.0
  %1482 = vmatpush.msra.mxu0 %v1439
  %1483 = vmatmul.f32.gmra.mxu0 %v1445
  %v1484 = vpop.f32.mrf.mxu0
  %v1485 = vadd.f32 0.0, %v1484
  %1486 = vdwg.mxu0
  %1487 = vmatpush.msra.mxu0 0.0
  %1488 = vmatpush.msra.mxu0 0.0
  %1489 = vmatpush.msra.mxu0 0.0
  %1490 = vmatpush.msra.mxu0 0.0
  %1491 = vmatpush.msra.mxu0 0.0
  %1492 = vmatpush.msra.mxu0 0.0
  %1493 = vmatpush.msra.mxu0 0.0
  %1494 = vmatpush.msra.mxu0 0.0
  %1495 = vmatpush.msra.mxu0 0.0
  %1496 = vmatpush.msra.mxu0 0.0
  %1497 = vmatpush.msra.mxu0 0.0
  %1498 = vmatpush.msra.mxu0 0.0
  %1499 = vmatpush.msra.mxu0 0.0
  %1500 = vmatpush.msra.mxu0 0.0
  %1501 = vmatpush.msra.mxu0 0.0
  %1502 = vmatpush.msra.mxu0 %v1440
  %1503 = vmatmul.f32.gmra.mxu0 %v1445
  %v1504 = vpop.f32.mrf.mxu0
  %v1505 = vadd.f32 0.0, %v1504
  %1506 = vdwg.mxu0
  %1507 = vmatpush.msra.mxu0 0.0
  %1508 = vmatpush.msra.mxu0 0.0
  %1509 = vmatpush.msra.mxu0 0.0
  %1510 = vmatpush.msra.mxu0 0.0
  %1511 = vmatpush.msra.mxu0 0.0
  %1512 = vmatpush.msra.mxu0 0.0
  %1513 = vmatpush.msra.mxu0 0.0
  %1514 = vmatpush.msra.mxu0 0.0
  %1515 = vmatpush.msra.mxu0 0.0
  %1516 = vmatpush.msra.mxu0 0.0
  %1517 = vmatpush.msra.mxu0 0.0
  %1518 = vmatpush.msra.mxu0 0.0
  %1519 = vmatpush.msra.mxu0 0.0
  %1520 = vmatpush.msra.mxu0 0.0
  %1521 = vmatpush.msra.mxu0 0.0
  %1522 = vmatpush.msra.mxu0 %v1441
  %1523 = vmatmul.f32.gmra.mxu0 %v1445
  %v1524 = vpop.f32.mrf.mxu0
  %v1525 = vadd.f32 0.0, %v1524
  %1526 = vdwg.mxu0
  %v1527 = vadd.f32 %v1422, %v1465
  %v1528 = vadd.f32 %v1423, %v1485
  %v1529 = vadd.f32 %v1424, %v1505
  %v1530 = vadd.f32 %v1425, %v1525
  %1531 = vrot.lane.b32.xlu0 %v1226, 15
  %v1532 = vpop.permute.xlu0 %1531
  %1533 = vrot.lane.b32.xlu0 %v1227, 15
  %v1534 = vpop.permute.xlu0 %1533
  %1535 = vrot.lane.b32.xlu0 %v1228, 15
  %v1536 = vpop.permute.xlu0 %1535
  %1537 = vrot.lane.b32.xlu0 %v1229, 15
  %v1538 = vpop.permute.xlu0 %1537
  %v1539 = vsel %vm447, %v1536, %v1538
  %v1540 = vsel %vm447, %v1534, %v1536
  %v1541 = vsel %vm447, %v1532, %v1534
  %v1542 = vsel %vm447, %v1538, %v1532
  %v1543 = vmul.f32 %v1542, %v452
  %v1544 = vmul.f32 %v1541, %v453
  %v1545 = vmul.f32 %v1540, %v454
  %v1546 = vmul.f32 %v1539, %v455
  %s1547 = scalar_lea.vmem %s4, 16
  %v1548 = vld [vmem:[%s1547] sm:$0xff]
  %v1550 = vsel %vm1238, %v1548, 0
  %1552 = vmatpush.msra.mxu0 0.0
  %1553 = vmatpush.msra.mxu0 0.0
  %1554 = vmatpush.msra.mxu0 0.0
  %1555 = vmatpush.msra.mxu0 0.0
  %1556 = vmatpush.msra.mxu0 0.0
  %1557 = vmatpush.msra.mxu0 0.0
  %1558 = vmatpush.msra.mxu0 0.0
  %1559 = vmatpush.msra.mxu0 0.0
  %1560 = vmatpush.msra.mxu0 0.0
  %1561 = vmatpush.msra.mxu0 0.0
  %1562 = vmatpush.msra.mxu0 0.0
  %1563 = vmatpush.msra.mxu0 0.0
  %1564 = vmatpush.msra.mxu0 0.0
  %1565 = vmatpush.msra.mxu0 0.0
  %1566 = vmatpush.msra.mxu0 0.0
  %1567 = vmatpush.msra.mxu0 %v1543
  %1568 = vmatmul.f32.gmra.mxu0 %v1550
  %v1569 = vpop.f32.mrf.mxu0
  %v1570 = vadd.f32 0.0, %v1569
  %1571 = vdwg.mxu0
  %1572 = vmatpush.msra.mxu0 0.0
  %1573 = vmatpush.msra.mxu0 0.0
  %1574 = vmatpush.msra.mxu0 0.0
  %1575 = vmatpush.msra.mxu0 0.0
  %1576 = vmatpush.msra.mxu0 0.0
  %1577 = vmatpush.msra.mxu0 0.0
  %1578 = vmatpush.msra.mxu0 0.0
  %1579 = vmatpush.msra.mxu0 0.0
  %1580 = vmatpush.msra.mxu0 0.0
  %1581 = vmatpush.msra.mxu0 0.0
  %1582 = vmatpush.msra.mxu0 0.0
  %1583 = vmatpush.msra.mxu0 0.0
  %1584 = vmatpush.msra.mxu0 0.0
  %1585 = vmatpush.msra.mxu0 0.0
  %1586 = vmatpush.msra.mxu0 0.0
  %1587 = vmatpush.msra.mxu0 %v1544
  %1588 = vmatmul.f32.gmra.mxu0 %v1550
  %v1589 = vpop.f32.mrf.mxu0
  %v1590 = vadd.f32 0.0, %v1589
  %1591 = vdwg.mxu0
  %1592 = vmatpush.msra.mxu0 0.0
  %1593 = vmatpush.msra.mxu0 0.0
  %1594 = vmatpush.msra.mxu0 0.0
  %1595 = vmatpush.msra.mxu0 0.0
  %1596 = vmatpush.msra.mxu0 0.0
  %1597 = vmatpush.msra.mxu0 0.0
  %1598 = vmatpush.msra.mxu0 0.0
  %1599 = vmatpush.msra.mxu0 0.0
  %1600 = vmatpush.msra.mxu0 0.0
  %1601 = vmatpush.msra.mxu0 0.0
  %1602 = vmatpush.msra.mxu0 0.0
  %1603 = vmatpush.msra.mxu0 0.0
  %1604 = vmatpush.msra.mxu0 0.0
  %1605 = vmatpush.msra.mxu0 0.0
  %1606 = vmatpush.msra.mxu0 0.0
  %1607 = vmatpush.msra.mxu0 %v1545
  %1608 = vmatmul.f32.gmra.mxu0 %v1550
  %v1609 = vpop.f32.mrf.mxu0
  %v1610 = vadd.f32 0.0, %v1609
  %1611 = vdwg.mxu0
  %1612 = vmatpush.msra.mxu0 0.0
  %1613 = vmatpush.msra.mxu0 0.0
  %1614 = vmatpush.msra.mxu0 0.0
  %1615 = vmatpush.msra.mxu0 0.0
  %1616 = vmatpush.msra.mxu0 0.0
  %1617 = vmatpush.msra.mxu0 0.0
  %1618 = vmatpush.msra.mxu0 0.0
  %1619 = vmatpush.msra.mxu0 0.0
  %1620 = vmatpush.msra.mxu0 0.0
  %1621 = vmatpush.msra.mxu0 0.0
  %1622 = vmatpush.msra.mxu0 0.0
  %1623 = vmatpush.msra.mxu0 0.0
  %1624 = vmatpush.msra.mxu0 0.0
  %1625 = vmatpush.msra.mxu0 0.0
  %1626 = vmatpush.msra.mxu0 0.0
  %1627 = vmatpush.msra.mxu0 %v1546
  %1628 = vmatmul.f32.gmra.mxu0 %v1550
  %v1629 = vpop.f32.mrf.mxu0
  %v1630 = vadd.f32 0.0, %v1629
  %1631 = vdwg.mxu0
  %v1632 = vadd.f32 %v1527, %v1570
  %v1633 = vadd.f32 %v1528, %v1590
  %v1634 = vadd.f32 %v1529, %v1610
  %v1635 = vadd.f32 %v1530, %v1630
  %1636 = vrot.lane.b32.xlu0 %v1226, 1
  %v1637 = vpop.permute.xlu0 %1636
  %1638 = vrot.lane.b32.xlu0 %v1227, 1
  %v1639 = vpop.permute.xlu0 %1638
  %1640 = vrot.lane.b32.xlu0 %v1228, 1
  %v1641 = vpop.permute.xlu0 %1640
  %1642 = vrot.lane.b32.xlu0 %v1229, 1
  %v1643 = vpop.permute.xlu0 %1642
  %v1644 = vsel %vm580, %v1641, %v1643
  %v1645 = vsel %vm580, %v1639, %v1641
  %v1646 = vsel %vm580, %v1637, %v1639
  %v1647 = vsel %vm580, %v1643, %v1637
  %v1648 = vmul.f32 %v1647, %v585
  %v1649 = vmul.f32 %v1646, %v586
  %v1650 = vmul.f32 %v1645, %v587
  %v1651 = vmul.f32 %v1644, %v588
  %s1652 = scalar_lea.vmem %s4, 24
  %v1653 = vld [vmem:[%s1652] sm:$0xff]
  %v1655 = vsel %vm1238, %v1653, 0
  %1657 = vmatpush.msra.mxu0 0.0
  %1658 = vmatpush.msra.mxu0 0.0
  %1659 = vmatpush.msra.mxu0 0.0
  %1660 = vmatpush.msra.mxu0 0.0
  %1661 = vmatpush.msra.mxu0 0.0
  %1662 = vmatpush.msra.mxu0 0.0
  %1663 = vmatpush.msra.mxu0 0.0
  %1664 = vmatpush.msra.mxu0 0.0
  %1665 = vmatpush.msra.mxu0 0.0
  %1666 = vmatpush.msra.mxu0 0.0
  %1667 = vmatpush.msra.mxu0 0.0
  %1668 = vmatpush.msra.mxu0 0.0
  %1669 = vmatpush.msra.mxu0 0.0
  %1670 = vmatpush.msra.mxu0 0.0
  %1671 = vmatpush.msra.mxu0 0.0
  %1672 = vmatpush.msra.mxu0 %v1648
  %1673 = vmatmul.f32.gmra.mxu0 %v1655
  %v1674 = vpop.f32.mrf.mxu0
  %v1675 = vadd.f32 0.0, %v1674
  %1676 = vdwg.mxu0
  %1677 = vmatpush.msra.mxu0 0.0
  %1678 = vmatpush.msra.mxu0 0.0
  %1679 = vmatpush.msra.mxu0 0.0
  %1680 = vmatpush.msra.mxu0 0.0
  %1681 = vmatpush.msra.mxu0 0.0
  %1682 = vmatpush.msra.mxu0 0.0
  %1683 = vmatpush.msra.mxu0 0.0
  %1684 = vmatpush.msra.mxu0 0.0
  %1685 = vmatpush.msra.mxu0 0.0
  %1686 = vmatpush.msra.mxu0 0.0
  %1687 = vmatpush.msra.mxu0 0.0
  %1688 = vmatpush.msra.mxu0 0.0
  %1689 = vmatpush.msra.mxu0 0.0
  %1690 = vmatpush.msra.mxu0 0.0
  %1691 = vmatpush.msra.mxu0 0.0
  %1692 = vmatpush.msra.mxu0 %v1649
  %1693 = vmatmul.f32.gmra.mxu0 %v1655
  %v1694 = vpop.f32.mrf.mxu0
  %v1695 = vadd.f32 0.0, %v1694
  %1696 = vdwg.mxu0
  %1697 = vmatpush.msra.mxu0 0.0
  %1698 = vmatpush.msra.mxu0 0.0
  %1699 = vmatpush.msra.mxu0 0.0
  %1700 = vmatpush.msra.mxu0 0.0
  %1701 = vmatpush.msra.mxu0 0.0
  %1702 = vmatpush.msra.mxu0 0.0
  %1703 = vmatpush.msra.mxu0 0.0
  %1704 = vmatpush.msra.mxu0 0.0
  %1705 = vmatpush.msra.mxu0 0.0
  %1706 = vmatpush.msra.mxu0 0.0
  %1707 = vmatpush.msra.mxu0 0.0
  %1708 = vmatpush.msra.mxu0 0.0
  %1709 = vmatpush.msra.mxu0 0.0
  %1710 = vmatpush.msra.mxu0 0.0
  %1711 = vmatpush.msra.mxu0 0.0
  %1712 = vmatpush.msra.mxu0 %v1650
  %1713 = vmatmul.f32.gmra.mxu0 %v1655
  %v1714 = vpop.f32.mrf.mxu0
  %v1715 = vadd.f32 0.0, %v1714
  %1716 = vdwg.mxu0
  %1717 = vmatpush.msra.mxu0 0.0
  %1718 = vmatpush.msra.mxu0 0.0
  %1719 = vmatpush.msra.mxu0 0.0
  %1720 = vmatpush.msra.mxu0 0.0
  %1721 = vmatpush.msra.mxu0 0.0
  %1722 = vmatpush.msra.mxu0 0.0
  %1723 = vmatpush.msra.mxu0 0.0
  %1724 = vmatpush.msra.mxu0 0.0
  %1725 = vmatpush.msra.mxu0 0.0
  %1726 = vmatpush.msra.mxu0 0.0
  %1727 = vmatpush.msra.mxu0 0.0
  %1728 = vmatpush.msra.mxu0 0.0
  %1729 = vmatpush.msra.mxu0 0.0
  %1730 = vmatpush.msra.mxu0 0.0
  %1731 = vmatpush.msra.mxu0 0.0
  %1732 = vmatpush.msra.mxu0 %v1651
  %1733 = vmatmul.f32.gmra.mxu0 %v1655
  %v1734 = vpop.f32.mrf.mxu0
  %v1735 = vadd.f32 0.0, %v1734
  %1736 = vdwg.mxu0
  %v1737 = vadd.f32 %v1632, %v1675
  %v1738 = vadd.f32 %v1633, %v1695
  %v1739 = vadd.f32 %v1634, %v1715
  %v1740 = vadd.f32 %v1635, %v1735
  %1741 = vrot.lane.b32.xlu0 %v1226, 127
  %v1742 = vpop.permute.xlu0 %1741
  %1743 = vrot.lane.b32.xlu0 %v1227, 127
  %v1744 = vpop.permute.xlu0 %1743
  %1745 = vrot.lane.b32.xlu0 %v1228, 127
  %v1746 = vpop.permute.xlu0 %1745
  %1747 = vrot.lane.b32.xlu0 %v1229, 127
  %v1748 = vpop.permute.xlu0 %1747
  %v1749 = vsel %vm713, %v1746, %v1748
  %v1750 = vsel %vm713, %v1744, %v1746
  %v1751 = vsel %vm713, %v1742, %v1744
  %v1752 = vsel %vm713, %v1748, %v1742
  %v1753 = vmul.f32 %v1751, %v718
  %v1754 = vmul.f32 %v1750, %v719
  %v1755 = vmul.f32 %v1749, %v720
  %v1756 = vmul.f32 %v1752, %v721
  %s1757 = scalar_lea.vmem %s4, 40
  %v1758 = vld [vmem:[%s1757] sm:$0xff]
  %v1760 = vsel %vm1238, %v1758, 0
  %1762 = vmatpush.msra.mxu0 0.0
  %1763 = vmatpush.msra.mxu0 0.0
  %1764 = vmatpush.msra.mxu0 0.0
  %1765 = vmatpush.msra.mxu0 0.0
  %1766 = vmatpush.msra.mxu0 0.0
  %1767 = vmatpush.msra.mxu0 0.0
  %1768 = vmatpush.msra.mxu0 0.0
  %1769 = vmatpush.msra.mxu0 0.0
  %1770 = vmatpush.msra.mxu0 0.0
  %1771 = vmatpush.msra.mxu0 0.0
  %1772 = vmatpush.msra.mxu0 0.0
  %1773 = vmatpush.msra.mxu0 0.0
  %1774 = vmatpush.msra.mxu0 0.0
  %1775 = vmatpush.msra.mxu0 0.0
  %1776 = vmatpush.msra.mxu0 0.0
  %1777 = vmatpush.msra.mxu0 %v1753
  %1778 = vmatmul.f32.gmra.mxu0 %v1760
  %v1779 = vpop.f32.mrf.mxu0
  %v1780 = vadd.f32 0.0, %v1779
  %1781 = vdwg.mxu0
  %1782 = vmatpush.msra.mxu0 0.0
  %1783 = vmatpush.msra.mxu0 0.0
  %1784 = vmatpush.msra.mxu0 0.0
  %1785 = vmatpush.msra.mxu0 0.0
  %1786 = vmatpush.msra.mxu0 0.0
  %1787 = vmatpush.msra.mxu0 0.0
  %1788 = vmatpush.msra.mxu0 0.0
  %1789 = vmatpush.msra.mxu0 0.0
  %1790 = vmatpush.msra.mxu0 0.0
  %1791 = vmatpush.msra.mxu0 0.0
  %1792 = vmatpush.msra.mxu0 0.0
  %1793 = vmatpush.msra.mxu0 0.0
  %1794 = vmatpush.msra.mxu0 0.0
  %1795 = vmatpush.msra.mxu0 0.0
  %1796 = vmatpush.msra.mxu0 0.0
  %1797 = vmatpush.msra.mxu0 %v1754
  %1798 = vmatmul.f32.gmra.mxu0 %v1760
  %v1799 = vpop.f32.mrf.mxu0
  %v1800 = vadd.f32 0.0, %v1799
  %1801 = vdwg.mxu0
  %1802 = vmatpush.msra.mxu0 0.0
  %1803 = vmatpush.msra.mxu0 0.0
  %1804 = vmatpush.msra.mxu0 0.0
  %1805 = vmatpush.msra.mxu0 0.0
  %1806 = vmatpush.msra.mxu0 0.0
  %1807 = vmatpush.msra.mxu0 0.0
  %1808 = vmatpush.msra.mxu0 0.0
  %1809 = vmatpush.msra.mxu0 0.0
  %1810 = vmatpush.msra.mxu0 0.0
  %1811 = vmatpush.msra.mxu0 0.0
  %1812 = vmatpush.msra.mxu0 0.0
  %1813 = vmatpush.msra.mxu0 0.0
  %1814 = vmatpush.msra.mxu0 0.0
  %1815 = vmatpush.msra.mxu0 0.0
  %1816 = vmatpush.msra.mxu0 0.0
  %1817 = vmatpush.msra.mxu0 %v1755
  %1818 = vmatmul.f32.gmra.mxu0 %v1760
  %v1819 = vpop.f32.mrf.mxu0
  %v1820 = vadd.f32 0.0, %v1819
  %1821 = vdwg.mxu0
  %1822 = vmatpush.msra.mxu0 0.0
  %1823 = vmatpush.msra.mxu0 0.0
  %1824 = vmatpush.msra.mxu0 0.0
  %1825 = vmatpush.msra.mxu0 0.0
  %1826 = vmatpush.msra.mxu0 0.0
  %1827 = vmatpush.msra.mxu0 0.0
  %1828 = vmatpush.msra.mxu0 0.0
  %1829 = vmatpush.msra.mxu0 0.0
  %1830 = vmatpush.msra.mxu0 0.0
  %1831 = vmatpush.msra.mxu0 0.0
  %1832 = vmatpush.msra.mxu0 0.0
  %1833 = vmatpush.msra.mxu0 0.0
  %1834 = vmatpush.msra.mxu0 0.0
  %1835 = vmatpush.msra.mxu0 0.0
  %1836 = vmatpush.msra.mxu0 0.0
  %1837 = vmatpush.msra.mxu0 %v1756
  %1838 = vmatmul.f32.gmra.mxu0 %v1760
  %v1839 = vpop.f32.mrf.mxu0
  %v1840 = vadd.f32 0.0, %v1839
  %1841 = vdwg.mxu0
  %v1842 = vadd.f32 %v1737, %v1780
  %v1843 = vadd.f32 %v1738, %v1800
  %v1844 = vadd.f32 %v1739, %v1820
  %v1845 = vadd.f32 %v1740, %v1840
  %1846 = vrot.lane.b32.xlu0 %v1226, 113
  %v1847 = vpop.permute.xlu0 %1846
  %1848 = vrot.lane.b32.xlu0 %v1227, 113
  %v1849 = vpop.permute.xlu0 %1848
  %1850 = vrot.lane.b32.xlu0 %v1228, 113
  %v1851 = vpop.permute.xlu0 %1850
  %1852 = vrot.lane.b32.xlu0 %v1229, 113
  %v1853 = vpop.permute.xlu0 %1852
  %v1854 = vsel %vm846, %v1851, %v1853
  %v1855 = vsel %vm846, %v1849, %v1851
  %v1856 = vsel %vm846, %v1847, %v1849
  %v1857 = vsel %vm846, %v1853, %v1847
  %v1858 = vmul.f32 %v1856, %v851
  %v1859 = vmul.f32 %v1855, %v852
  %v1860 = vmul.f32 %v1854, %v853
  %v1861 = vmul.f32 %v1857, %v854
  %s1862 = scalar_lea.vmem %s4, 48
  %v1863 = vld [vmem:[%s1862] sm:$0xff]
  %v1865 = vsel %vm1238, %v1863, 0
  %1867 = vmatpush.msra.mxu0 0.0
  %1868 = vmatpush.msra.mxu0 0.0
  %1869 = vmatpush.msra.mxu0 0.0
  %1870 = vmatpush.msra.mxu0 0.0
  %1871 = vmatpush.msra.mxu0 0.0
  %1872 = vmatpush.msra.mxu0 0.0
  %1873 = vmatpush.msra.mxu0 0.0
  %1874 = vmatpush.msra.mxu0 0.0
  %1875 = vmatpush.msra.mxu0 0.0
  %1876 = vmatpush.msra.mxu0 0.0
  %1877 = vmatpush.msra.mxu0 0.0
  %1878 = vmatpush.msra.mxu0 0.0
  %1879 = vmatpush.msra.mxu0 0.0
  %1880 = vmatpush.msra.mxu0 0.0
  %1881 = vmatpush.msra.mxu0 0.0
  %1882 = vmatpush.msra.mxu0 %v1858
  %1883 = vmatmul.f32.gmra.mxu0 %v1865
  %v1884 = vpop.f32.mrf.mxu0
  %v1885 = vadd.f32 0.0, %v1884
  %1886 = vdwg.mxu0
  %1887 = vmatpush.msra.mxu0 0.0
  %1888 = vmatpush.msra.mxu0 0.0
  %1889 = vmatpush.msra.mxu0 0.0
  %1890 = vmatpush.msra.mxu0 0.0
  %1891 = vmatpush.msra.mxu0 0.0
  %1892 = vmatpush.msra.mxu0 0.0
  %1893 = vmatpush.msra.mxu0 0.0
  %1894 = vmatpush.msra.mxu0 0.0
  %1895 = vmatpush.msra.mxu0 0.0
  %1896 = vmatpush.msra.mxu0 0.0
  %1897 = vmatpush.msra.mxu0 0.0
  %1898 = vmatpush.msra.mxu0 0.0
  %1899 = vmatpush.msra.mxu0 0.0
  %1900 = vmatpush.msra.mxu0 0.0
  %1901 = vmatpush.msra.mxu0 0.0
  %1902 = vmatpush.msra.mxu0 %v1859
  %1903 = vmatmul.f32.gmra.mxu0 %v1865
  %v1904 = vpop.f32.mrf.mxu0
  %v1905 = vadd.f32 0.0, %v1904
  %1906 = vdwg.mxu0
  %1907 = vmatpush.msra.mxu0 0.0
  %1908 = vmatpush.msra.mxu0 0.0
  %1909 = vmatpush.msra.mxu0 0.0
  %1910 = vmatpush.msra.mxu0 0.0
  %1911 = vmatpush.msra.mxu0 0.0
  %1912 = vmatpush.msra.mxu0 0.0
  %1913 = vmatpush.msra.mxu0 0.0
  %1914 = vmatpush.msra.mxu0 0.0
  %1915 = vmatpush.msra.mxu0 0.0
  %1916 = vmatpush.msra.mxu0 0.0
  %1917 = vmatpush.msra.mxu0 0.0
  %1918 = vmatpush.msra.mxu0 0.0
  %1919 = vmatpush.msra.mxu0 0.0
  %1920 = vmatpush.msra.mxu0 0.0
  %1921 = vmatpush.msra.mxu0 0.0
  %1922 = vmatpush.msra.mxu0 %v1860
  %1923 = vmatmul.f32.gmra.mxu0 %v1865
  %v1924 = vpop.f32.mrf.mxu0
  %v1925 = vadd.f32 0.0, %v1924
  %1926 = vdwg.mxu0
  %1927 = vmatpush.msra.mxu0 0.0
  %1928 = vmatpush.msra.mxu0 0.0
  %1929 = vmatpush.msra.mxu0 0.0
  %1930 = vmatpush.msra.mxu0 0.0
  %1931 = vmatpush.msra.mxu0 0.0
  %1932 = vmatpush.msra.mxu0 0.0
  %1933 = vmatpush.msra.mxu0 0.0
  %1934 = vmatpush.msra.mxu0 0.0
  %1935 = vmatpush.msra.mxu0 0.0
  %1936 = vmatpush.msra.mxu0 0.0
  %1937 = vmatpush.msra.mxu0 0.0
  %1938 = vmatpush.msra.mxu0 0.0
  %1939 = vmatpush.msra.mxu0 0.0
  %1940 = vmatpush.msra.mxu0 0.0
  %1941 = vmatpush.msra.mxu0 0.0
  %1942 = vmatpush.msra.mxu0 %v1861
  %1943 = vmatmul.f32.gmra.mxu0 %v1865
  %v1944 = vpop.f32.mrf.mxu0
  %v1945 = vadd.f32 0.0, %v1944
  %1946 = vdwg.mxu0
  %v1947 = vadd.f32 %v1842, %v1885
  %v1948 = vadd.f32 %v1843, %v1905
  %v1949 = vadd.f32 %v1844, %v1925
  %v1950 = vadd.f32 %v1845, %v1945
  %1951 = vrot.lane.b32.xlu0 %v1226, 112
  %v1952 = vpop.permute.xlu0 %1951
  %1953 = vrot.lane.b32.xlu0 %v1227, 112
  %v1954 = vpop.permute.xlu0 %1953
  %1955 = vrot.lane.b32.xlu0 %v1228, 112
  %v1956 = vpop.permute.xlu0 %1955
  %1957 = vrot.lane.b32.xlu0 %v1229, 112
  %v1958 = vpop.permute.xlu0 %1957
  %v1959 = vsel %vm979, %v1956, %v1958
  %v1960 = vsel %vm979, %v1954, %v1956
  %v1961 = vsel %vm979, %v1952, %v1954
  %v1962 = vsel %vm979, %v1958, %v1952
  %v1963 = vmul.f32 %v1961, %v984
  %v1964 = vmul.f32 %v1960, %v985
  %v1965 = vmul.f32 %v1959, %v986
  %v1966 = vmul.f32 %v1962, %v987
  %s1967 = scalar_lea.vmem %s4, 56
  %v1968 = vld [vmem:[%s1967] sm:$0xff]
  %v1970 = vsel %vm1238, %v1968, 0
  %1972 = vmatpush.msra.mxu0 0.0
  %1973 = vmatpush.msra.mxu0 0.0
  %1974 = vmatpush.msra.mxu0 0.0
  %1975 = vmatpush.msra.mxu0 0.0
  %1976 = vmatpush.msra.mxu0 0.0
  %1977 = vmatpush.msra.mxu0 0.0
  %1978 = vmatpush.msra.mxu0 0.0
  %1979 = vmatpush.msra.mxu0 0.0
  %1980 = vmatpush.msra.mxu0 0.0
  %1981 = vmatpush.msra.mxu0 0.0
  %1982 = vmatpush.msra.mxu0 0.0
  %1983 = vmatpush.msra.mxu0 0.0
  %1984 = vmatpush.msra.mxu0 0.0
  %1985 = vmatpush.msra.mxu0 0.0
  %1986 = vmatpush.msra.mxu0 0.0
  %1987 = vmatpush.msra.mxu0 %v1963
  %1988 = vmatmul.f32.gmra.mxu0 %v1970
  %v1989 = vpop.f32.mrf.mxu0
  %v1990 = vadd.f32 0.0, %v1989
  %1991 = vdwg.mxu0
  %1992 = vmatpush.msra.mxu0 0.0
  %1993 = vmatpush.msra.mxu0 0.0
  %1994 = vmatpush.msra.mxu0 0.0
  %1995 = vmatpush.msra.mxu0 0.0
  %1996 = vmatpush.msra.mxu0 0.0
  %1997 = vmatpush.msra.mxu0 0.0
  %1998 = vmatpush.msra.mxu0 0.0
  %1999 = vmatpush.msra.mxu0 0.0
  %2000 = vmatpush.msra.mxu0 0.0
  %2001 = vmatpush.msra.mxu0 0.0
  %2002 = vmatpush.msra.mxu0 0.0
  %2003 = vmatpush.msra.mxu0 0.0
  %2004 = vmatpush.msra.mxu0 0.0
  %2005 = vmatpush.msra.mxu0 0.0
  %2006 = vmatpush.msra.mxu0 0.0
  %2007 = vmatpush.msra.mxu0 %v1964
  %2008 = vmatmul.f32.gmra.mxu0 %v1970
  %v2009 = vpop.f32.mrf.mxu0
  %v2010 = vadd.f32 0.0, %v2009
  %2011 = vdwg.mxu0
  %2012 = vmatpush.msra.mxu0 0.0
  %2013 = vmatpush.msra.mxu0 0.0
  %2014 = vmatpush.msra.mxu0 0.0
  %2015 = vmatpush.msra.mxu0 0.0
  %2016 = vmatpush.msra.mxu0 0.0
  %2017 = vmatpush.msra.mxu0 0.0
  %2018 = vmatpush.msra.mxu0 0.0
  %2019 = vmatpush.msra.mxu0 0.0
  %2020 = vmatpush.msra.mxu0 0.0
  %2021 = vmatpush.msra.mxu0 0.0
  %2022 = vmatpush.msra.mxu0 0.0
  %2023 = vmatpush.msra.mxu0 0.0
  %2024 = vmatpush.msra.mxu0 0.0
  %2025 = vmatpush.msra.mxu0 0.0
  %2026 = vmatpush.msra.mxu0 0.0
  %2027 = vmatpush.msra.mxu0 %v1965
  %2028 = vmatmul.f32.gmra.mxu0 %v1970
  %v2029 = vpop.f32.mrf.mxu0
  %v2030 = vadd.f32 0.0, %v2029
  %2031 = vdwg.mxu0
  %2032 = vmatpush.msra.mxu0 0.0
  %2033 = vmatpush.msra.mxu0 0.0
  %2034 = vmatpush.msra.mxu0 0.0
  %2035 = vmatpush.msra.mxu0 0.0
  %2036 = vmatpush.msra.mxu0 0.0
  %2037 = vmatpush.msra.mxu0 0.0
  %2038 = vmatpush.msra.mxu0 0.0
  %2039 = vmatpush.msra.mxu0 0.0
  %2040 = vmatpush.msra.mxu0 0.0
  %2041 = vmatpush.msra.mxu0 0.0
  %2042 = vmatpush.msra.mxu0 0.0
  %2043 = vmatpush.msra.mxu0 0.0
  %2044 = vmatpush.msra.mxu0 0.0
  %2045 = vmatpush.msra.mxu0 0.0
  %2046 = vmatpush.msra.mxu0 0.0
  %2047 = vmatpush.msra.mxu0 %v1966
  %2048 = vmatmul.f32.gmra.mxu0 %v1970
  %v2049 = vpop.f32.mrf.mxu0
  %v2050 = vadd.f32 0.0, %v2049
  %2051 = vdwg.mxu0
  %v2052 = vadd.f32 %v1947, %v1990
  %v2053 = vadd.f32 %v1948, %v2010
  %v2054 = vadd.f32 %v1949, %v2030
  %v2055 = vadd.f32 %v1950, %v2050
  %2056 = vrot.lane.b32.xlu0 %v1226, 111
  %v2057 = vpop.permute.xlu0 %2056
  %2058 = vrot.lane.b32.xlu0 %v1227, 111
  %v2059 = vpop.permute.xlu0 %2058
  %2060 = vrot.lane.b32.xlu0 %v1228, 111
  %v2061 = vpop.permute.xlu0 %2060
  %2062 = vrot.lane.b32.xlu0 %v1229, 111
  %v2063 = vpop.permute.xlu0 %2062
  %v2064 = vsel %vm1112, %v2061, %v2063
  %v2065 = vsel %vm1112, %v2059, %v2061
  %v2066 = vsel %vm1112, %v2057, %v2059
  %v2067 = vsel %vm1112, %v2063, %v2057
  %v2068 = vmul.f32 %v2066, %v1117
  %v2069 = vmul.f32 %v2065, %v1118
  %v2070 = vmul.f32 %v2064, %v1119
  %v2071 = vmul.f32 %v2067, %v1120
  %s2072 = scalar_lea.vmem %s4, 64
  %v2073 = vld [vmem:[%s2072] sm:$0xff]
  %v2075 = vsel %vm1238, %v2073, 0
  %2077 = vmatpush.msra.mxu0 0.0
  %2078 = vmatpush.msra.mxu0 0.0
  %2079 = vmatpush.msra.mxu0 0.0
  %2080 = vmatpush.msra.mxu0 0.0
  %2081 = vmatpush.msra.mxu0 0.0
  %2082 = vmatpush.msra.mxu0 0.0
  %2083 = vmatpush.msra.mxu0 0.0
  %2084 = vmatpush.msra.mxu0 0.0
  %2085 = vmatpush.msra.mxu0 0.0
  %2086 = vmatpush.msra.mxu0 0.0
  %2087 = vmatpush.msra.mxu0 0.0
  %2088 = vmatpush.msra.mxu0 0.0
  %2089 = vmatpush.msra.mxu0 0.0
  %2090 = vmatpush.msra.mxu0 0.0
  %2091 = vmatpush.msra.mxu0 0.0
  %2092 = vmatpush.msra.mxu0 %v2068
  %2093 = vmatmul.f32.gmra.mxu0 %v2075
  %v2094 = vpop.f32.mrf.mxu0
  %v2095 = vadd.f32 0.0, %v2094
  %2096 = vdwg.mxu0
  %2097 = vmatpush.msra.mxu0 0.0
  %2098 = vmatpush.msra.mxu0 0.0
  %2099 = vmatpush.msra.mxu0 0.0
  %2100 = vmatpush.msra.mxu0 0.0
  %2101 = vmatpush.msra.mxu0 0.0
  %2102 = vmatpush.msra.mxu0 0.0
  %2103 = vmatpush.msra.mxu0 0.0
  %2104 = vmatpush.msra.mxu0 0.0
  %2105 = vmatpush.msra.mxu0 0.0
  %2106 = vmatpush.msra.mxu0 0.0
  %2107 = vmatpush.msra.mxu0 0.0
  %2108 = vmatpush.msra.mxu0 0.0
  %2109 = vmatpush.msra.mxu0 0.0
  %2110 = vmatpush.msra.mxu0 0.0
  %2111 = vmatpush.msra.mxu0 0.0
  %2112 = vmatpush.msra.mxu0 %v2069
  %2113 = vmatmul.f32.gmra.mxu0 %v2075
  %v2114 = vpop.f32.mrf.mxu0
  %v2115 = vadd.f32 0.0, %v2114
  %2116 = vdwg.mxu0
  %2117 = vmatpush.msra.mxu0 0.0
  %2118 = vmatpush.msra.mxu0 0.0
  %2119 = vmatpush.msra.mxu0 0.0
  %2120 = vmatpush.msra.mxu0 0.0
  %2121 = vmatpush.msra.mxu0 0.0
  %2122 = vmatpush.msra.mxu0 0.0
  %2123 = vmatpush.msra.mxu0 0.0
  %2124 = vmatpush.msra.mxu0 0.0
  %2125 = vmatpush.msra.mxu0 0.0
  %2126 = vmatpush.msra.mxu0 0.0
  %2127 = vmatpush.msra.mxu0 0.0
  %2128 = vmatpush.msra.mxu0 0.0
  %2129 = vmatpush.msra.mxu0 0.0
  %2130 = vmatpush.msra.mxu0 0.0
  %2131 = vmatpush.msra.mxu0 0.0
  %2132 = vmatpush.msra.mxu0 %v2070
  %2133 = vmatmul.f32.gmra.mxu0 %v2075
  %v2134 = vpop.f32.mrf.mxu0
  %v2135 = vadd.f32 0.0, %v2134
  %2136 = vdwg.mxu0
  %2137 = vmatpush.msra.mxu0 0.0
  %2138 = vmatpush.msra.mxu0 0.0
  %2139 = vmatpush.msra.mxu0 0.0
  %2140 = vmatpush.msra.mxu0 0.0
  %2141 = vmatpush.msra.mxu0 0.0
  %2142 = vmatpush.msra.mxu0 0.0
  %2143 = vmatpush.msra.mxu0 0.0
  %2144 = vmatpush.msra.mxu0 0.0
  %2145 = vmatpush.msra.mxu0 0.0
  %2146 = vmatpush.msra.mxu0 0.0
  %2147 = vmatpush.msra.mxu0 0.0
  %2148 = vmatpush.msra.mxu0 0.0
  %2149 = vmatpush.msra.mxu0 0.0
  %2150 = vmatpush.msra.mxu0 0.0
  %2151 = vmatpush.msra.mxu0 0.0
  %2152 = vmatpush.msra.mxu0 %v2071
  %2153 = vmatmul.f32.gmra.mxu0 %v2075
  %v2154 = vpop.f32.mrf.mxu0
  %v2155 = vadd.f32 0.0, %v2154
  %2156 = vdwg.mxu0
  %v2157 = vadd.f32 %v2052, %v2095
  %v2158 = vadd.f32 %v2053, %v2115
  %v2159 = vadd.f32 %v2054, %v2135
  %v2160 = vadd.f32 %v2055, %v2155
  %v2161 = vmax.f32 %v2157, 0.0
  %v2162 = vmax.f32 %v2158, 0.0
  %v2163 = vmax.f32 %v2159, 0.0
  %v2164 = vmax.f32 %v2160, 0.0
  %v2165 = vadd.f32 %v2161, %v1226
  %v2166 = vadd.f32 %v2162, %v1227
  %v2167 = vadd.f32 %v2163, %v1228
  %v2168 = vadd.f32 %v2164, %v1229
  %s2169 = scalar_lea.vmem %s6, 32
  %v2170 = vld [vmem:[%s2169] sm:$0xff]
  %v2171 = vld [vmem:[%s7] sm:$0xff]
  %2173 = vset.pattern.permute.xlu0 0
  %2174 = vperm.xlu0 %2173, %v2171
  %v2175 = vpop.permute.xlu0 %2174
  %v2178 = vsel %vm1238, %v2170, 0
  %2180 = vmatpush.msra.mxu0 0.0
  %2181 = vmatpush.msra.mxu0 0.0
  %2182 = vmatpush.msra.mxu0 0.0
  %2183 = vmatpush.msra.mxu0 0.0
  %2184 = vmatpush.msra.mxu0 0.0
  %2185 = vmatpush.msra.mxu0 0.0
  %2186 = vmatpush.msra.mxu0 0.0
  %2187 = vmatpush.msra.mxu0 0.0
  %2188 = vmatpush.msra.mxu0 0.0
  %2189 = vmatpush.msra.mxu0 0.0
  %2190 = vmatpush.msra.mxu0 0.0
  %2191 = vmatpush.msra.mxu0 0.0
  %2192 = vmatpush.msra.mxu0 0.0
  %2193 = vmatpush.msra.mxu0 0.0
  %2194 = vmatpush.msra.mxu0 0.0
  %2195 = vmatpush.msra.mxu0 %v2165
  %2196 = vmatmul.f32.gmra.mxu0 %v2178
  %v2197 = vpop.f32.mrf.mxu0
  %v2198 = vadd.f32 %v2175, %v2197
  %2199 = vdwg.mxu0
  %2200 = vmatpush.msra.mxu0 0.0
  %2201 = vmatpush.msra.mxu0 0.0
  %2202 = vmatpush.msra.mxu0 0.0
  %2203 = vmatpush.msra.mxu0 0.0
  %2204 = vmatpush.msra.mxu0 0.0
  %2205 = vmatpush.msra.mxu0 0.0
  %2206 = vmatpush.msra.mxu0 0.0
  %2207 = vmatpush.msra.mxu0 0.0
  %2208 = vmatpush.msra.mxu0 0.0
  %2209 = vmatpush.msra.mxu0 0.0
  %2210 = vmatpush.msra.mxu0 0.0
  %2211 = vmatpush.msra.mxu0 0.0
  %2212 = vmatpush.msra.mxu0 0.0
  %2213 = vmatpush.msra.mxu0 0.0
  %2214 = vmatpush.msra.mxu0 0.0
  %2215 = vmatpush.msra.mxu0 %v2166
  %2216 = vmatmul.f32.gmra.mxu0 %v2178
  %v2217 = vpop.f32.mrf.mxu0
  %v2218 = vadd.f32 %v2175, %v2217
  %2219 = vdwg.mxu0
  %2220 = vmatpush.msra.mxu0 0.0
  %2221 = vmatpush.msra.mxu0 0.0
  %2222 = vmatpush.msra.mxu0 0.0
  %2223 = vmatpush.msra.mxu0 0.0
  %2224 = vmatpush.msra.mxu0 0.0
  %2225 = vmatpush.msra.mxu0 0.0
  %2226 = vmatpush.msra.mxu0 0.0
  %2227 = vmatpush.msra.mxu0 0.0
  %2228 = vmatpush.msra.mxu0 0.0
  %2229 = vmatpush.msra.mxu0 0.0
  %2230 = vmatpush.msra.mxu0 0.0
  %2231 = vmatpush.msra.mxu0 0.0
  %2232 = vmatpush.msra.mxu0 0.0
  %2233 = vmatpush.msra.mxu0 0.0
  %2234 = vmatpush.msra.mxu0 0.0
  %2235 = vmatpush.msra.mxu0 %v2167
  %2236 = vmatmul.f32.gmra.mxu0 %v2178
  %v2237 = vpop.f32.mrf.mxu0
  %v2238 = vadd.f32 %v2175, %v2237
  %2239 = vdwg.mxu0
  %2240 = vmatpush.msra.mxu0 0.0
  %2241 = vmatpush.msra.mxu0 0.0
  %2242 = vmatpush.msra.mxu0 0.0
  %2243 = vmatpush.msra.mxu0 0.0
  %2244 = vmatpush.msra.mxu0 0.0
  %2245 = vmatpush.msra.mxu0 0.0
  %2246 = vmatpush.msra.mxu0 0.0
  %2247 = vmatpush.msra.mxu0 0.0
  %2248 = vmatpush.msra.mxu0 0.0
  %2249 = vmatpush.msra.mxu0 0.0
  %2250 = vmatpush.msra.mxu0 0.0
  %2251 = vmatpush.msra.mxu0 0.0
  %2252 = vmatpush.msra.mxu0 0.0
  %2253 = vmatpush.msra.mxu0 0.0
  %2254 = vmatpush.msra.mxu0 0.0
  %2255 = vmatpush.msra.mxu0 %v2168
  %2256 = vmatmul.f32.gmra.mxu0 %v2178
  %v2257 = vpop.f32.mrf.mxu0
  %v2258 = vadd.f32 %v2175, %v2257
  %2259 = vdwg.mxu0
  %2260 = vrot.lane.b32.xlu0 %v2165, 17
  %v2261 = vpop.permute.xlu0 %2260
  %2262 = vrot.lane.b32.xlu0 %v2166, 17
  %v2263 = vpop.permute.xlu0 %2262
  %2264 = vrot.lane.b32.xlu0 %v2167, 17
  %v2265 = vpop.permute.xlu0 %2264
  %2266 = vrot.lane.b32.xlu0 %v2168, 17
  %v2267 = vpop.permute.xlu0 %2266
  %v2268 = vsel %vm182, %v2265, %v2267
  %v2269 = vsel %vm182, %v2263, %v2265
  %v2270 = vsel %vm182, %v2261, %v2263
  %v2271 = vsel %vm182, %v2267, %v2261
  %v2272 = vmul.f32 %v2271, %v187
  %v2273 = vmul.f32 %v2270, %v188
  %v2274 = vmul.f32 %v2269, %v189
  %v2275 = vmul.f32 %v2268, %v190
  %v2276 = vld [vmem:[%s6] sm:$0xff]
  %v2278 = vsel %vm1238, %v2276, 0
  %2280 = vmatpush.msra.mxu0 0.0
  %2281 = vmatpush.msra.mxu0 0.0
  %2282 = vmatpush.msra.mxu0 0.0
  %2283 = vmatpush.msra.mxu0 0.0
  %2284 = vmatpush.msra.mxu0 0.0
  %2285 = vmatpush.msra.mxu0 0.0
  %2286 = vmatpush.msra.mxu0 0.0
  %2287 = vmatpush.msra.mxu0 0.0
  %2288 = vmatpush.msra.mxu0 0.0
  %2289 = vmatpush.msra.mxu0 0.0
  %2290 = vmatpush.msra.mxu0 0.0
  %2291 = vmatpush.msra.mxu0 0.0
  %2292 = vmatpush.msra.mxu0 0.0
  %2293 = vmatpush.msra.mxu0 0.0
  %2294 = vmatpush.msra.mxu0 0.0
  %2295 = vmatpush.msra.mxu0 %v2272
  %2296 = vmatmul.f32.gmra.mxu0 %v2278
  %v2297 = vpop.f32.mrf.mxu0
  %v2298 = vadd.f32 0.0, %v2297
  %2299 = vdwg.mxu0
  %2300 = vmatpush.msra.mxu0 0.0
  %2301 = vmatpush.msra.mxu0 0.0
  %2302 = vmatpush.msra.mxu0 0.0
  %2303 = vmatpush.msra.mxu0 0.0
  %2304 = vmatpush.msra.mxu0 0.0
  %2305 = vmatpush.msra.mxu0 0.0
  %2306 = vmatpush.msra.mxu0 0.0
  %2307 = vmatpush.msra.mxu0 0.0
  %2308 = vmatpush.msra.mxu0 0.0
  %2309 = vmatpush.msra.mxu0 0.0
  %2310 = vmatpush.msra.mxu0 0.0
  %2311 = vmatpush.msra.mxu0 0.0
  %2312 = vmatpush.msra.mxu0 0.0
  %2313 = vmatpush.msra.mxu0 0.0
  %2314 = vmatpush.msra.mxu0 0.0
  %2315 = vmatpush.msra.mxu0 %v2273
  %2316 = vmatmul.f32.gmra.mxu0 %v2278
  %v2317 = vpop.f32.mrf.mxu0
  %v2318 = vadd.f32 0.0, %v2317
  %2319 = vdwg.mxu0
  %2320 = vmatpush.msra.mxu0 0.0
  %2321 = vmatpush.msra.mxu0 0.0
  %2322 = vmatpush.msra.mxu0 0.0
  %2323 = vmatpush.msra.mxu0 0.0
  %2324 = vmatpush.msra.mxu0 0.0
  %2325 = vmatpush.msra.mxu0 0.0
  %2326 = vmatpush.msra.mxu0 0.0
  %2327 = vmatpush.msra.mxu0 0.0
  %2328 = vmatpush.msra.mxu0 0.0
  %2329 = vmatpush.msra.mxu0 0.0
  %2330 = vmatpush.msra.mxu0 0.0
  %2331 = vmatpush.msra.mxu0 0.0
  %2332 = vmatpush.msra.mxu0 0.0
  %2333 = vmatpush.msra.mxu0 0.0
  %2334 = vmatpush.msra.mxu0 0.0
  %2335 = vmatpush.msra.mxu0 %v2274
  %2336 = vmatmul.f32.gmra.mxu0 %v2278
  %v2337 = vpop.f32.mrf.mxu0
  %v2338 = vadd.f32 0.0, %v2337
  %2339 = vdwg.mxu0
  %2340 = vmatpush.msra.mxu0 0.0
  %2341 = vmatpush.msra.mxu0 0.0
  %2342 = vmatpush.msra.mxu0 0.0
  %2343 = vmatpush.msra.mxu0 0.0
  %2344 = vmatpush.msra.mxu0 0.0
  %2345 = vmatpush.msra.mxu0 0.0
  %2346 = vmatpush.msra.mxu0 0.0
  %2347 = vmatpush.msra.mxu0 0.0
  %2348 = vmatpush.msra.mxu0 0.0
  %2349 = vmatpush.msra.mxu0 0.0
  %2350 = vmatpush.msra.mxu0 0.0
  %2351 = vmatpush.msra.mxu0 0.0
  %2352 = vmatpush.msra.mxu0 0.0
  %2353 = vmatpush.msra.mxu0 0.0
  %2354 = vmatpush.msra.mxu0 0.0
  %2355 = vmatpush.msra.mxu0 %v2275
  %2356 = vmatmul.f32.gmra.mxu0 %v2278
  %v2357 = vpop.f32.mrf.mxu0
  %v2358 = vadd.f32 0.0, %v2357
  %2359 = vdwg.mxu0
  %v2360 = vadd.f32 %v2198, %v2298
  %v2361 = vadd.f32 %v2218, %v2318
  %v2362 = vadd.f32 %v2238, %v2338
  %v2363 = vadd.f32 %v2258, %v2358
  %2364 = vrot.lane.b32.xlu0 %v2165, 16
  %v2365 = vpop.permute.xlu0 %2364
  %2366 = vrot.lane.b32.xlu0 %v2166, 16
  %v2367 = vpop.permute.xlu0 %2366
  %2368 = vrot.lane.b32.xlu0 %v2167, 16
  %v2369 = vpop.permute.xlu0 %2368
  %2370 = vrot.lane.b32.xlu0 %v2168, 16
  %v2371 = vpop.permute.xlu0 %2370
  %v2372 = vsel %vm314, %v2369, %v2371
  %v2373 = vsel %vm314, %v2367, %v2369
  %v2374 = vsel %vm314, %v2365, %v2367
  %v2375 = vsel %vm314, %v2371, %v2365
  %v2376 = vmul.f32 %v2375, %v319
  %v2377 = vmul.f32 %v2374, %v320
  %v2378 = vmul.f32 %v2373, %v321
  %v2379 = vmul.f32 %v2372, %v322
  %s2380 = scalar_lea.vmem %s6, 8
  %v2381 = vld [vmem:[%s2380] sm:$0xff]
  %v2383 = vsel %vm1238, %v2381, 0
  %2385 = vmatpush.msra.mxu0 0.0
  %2386 = vmatpush.msra.mxu0 0.0
  %2387 = vmatpush.msra.mxu0 0.0
  %2388 = vmatpush.msra.mxu0 0.0
  %2389 = vmatpush.msra.mxu0 0.0
  %2390 = vmatpush.msra.mxu0 0.0
  %2391 = vmatpush.msra.mxu0 0.0
  %2392 = vmatpush.msra.mxu0 0.0
  %2393 = vmatpush.msra.mxu0 0.0
  %2394 = vmatpush.msra.mxu0 0.0
  %2395 = vmatpush.msra.mxu0 0.0
  %2396 = vmatpush.msra.mxu0 0.0
  %2397 = vmatpush.msra.mxu0 0.0
  %2398 = vmatpush.msra.mxu0 0.0
  %2399 = vmatpush.msra.mxu0 0.0
  %2400 = vmatpush.msra.mxu0 %v2376
  %2401 = vmatmul.f32.gmra.mxu0 %v2383
  %v2402 = vpop.f32.mrf.mxu0
  %v2403 = vadd.f32 0.0, %v2402
  %2404 = vdwg.mxu0
  %2405 = vmatpush.msra.mxu0 0.0
  %2406 = vmatpush.msra.mxu0 0.0
  %2407 = vmatpush.msra.mxu0 0.0
  %2408 = vmatpush.msra.mxu0 0.0
  %2409 = vmatpush.msra.mxu0 0.0
  %2410 = vmatpush.msra.mxu0 0.0
  %2411 = vmatpush.msra.mxu0 0.0
  %2412 = vmatpush.msra.mxu0 0.0
  %2413 = vmatpush.msra.mxu0 0.0
  %2414 = vmatpush.msra.mxu0 0.0
  %2415 = vmatpush.msra.mxu0 0.0
  %2416 = vmatpush.msra.mxu0 0.0
  %2417 = vmatpush.msra.mxu0 0.0
  %2418 = vmatpush.msra.mxu0 0.0
  %2419 = vmatpush.msra.mxu0 0.0
  %2420 = vmatpush.msra.mxu0 %v2377
  %2421 = vmatmul.f32.gmra.mxu0 %v2383
  %v2422 = vpop.f32.mrf.mxu0
  %v2423 = vadd.f32 0.0, %v2422
  %2424 = vdwg.mxu0
  %2425 = vmatpush.msra.mxu0 0.0
  %2426 = vmatpush.msra.mxu0 0.0
  %2427 = vmatpush.msra.mxu0 0.0
  %2428 = vmatpush.msra.mxu0 0.0
  %2429 = vmatpush.msra.mxu0 0.0
  %2430 = vmatpush.msra.mxu0 0.0
  %2431 = vmatpush.msra.mxu0 0.0
  %2432 = vmatpush.msra.mxu0 0.0
  %2433 = vmatpush.msra.mxu0 0.0
  %2434 = vmatpush.msra.mxu0 0.0
  %2435 = vmatpush.msra.mxu0 0.0
  %2436 = vmatpush.msra.mxu0 0.0
  %2437 = vmatpush.msra.mxu0 0.0
  %2438 = vmatpush.msra.mxu0 0.0
  %2439 = vmatpush.msra.mxu0 0.0
  %2440 = vmatpush.msra.mxu0 %v2378
  %2441 = vmatmul.f32.gmra.mxu0 %v2383
  %v2442 = vpop.f32.mrf.mxu0
  %v2443 = vadd.f32 0.0, %v2442
  %2444 = vdwg.mxu0
  %2445 = vmatpush.msra.mxu0 0.0
  %2446 = vmatpush.msra.mxu0 0.0
  %2447 = vmatpush.msra.mxu0 0.0
  %2448 = vmatpush.msra.mxu0 0.0
  %2449 = vmatpush.msra.mxu0 0.0
  %2450 = vmatpush.msra.mxu0 0.0
  %2451 = vmatpush.msra.mxu0 0.0
  %2452 = vmatpush.msra.mxu0 0.0
  %2453 = vmatpush.msra.mxu0 0.0
  %2454 = vmatpush.msra.mxu0 0.0
  %2455 = vmatpush.msra.mxu0 0.0
  %2456 = vmatpush.msra.mxu0 0.0
  %2457 = vmatpush.msra.mxu0 0.0
  %2458 = vmatpush.msra.mxu0 0.0
  %2459 = vmatpush.msra.mxu0 0.0
  %2460 = vmatpush.msra.mxu0 %v2379
  %2461 = vmatmul.f32.gmra.mxu0 %v2383
  %v2462 = vpop.f32.mrf.mxu0
  %v2463 = vadd.f32 0.0, %v2462
  %2464 = vdwg.mxu0
  %v2465 = vadd.f32 %v2360, %v2403
  %v2466 = vadd.f32 %v2361, %v2423
  %v2467 = vadd.f32 %v2362, %v2443
  %v2468 = vadd.f32 %v2363, %v2463
  %2469 = vrot.lane.b32.xlu0 %v2165, 15
  %v2470 = vpop.permute.xlu0 %2469
  %2471 = vrot.lane.b32.xlu0 %v2166, 15
  %v2472 = vpop.permute.xlu0 %2471
  %2473 = vrot.lane.b32.xlu0 %v2167, 15
  %v2474 = vpop.permute.xlu0 %2473
  %2475 = vrot.lane.b32.xlu0 %v2168, 15
  %v2476 = vpop.permute.xlu0 %2475
  %v2477 = vsel %vm447, %v2474, %v2476
  %v2478 = vsel %vm447, %v2472, %v2474
  %v2479 = vsel %vm447, %v2470, %v2472
  %v2480 = vsel %vm447, %v2476, %v2470
  %v2481 = vmul.f32 %v2480, %v452
  %v2482 = vmul.f32 %v2479, %v453
  %v2483 = vmul.f32 %v2478, %v454
  %v2484 = vmul.f32 %v2477, %v455
  %s2485 = scalar_lea.vmem %s6, 16
  %v2486 = vld [vmem:[%s2485] sm:$0xff]
  %v2488 = vsel %vm1238, %v2486, 0
  %2490 = vmatpush.msra.mxu0 0.0
  %2491 = vmatpush.msra.mxu0 0.0
  %2492 = vmatpush.msra.mxu0 0.0
  %2493 = vmatpush.msra.mxu0 0.0
  %2494 = vmatpush.msra.mxu0 0.0
  %2495 = vmatpush.msra.mxu0 0.0
  %2496 = vmatpush.msra.mxu0 0.0
  %2497 = vmatpush.msra.mxu0 0.0
  %2498 = vmatpush.msra.mxu0 0.0
  %2499 = vmatpush.msra.mxu0 0.0
  %2500 = vmatpush.msra.mxu0 0.0
  %2501 = vmatpush.msra.mxu0 0.0
  %2502 = vmatpush.msra.mxu0 0.0
  %2503 = vmatpush.msra.mxu0 0.0
  %2504 = vmatpush.msra.mxu0 0.0
  %2505 = vmatpush.msra.mxu0 %v2481
  %2506 = vmatmul.f32.gmra.mxu0 %v2488
  %v2507 = vpop.f32.mrf.mxu0
  %v2508 = vadd.f32 0.0, %v2507
  %2509 = vdwg.mxu0
  %2510 = vmatpush.msra.mxu0 0.0
  %2511 = vmatpush.msra.mxu0 0.0
  %2512 = vmatpush.msra.mxu0 0.0
  %2513 = vmatpush.msra.mxu0 0.0
  %2514 = vmatpush.msra.mxu0 0.0
  %2515 = vmatpush.msra.mxu0 0.0
  %2516 = vmatpush.msra.mxu0 0.0
  %2517 = vmatpush.msra.mxu0 0.0
  %2518 = vmatpush.msra.mxu0 0.0
  %2519 = vmatpush.msra.mxu0 0.0
  %2520 = vmatpush.msra.mxu0 0.0
  %2521 = vmatpush.msra.mxu0 0.0
  %2522 = vmatpush.msra.mxu0 0.0
  %2523 = vmatpush.msra.mxu0 0.0
  %2524 = vmatpush.msra.mxu0 0.0
  %2525 = vmatpush.msra.mxu0 %v2482
  %2526 = vmatmul.f32.gmra.mxu0 %v2488
  %v2527 = vpop.f32.mrf.mxu0
  %v2528 = vadd.f32 0.0, %v2527
  %2529 = vdwg.mxu0
  %2530 = vmatpush.msra.mxu0 0.0
  %2531 = vmatpush.msra.mxu0 0.0
  %2532 = vmatpush.msra.mxu0 0.0
  %2533 = vmatpush.msra.mxu0 0.0
  %2534 = vmatpush.msra.mxu0 0.0
  %2535 = vmatpush.msra.mxu0 0.0
  %2536 = vmatpush.msra.mxu0 0.0
  %2537 = vmatpush.msra.mxu0 0.0
  %2538 = vmatpush.msra.mxu0 0.0
  %2539 = vmatpush.msra.mxu0 0.0
  %2540 = vmatpush.msra.mxu0 0.0
  %2541 = vmatpush.msra.mxu0 0.0
  %2542 = vmatpush.msra.mxu0 0.0
  %2543 = vmatpush.msra.mxu0 0.0
  %2544 = vmatpush.msra.mxu0 0.0
  %2545 = vmatpush.msra.mxu0 %v2483
  %2546 = vmatmul.f32.gmra.mxu0 %v2488
  %v2547 = vpop.f32.mrf.mxu0
  %v2548 = vadd.f32 0.0, %v2547
  %2549 = vdwg.mxu0
  %2550 = vmatpush.msra.mxu0 0.0
  %2551 = vmatpush.msra.mxu0 0.0
  %2552 = vmatpush.msra.mxu0 0.0
  %2553 = vmatpush.msra.mxu0 0.0
  %2554 = vmatpush.msra.mxu0 0.0
  %2555 = vmatpush.msra.mxu0 0.0
  %2556 = vmatpush.msra.mxu0 0.0
  %2557 = vmatpush.msra.mxu0 0.0
  %2558 = vmatpush.msra.mxu0 0.0
  %2559 = vmatpush.msra.mxu0 0.0
  %2560 = vmatpush.msra.mxu0 0.0
  %2561 = vmatpush.msra.mxu0 0.0
  %2562 = vmatpush.msra.mxu0 0.0
  %2563 = vmatpush.msra.mxu0 0.0
  %2564 = vmatpush.msra.mxu0 0.0
  %2565 = vmatpush.msra.mxu0 %v2484
  %2566 = vmatmul.f32.gmra.mxu0 %v2488
  %v2567 = vpop.f32.mrf.mxu0
  %v2568 = vadd.f32 0.0, %v2567
  %2569 = vdwg.mxu0
  %v2570 = vadd.f32 %v2465, %v2508
  %v2571 = vadd.f32 %v2466, %v2528
  %v2572 = vadd.f32 %v2467, %v2548
  %v2573 = vadd.f32 %v2468, %v2568
  %2574 = vrot.lane.b32.xlu0 %v2165, 1
  %v2575 = vpop.permute.xlu0 %2574
  %2576 = vrot.lane.b32.xlu0 %v2166, 1
  %v2577 = vpop.permute.xlu0 %2576
  %2578 = vrot.lane.b32.xlu0 %v2167, 1
  %v2579 = vpop.permute.xlu0 %2578
  %2580 = vrot.lane.b32.xlu0 %v2168, 1
  %v2581 = vpop.permute.xlu0 %2580
  %v2582 = vsel %vm580, %v2579, %v2581
  %v2583 = vsel %vm580, %v2577, %v2579
  %v2584 = vsel %vm580, %v2575, %v2577
  %v2585 = vsel %vm580, %v2581, %v2575
  %v2586 = vmul.f32 %v2585, %v585
  %v2587 = vmul.f32 %v2584, %v586
  %v2588 = vmul.f32 %v2583, %v587
  %v2589 = vmul.f32 %v2582, %v588
  %s2590 = scalar_lea.vmem %s6, 24
  %v2591 = vld [vmem:[%s2590] sm:$0xff]
  %v2593 = vsel %vm1238, %v2591, 0
  %2595 = vmatpush.msra.mxu0 0.0
  %2596 = vmatpush.msra.mxu0 0.0
  %2597 = vmatpush.msra.mxu0 0.0
  %2598 = vmatpush.msra.mxu0 0.0
  %2599 = vmatpush.msra.mxu0 0.0
  %2600 = vmatpush.msra.mxu0 0.0
  %2601 = vmatpush.msra.mxu0 0.0
  %2602 = vmatpush.msra.mxu0 0.0
  %2603 = vmatpush.msra.mxu0 0.0
  %2604 = vmatpush.msra.mxu0 0.0
  %2605 = vmatpush.msra.mxu0 0.0
  %2606 = vmatpush.msra.mxu0 0.0
  %2607 = vmatpush.msra.mxu0 0.0
  %2608 = vmatpush.msra.mxu0 0.0
  %2609 = vmatpush.msra.mxu0 0.0
  %2610 = vmatpush.msra.mxu0 %v2586
  %2611 = vmatmul.f32.gmra.mxu0 %v2593
  %v2612 = vpop.f32.mrf.mxu0
  %v2613 = vadd.f32 0.0, %v2612
  %2614 = vdwg.mxu0
  %2615 = vmatpush.msra.mxu0 0.0
  %2616 = vmatpush.msra.mxu0 0.0
  %2617 = vmatpush.msra.mxu0 0.0
  %2618 = vmatpush.msra.mxu0 0.0
  %2619 = vmatpush.msra.mxu0 0.0
  %2620 = vmatpush.msra.mxu0 0.0
  %2621 = vmatpush.msra.mxu0 0.0
  %2622 = vmatpush.msra.mxu0 0.0
  %2623 = vmatpush.msra.mxu0 0.0
  %2624 = vmatpush.msra.mxu0 0.0
  %2625 = vmatpush.msra.mxu0 0.0
  %2626 = vmatpush.msra.mxu0 0.0
  %2627 = vmatpush.msra.mxu0 0.0
  %2628 = vmatpush.msra.mxu0 0.0
  %2629 = vmatpush.msra.mxu0 0.0
  %2630 = vmatpush.msra.mxu0 %v2587
  %2631 = vmatmul.f32.gmra.mxu0 %v2593
  %v2632 = vpop.f32.mrf.mxu0
  %v2633 = vadd.f32 0.0, %v2632
  %2634 = vdwg.mxu0
  %2635 = vmatpush.msra.mxu0 0.0
  %2636 = vmatpush.msra.mxu0 0.0
  %2637 = vmatpush.msra.mxu0 0.0
  %2638 = vmatpush.msra.mxu0 0.0
  %2639 = vmatpush.msra.mxu0 0.0
  %2640 = vmatpush.msra.mxu0 0.0
  %2641 = vmatpush.msra.mxu0 0.0
  %2642 = vmatpush.msra.mxu0 0.0
  %2643 = vmatpush.msra.mxu0 0.0
  %2644 = vmatpush.msra.mxu0 0.0
  %2645 = vmatpush.msra.mxu0 0.0
  %2646 = vmatpush.msra.mxu0 0.0
  %2647 = vmatpush.msra.mxu0 0.0
  %2648 = vmatpush.msra.mxu0 0.0
  %2649 = vmatpush.msra.mxu0 0.0
  %2650 = vmatpush.msra.mxu0 %v2588
  %2651 = vmatmul.f32.gmra.mxu0 %v2593
  %v2652 = vpop.f32.mrf.mxu0
  %v2653 = vadd.f32 0.0, %v2652
  %2654 = vdwg.mxu0
  %2655 = vmatpush.msra.mxu0 0.0
  %2656 = vmatpush.msra.mxu0 0.0
  %2657 = vmatpush.msra.mxu0 0.0
  %2658 = vmatpush.msra.mxu0 0.0
  %2659 = vmatpush.msra.mxu0 0.0
  %2660 = vmatpush.msra.mxu0 0.0
  %2661 = vmatpush.msra.mxu0 0.0
  %2662 = vmatpush.msra.mxu0 0.0
  %2663 = vmatpush.msra.mxu0 0.0
  %2664 = vmatpush.msra.mxu0 0.0
  %2665 = vmatpush.msra.mxu0 0.0
  %2666 = vmatpush.msra.mxu0 0.0
  %2667 = vmatpush.msra.mxu0 0.0
  %2668 = vmatpush.msra.mxu0 0.0
  %2669 = vmatpush.msra.mxu0 0.0
  %2670 = vmatpush.msra.mxu0 %v2589
  %2671 = vmatmul.f32.gmra.mxu0 %v2593
  %v2672 = vpop.f32.mrf.mxu0
  %v2673 = vadd.f32 0.0, %v2672
  %2674 = vdwg.mxu0
  %v2675 = vadd.f32 %v2570, %v2613
  %v2676 = vadd.f32 %v2571, %v2633
  %v2677 = vadd.f32 %v2572, %v2653
  %v2678 = vadd.f32 %v2573, %v2673
  %2679 = vrot.lane.b32.xlu0 %v2165, 127
  %v2680 = vpop.permute.xlu0 %2679
  %2681 = vrot.lane.b32.xlu0 %v2166, 127
  %v2682 = vpop.permute.xlu0 %2681
  %2683 = vrot.lane.b32.xlu0 %v2167, 127
  %v2684 = vpop.permute.xlu0 %2683
  %2685 = vrot.lane.b32.xlu0 %v2168, 127
  %v2686 = vpop.permute.xlu0 %2685
  %v2687 = vsel %vm713, %v2684, %v2686
  %v2688 = vsel %vm713, %v2682, %v2684
  %v2689 = vsel %vm713, %v2680, %v2682
  %v2690 = vsel %vm713, %v2686, %v2680
  %v2691 = vmul.f32 %v2689, %v718
  %v2692 = vmul.f32 %v2688, %v719
  %v2693 = vmul.f32 %v2687, %v720
  %v2694 = vmul.f32 %v2690, %v721
  %s2695 = scalar_lea.vmem %s6, 40
  %v2696 = vld [vmem:[%s2695] sm:$0xff]
  %v2698 = vsel %vm1238, %v2696, 0
  %2700 = vmatpush.msra.mxu0 0.0
  %2701 = vmatpush.msra.mxu0 0.0
  %2702 = vmatpush.msra.mxu0 0.0
  %2703 = vmatpush.msra.mxu0 0.0
  %2704 = vmatpush.msra.mxu0 0.0
  %2705 = vmatpush.msra.mxu0 0.0
  %2706 = vmatpush.msra.mxu0 0.0
  %2707 = vmatpush.msra.mxu0 0.0
  %2708 = vmatpush.msra.mxu0 0.0
  %2709 = vmatpush.msra.mxu0 0.0
  %2710 = vmatpush.msra.mxu0 0.0
  %2711 = vmatpush.msra.mxu0 0.0
  %2712 = vmatpush.msra.mxu0 0.0
  %2713 = vmatpush.msra.mxu0 0.0
  %2714 = vmatpush.msra.mxu0 0.0
  %2715 = vmatpush.msra.mxu0 %v2691
  %2716 = vmatmul.f32.gmra.mxu0 %v2698
  %v2717 = vpop.f32.mrf.mxu0
  %v2718 = vadd.f32 0.0, %v2717
  %2719 = vdwg.mxu0
  %2720 = vmatpush.msra.mxu0 0.0
  %2721 = vmatpush.msra.mxu0 0.0
  %2722 = vmatpush.msra.mxu0 0.0
  %2723 = vmatpush.msra.mxu0 0.0
  %2724 = vmatpush.msra.mxu0 0.0
  %2725 = vmatpush.msra.mxu0 0.0
  %2726 = vmatpush.msra.mxu0 0.0
  %2727 = vmatpush.msra.mxu0 0.0
  %2728 = vmatpush.msra.mxu0 0.0
  %2729 = vmatpush.msra.mxu0 0.0
  %2730 = vmatpush.msra.mxu0 0.0
  %2731 = vmatpush.msra.mxu0 0.0
  %2732 = vmatpush.msra.mxu0 0.0
  %2733 = vmatpush.msra.mxu0 0.0
  %2734 = vmatpush.msra.mxu0 0.0
  %2735 = vmatpush.msra.mxu0 %v2692
  %2736 = vmatmul.f32.gmra.mxu0 %v2698
  %v2737 = vpop.f32.mrf.mxu0
  %v2738 = vadd.f32 0.0, %v2737
  %2739 = vdwg.mxu0
  %2740 = vmatpush.msra.mxu0 0.0
  %2741 = vmatpush.msra.mxu0 0.0
  %2742 = vmatpush.msra.mxu0 0.0
  %2743 = vmatpush.msra.mxu0 0.0
  %2744 = vmatpush.msra.mxu0 0.0
  %2745 = vmatpush.msra.mxu0 0.0
  %2746 = vmatpush.msra.mxu0 0.0
  %2747 = vmatpush.msra.mxu0 0.0
  %2748 = vmatpush.msra.mxu0 0.0
  %2749 = vmatpush.msra.mxu0 0.0
  %2750 = vmatpush.msra.mxu0 0.0
  %2751 = vmatpush.msra.mxu0 0.0
  %2752 = vmatpush.msra.mxu0 0.0
  %2753 = vmatpush.msra.mxu0 0.0
  %2754 = vmatpush.msra.mxu0 0.0
  %2755 = vmatpush.msra.mxu0 %v2693
  %2756 = vmatmul.f32.gmra.mxu0 %v2698
  %v2757 = vpop.f32.mrf.mxu0
  %v2758 = vadd.f32 0.0, %v2757
  %2759 = vdwg.mxu0
  %2760 = vmatpush.msra.mxu0 0.0
  %2761 = vmatpush.msra.mxu0 0.0
  %2762 = vmatpush.msra.mxu0 0.0
  %2763 = vmatpush.msra.mxu0 0.0
  %2764 = vmatpush.msra.mxu0 0.0
  %2765 = vmatpush.msra.mxu0 0.0
  %2766 = vmatpush.msra.mxu0 0.0
  %2767 = vmatpush.msra.mxu0 0.0
  %2768 = vmatpush.msra.mxu0 0.0
  %2769 = vmatpush.msra.mxu0 0.0
  %2770 = vmatpush.msra.mxu0 0.0
  %2771 = vmatpush.msra.mxu0 0.0
  %2772 = vmatpush.msra.mxu0 0.0
  %2773 = vmatpush.msra.mxu0 0.0
  %2774 = vmatpush.msra.mxu0 0.0
  %2775 = vmatpush.msra.mxu0 %v2694
  %2776 = vmatmul.f32.gmra.mxu0 %v2698
  %v2777 = vpop.f32.mrf.mxu0
  %v2778 = vadd.f32 0.0, %v2777
  %2779 = vdwg.mxu0
  %v2780 = vadd.f32 %v2675, %v2718
  %v2781 = vadd.f32 %v2676, %v2738
  %v2782 = vadd.f32 %v2677, %v2758
  %v2783 = vadd.f32 %v2678, %v2778
  %2784 = vrot.lane.b32.xlu0 %v2165, 113
  %v2785 = vpop.permute.xlu0 %2784
  %2786 = vrot.lane.b32.xlu0 %v2166, 113
  %v2787 = vpop.permute.xlu0 %2786
  %2788 = vrot.lane.b32.xlu0 %v2167, 113
  %v2789 = vpop.permute.xlu0 %2788
  %2790 = vrot.lane.b32.xlu0 %v2168, 113
  %v2791 = vpop.permute.xlu0 %2790
  %v2792 = vsel %vm846, %v2789, %v2791
  %v2793 = vsel %vm846, %v2787, %v2789
  %v2794 = vsel %vm846, %v2785, %v2787
  %v2795 = vsel %vm846, %v2791, %v2785
  %v2796 = vmul.f32 %v2794, %v851
  %v2797 = vmul.f32 %v2793, %v852
  %v2798 = vmul.f32 %v2792, %v853
  %v2799 = vmul.f32 %v2795, %v854
  %s2800 = scalar_lea.vmem %s6, 48
  %v2801 = vld [vmem:[%s2800] sm:$0xff]
  %v2803 = vsel %vm1238, %v2801, 0
  %2805 = vmatpush.msra.mxu0 0.0
  %2806 = vmatpush.msra.mxu0 0.0
  %2807 = vmatpush.msra.mxu0 0.0
  %2808 = vmatpush.msra.mxu0 0.0
  %2809 = vmatpush.msra.mxu0 0.0
  %2810 = vmatpush.msra.mxu0 0.0
  %2811 = vmatpush.msra.mxu0 0.0
  %2812 = vmatpush.msra.mxu0 0.0
  %2813 = vmatpush.msra.mxu0 0.0
  %2814 = vmatpush.msra.mxu0 0.0
  %2815 = vmatpush.msra.mxu0 0.0
  %2816 = vmatpush.msra.mxu0 0.0
  %2817 = vmatpush.msra.mxu0 0.0
  %2818 = vmatpush.msra.mxu0 0.0
  %2819 = vmatpush.msra.mxu0 0.0
  %2820 = vmatpush.msra.mxu0 %v2796
  %2821 = vmatmul.f32.gmra.mxu0 %v2803
  %v2822 = vpop.f32.mrf.mxu0
  %v2823 = vadd.f32 0.0, %v2822
  %2824 = vdwg.mxu0
  %2825 = vmatpush.msra.mxu0 0.0
  %2826 = vmatpush.msra.mxu0 0.0
  %2827 = vmatpush.msra.mxu0 0.0
  %2828 = vmatpush.msra.mxu0 0.0
  %2829 = vmatpush.msra.mxu0 0.0
  %2830 = vmatpush.msra.mxu0 0.0
  %2831 = vmatpush.msra.mxu0 0.0
  %2832 = vmatpush.msra.mxu0 0.0
  %2833 = vmatpush.msra.mxu0 0.0
  %2834 = vmatpush.msra.mxu0 0.0
  %2835 = vmatpush.msra.mxu0 0.0
  %2836 = vmatpush.msra.mxu0 0.0
  %2837 = vmatpush.msra.mxu0 0.0
  %2838 = vmatpush.msra.mxu0 0.0
  %2839 = vmatpush.msra.mxu0 0.0
  %2840 = vmatpush.msra.mxu0 %v2797
  %2841 = vmatmul.f32.gmra.mxu0 %v2803
  %v2842 = vpop.f32.mrf.mxu0
  %v2843 = vadd.f32 0.0, %v2842
  %2844 = vdwg.mxu0
  %2845 = vmatpush.msra.mxu0 0.0
  %2846 = vmatpush.msra.mxu0 0.0
  %2847 = vmatpush.msra.mxu0 0.0
  %2848 = vmatpush.msra.mxu0 0.0
  %2849 = vmatpush.msra.mxu0 0.0
  %2850 = vmatpush.msra.mxu0 0.0
  %2851 = vmatpush.msra.mxu0 0.0
  %2852 = vmatpush.msra.mxu0 0.0
  %2853 = vmatpush.msra.mxu0 0.0
  %2854 = vmatpush.msra.mxu0 0.0
  %2855 = vmatpush.msra.mxu0 0.0
  %2856 = vmatpush.msra.mxu0 0.0
  %2857 = vmatpush.msra.mxu0 0.0
  %2858 = vmatpush.msra.mxu0 0.0
  %2859 = vmatpush.msra.mxu0 0.0
  %2860 = vmatpush.msra.mxu0 %v2798
  %2861 = vmatmul.f32.gmra.mxu0 %v2803
  %v2862 = vpop.f32.mrf.mxu0
  %v2863 = vadd.f32 0.0, %v2862
  %2864 = vdwg.mxu0
  %2865 = vmatpush.msra.mxu0 0.0
  %2866 = vmatpush.msra.mxu0 0.0
  %2867 = vmatpush.msra.mxu0 0.0
  %2868 = vmatpush.msra.mxu0 0.0
  %2869 = vmatpush.msra.mxu0 0.0
  %2870 = vmatpush.msra.mxu0 0.0
  %2871 = vmatpush.msra.mxu0 0.0
  %2872 = vmatpush.msra.mxu0 0.0
  %2873 = vmatpush.msra.mxu0 0.0
  %2874 = vmatpush.msra.mxu0 0.0
  %2875 = vmatpush.msra.mxu0 0.0
  %2876 = vmatpush.msra.mxu0 0.0
  %2877 = vmatpush.msra.mxu0 0.0
  %2878 = vmatpush.msra.mxu0 0.0
  %2879 = vmatpush.msra.mxu0 0.0
  %2880 = vmatpush.msra.mxu0 %v2799
  %2881 = vmatmul.f32.gmra.mxu0 %v2803
  %v2882 = vpop.f32.mrf.mxu0
  %v2883 = vadd.f32 0.0, %v2882
  %2884 = vdwg.mxu0
  %v2885 = vadd.f32 %v2780, %v2823
  %v2886 = vadd.f32 %v2781, %v2843
  %v2887 = vadd.f32 %v2782, %v2863
  %v2888 = vadd.f32 %v2783, %v2883
  %2889 = vrot.lane.b32.xlu0 %v2165, 112
  %v2890 = vpop.permute.xlu0 %2889
  %2891 = vrot.lane.b32.xlu0 %v2166, 112
  %v2892 = vpop.permute.xlu0 %2891
  %2893 = vrot.lane.b32.xlu0 %v2167, 112
  %v2894 = vpop.permute.xlu0 %2893
  %2895 = vrot.lane.b32.xlu0 %v2168, 112
  %v2896 = vpop.permute.xlu0 %2895
  %v2897 = vsel %vm979, %v2894, %v2896
  %v2898 = vsel %vm979, %v2892, %v2894
  %v2899 = vsel %vm979, %v2890, %v2892
  %v2900 = vsel %vm979, %v2896, %v2890
  %v2901 = vmul.f32 %v2899, %v984
  %v2902 = vmul.f32 %v2898, %v985
  %v2903 = vmul.f32 %v2897, %v986
  %v2904 = vmul.f32 %v2900, %v987
  %s2905 = scalar_lea.vmem %s6, 56
  %v2906 = vld [vmem:[%s2905] sm:$0xff]
  %v2908 = vsel %vm1238, %v2906, 0
  %2910 = vmatpush.msra.mxu0 0.0
  %2911 = vmatpush.msra.mxu0 0.0
  %2912 = vmatpush.msra.mxu0 0.0
  %2913 = vmatpush.msra.mxu0 0.0
  %2914 = vmatpush.msra.mxu0 0.0
  %2915 = vmatpush.msra.mxu0 0.0
  %2916 = vmatpush.msra.mxu0 0.0
  %2917 = vmatpush.msra.mxu0 0.0
  %2918 = vmatpush.msra.mxu0 0.0
  %2919 = vmatpush.msra.mxu0 0.0
  %2920 = vmatpush.msra.mxu0 0.0
  %2921 = vmatpush.msra.mxu0 0.0
  %2922 = vmatpush.msra.mxu0 0.0
  %2923 = vmatpush.msra.mxu0 0.0
  %2924 = vmatpush.msra.mxu0 0.0
  %2925 = vmatpush.msra.mxu0 %v2901
  %2926 = vmatmul.f32.gmra.mxu0 %v2908
  %v2927 = vpop.f32.mrf.mxu0
  %v2928 = vadd.f32 0.0, %v2927
  %2929 = vdwg.mxu0
  %2930 = vmatpush.msra.mxu0 0.0
  %2931 = vmatpush.msra.mxu0 0.0
  %2932 = vmatpush.msra.mxu0 0.0
  %2933 = vmatpush.msra.mxu0 0.0
  %2934 = vmatpush.msra.mxu0 0.0
  %2935 = vmatpush.msra.mxu0 0.0
  %2936 = vmatpush.msra.mxu0 0.0
  %2937 = vmatpush.msra.mxu0 0.0
  %2938 = vmatpush.msra.mxu0 0.0
  %2939 = vmatpush.msra.mxu0 0.0
  %2940 = vmatpush.msra.mxu0 0.0
  %2941 = vmatpush.msra.mxu0 0.0
  %2942 = vmatpush.msra.mxu0 0.0
  %2943 = vmatpush.msra.mxu0 0.0
  %2944 = vmatpush.msra.mxu0 0.0
  %2945 = vmatpush.msra.mxu0 %v2902
  %2946 = vmatmul.f32.gmra.mxu0 %v2908
  %v2947 = vpop.f32.mrf.mxu0
  %v2948 = vadd.f32 0.0, %v2947
  %2949 = vdwg.mxu0
  %2950 = vmatpush.msra.mxu0 0.0
  %2951 = vmatpush.msra.mxu0 0.0
  %2952 = vmatpush.msra.mxu0 0.0
  %2953 = vmatpush.msra.mxu0 0.0
  %2954 = vmatpush.msra.mxu0 0.0
  %2955 = vmatpush.msra.mxu0 0.0
  %2956 = vmatpush.msra.mxu0 0.0
  %2957 = vmatpush.msra.mxu0 0.0
  %2958 = vmatpush.msra.mxu0 0.0
  %2959 = vmatpush.msra.mxu0 0.0
  %2960 = vmatpush.msra.mxu0 0.0
  %2961 = vmatpush.msra.mxu0 0.0
  %2962 = vmatpush.msra.mxu0 0.0
  %2963 = vmatpush.msra.mxu0 0.0
  %2964 = vmatpush.msra.mxu0 0.0
  %2965 = vmatpush.msra.mxu0 %v2903
  %2966 = vmatmul.f32.gmra.mxu0 %v2908
  %v2967 = vpop.f32.mrf.mxu0
  %v2968 = vadd.f32 0.0, %v2967
  %2969 = vdwg.mxu0
  %2970 = vmatpush.msra.mxu0 0.0
  %2971 = vmatpush.msra.mxu0 0.0
  %2972 = vmatpush.msra.mxu0 0.0
  %2973 = vmatpush.msra.mxu0 0.0
  %2974 = vmatpush.msra.mxu0 0.0
  %2975 = vmatpush.msra.mxu0 0.0
  %2976 = vmatpush.msra.mxu0 0.0
  %2977 = vmatpush.msra.mxu0 0.0
  %2978 = vmatpush.msra.mxu0 0.0
  %2979 = vmatpush.msra.mxu0 0.0
  %2980 = vmatpush.msra.mxu0 0.0
  %2981 = vmatpush.msra.mxu0 0.0
  %2982 = vmatpush.msra.mxu0 0.0
  %2983 = vmatpush.msra.mxu0 0.0
  %2984 = vmatpush.msra.mxu0 0.0
  %2985 = vmatpush.msra.mxu0 %v2904
  %2986 = vmatmul.f32.gmra.mxu0 %v2908
  %v2987 = vpop.f32.mrf.mxu0
  %v2988 = vadd.f32 0.0, %v2987
  %2989 = vdwg.mxu0
  %v2990 = vadd.f32 %v2885, %v2928
  %v2991 = vadd.f32 %v2886, %v2948
  %v2992 = vadd.f32 %v2887, %v2968
  %v2993 = vadd.f32 %v2888, %v2988
  %2994 = vrot.lane.b32.xlu0 %v2165, 111
  %v2995 = vpop.permute.xlu0 %2994
  %2996 = vrot.lane.b32.xlu0 %v2166, 111
  %v2997 = vpop.permute.xlu0 %2996
  %2998 = vrot.lane.b32.xlu0 %v2167, 111
  %v2999 = vpop.permute.xlu0 %2998
  %3000 = vrot.lane.b32.xlu0 %v2168, 111
  %v3001 = vpop.permute.xlu0 %3000
  %v3002 = vsel %vm1112, %v2999, %v3001
  %v3003 = vsel %vm1112, %v2997, %v2999
  %v3004 = vsel %vm1112, %v2995, %v2997
  %v3005 = vsel %vm1112, %v3001, %v2995
  %v3006 = vmul.f32 %v3004, %v1117
  %v3007 = vmul.f32 %v3003, %v1118
  %v3008 = vmul.f32 %v3002, %v1119
  %v3009 = vmul.f32 %v3005, %v1120
  %s3010 = scalar_lea.vmem %s6, 64
  %v3011 = vld [vmem:[%s3010] sm:$0xff]
  %v3013 = vsel %vm1238, %v3011, 0
  %3015 = vmatpush.msra.mxu0 0.0
  %3016 = vmatpush.msra.mxu0 0.0
  %3017 = vmatpush.msra.mxu0 0.0
  %3018 = vmatpush.msra.mxu0 0.0
  %3019 = vmatpush.msra.mxu0 0.0
  %3020 = vmatpush.msra.mxu0 0.0
  %3021 = vmatpush.msra.mxu0 0.0
  %3022 = vmatpush.msra.mxu0 0.0
  %3023 = vmatpush.msra.mxu0 0.0
  %3024 = vmatpush.msra.mxu0 0.0
  %3025 = vmatpush.msra.mxu0 0.0
  %3026 = vmatpush.msra.mxu0 0.0
  %3027 = vmatpush.msra.mxu0 0.0
  %3028 = vmatpush.msra.mxu0 0.0
  %3029 = vmatpush.msra.mxu0 0.0
  %3030 = vmatpush.msra.mxu0 %v3006
  %3031 = vmatmul.f32.gmra.mxu0 %v3013
  %v3032 = vpop.f32.mrf.mxu0
  %v3033 = vadd.f32 0.0, %v3032
  %3034 = vdwg.mxu0
  %3035 = vmatpush.msra.mxu0 0.0
  %3036 = vmatpush.msra.mxu0 0.0
  %3037 = vmatpush.msra.mxu0 0.0
  %3038 = vmatpush.msra.mxu0 0.0
  %3039 = vmatpush.msra.mxu0 0.0
  %3040 = vmatpush.msra.mxu0 0.0
  %3041 = vmatpush.msra.mxu0 0.0
  %3042 = vmatpush.msra.mxu0 0.0
  %3043 = vmatpush.msra.mxu0 0.0
  %3044 = vmatpush.msra.mxu0 0.0
  %3045 = vmatpush.msra.mxu0 0.0
  %3046 = vmatpush.msra.mxu0 0.0
  %3047 = vmatpush.msra.mxu0 0.0
  %3048 = vmatpush.msra.mxu0 0.0
  %3049 = vmatpush.msra.mxu0 0.0
  %3050 = vmatpush.msra.mxu0 %v3007
  %3051 = vmatmul.f32.gmra.mxu0 %v3013
  %v3052 = vpop.f32.mrf.mxu0
  %v3053 = vadd.f32 0.0, %v3052
  %3054 = vdwg.mxu0
  %3055 = vmatpush.msra.mxu0 0.0
  %3056 = vmatpush.msra.mxu0 0.0
  %3057 = vmatpush.msra.mxu0 0.0
  %3058 = vmatpush.msra.mxu0 0.0
  %3059 = vmatpush.msra.mxu0 0.0
  %3060 = vmatpush.msra.mxu0 0.0
  %3061 = vmatpush.msra.mxu0 0.0
  %3062 = vmatpush.msra.mxu0 0.0
  %3063 = vmatpush.msra.mxu0 0.0
  %3064 = vmatpush.msra.mxu0 0.0
  %3065 = vmatpush.msra.mxu0 0.0
  %3066 = vmatpush.msra.mxu0 0.0
  %3067 = vmatpush.msra.mxu0 0.0
  %3068 = vmatpush.msra.mxu0 0.0
  %3069 = vmatpush.msra.mxu0 0.0
  %3070 = vmatpush.msra.mxu0 %v3008
  %3071 = vmatmul.f32.gmra.mxu0 %v3013
  %v3072 = vpop.f32.mrf.mxu0
  %v3073 = vadd.f32 0.0, %v3072
  %3074 = vdwg.mxu0
  %3075 = vmatpush.msra.mxu0 0.0
  %3076 = vmatpush.msra.mxu0 0.0
  %3077 = vmatpush.msra.mxu0 0.0
  %3078 = vmatpush.msra.mxu0 0.0
  %3079 = vmatpush.msra.mxu0 0.0
  %3080 = vmatpush.msra.mxu0 0.0
  %3081 = vmatpush.msra.mxu0 0.0
  %3082 = vmatpush.msra.mxu0 0.0
  %3083 = vmatpush.msra.mxu0 0.0
  %3084 = vmatpush.msra.mxu0 0.0
  %3085 = vmatpush.msra.mxu0 0.0
  %3086 = vmatpush.msra.mxu0 0.0
  %3087 = vmatpush.msra.mxu0 0.0
  %3088 = vmatpush.msra.mxu0 0.0
  %3089 = vmatpush.msra.mxu0 0.0
  %3090 = vmatpush.msra.mxu0 %v3009
  %3091 = vmatmul.f32.gmra.mxu0 %v3013
  %v3092 = vpop.f32.mrf.mxu0
  %v3093 = vadd.f32 0.0, %v3092
  %3094 = vdwg.mxu0
  %v3095 = vadd.f32 %v2990, %v3033
  %v3096 = vadd.f32 %v2991, %v3053
  %v3097 = vadd.f32 %v2992, %v3073
  %v3098 = vadd.f32 %v2993, %v3093
  %v3099 = vmax.f32 %v3095, 0.0
  %v3100 = vmax.f32 %v3096, 0.0
  %v3101 = vmax.f32 %v3097, 0.0
  %v3102 = vmax.f32 %v3098, 0.0
  %v3103 = vadd.f32 %v3099, %v2165
  %v3104 = vadd.f32 %v3100, %v2166
  %v3105 = vadd.f32 %v3101, %v2167
  %v3106 = vadd.f32 %v3102, %v2168
  %s3107 = scalar_lea.vmem %s8, 32
  %v3108 = vld [vmem:[%s3107] sm:$0xff]
  %v3109 = vld [vmem:[%s9] sm:$0xff]
  %3111 = vset.pattern.permute.xlu0 0
  %3112 = vperm.xlu0 %3111, %v3109
  %v3113 = vpop.permute.xlu0 %3112
  %v3116 = vsel %vm1238, %v3108, 0
  %3118 = vmatpush.msra.mxu0 0.0
  %3119 = vmatpush.msra.mxu0 0.0
  %3120 = vmatpush.msra.mxu0 0.0
  %3121 = vmatpush.msra.mxu0 0.0
  %3122 = vmatpush.msra.mxu0 0.0
  %3123 = vmatpush.msra.mxu0 0.0
  %3124 = vmatpush.msra.mxu0 0.0
  %3125 = vmatpush.msra.mxu0 0.0
  %3126 = vmatpush.msra.mxu0 0.0
  %3127 = vmatpush.msra.mxu0 0.0
  %3128 = vmatpush.msra.mxu0 0.0
  %3129 = vmatpush.msra.mxu0 0.0
  %3130 = vmatpush.msra.mxu0 0.0
  %3131 = vmatpush.msra.mxu0 0.0
  %3132 = vmatpush.msra.mxu0 0.0
  %3133 = vmatpush.msra.mxu0 %v3103
  %3134 = vmatmul.f32.gmra.mxu0 %v3116
  %v3135 = vpop.f32.mrf.mxu0
  %v3136 = vadd.f32 %v3113, %v3135
  %3137 = vdwg.mxu0
  %3138 = vmatpush.msra.mxu0 0.0
  %3139 = vmatpush.msra.mxu0 0.0
  %3140 = vmatpush.msra.mxu0 0.0
  %3141 = vmatpush.msra.mxu0 0.0
  %3142 = vmatpush.msra.mxu0 0.0
  %3143 = vmatpush.msra.mxu0 0.0
  %3144 = vmatpush.msra.mxu0 0.0
  %3145 = vmatpush.msra.mxu0 0.0
  %3146 = vmatpush.msra.mxu0 0.0
  %3147 = vmatpush.msra.mxu0 0.0
  %3148 = vmatpush.msra.mxu0 0.0
  %3149 = vmatpush.msra.mxu0 0.0
  %3150 = vmatpush.msra.mxu0 0.0
  %3151 = vmatpush.msra.mxu0 0.0
  %3152 = vmatpush.msra.mxu0 0.0
  %3153 = vmatpush.msra.mxu0 %v3104
  %3154 = vmatmul.f32.gmra.mxu0 %v3116
  %v3155 = vpop.f32.mrf.mxu0
  %v3156 = vadd.f32 %v3113, %v3155
  %3157 = vdwg.mxu0
  %3158 = vmatpush.msra.mxu0 0.0
  %3159 = vmatpush.msra.mxu0 0.0
  %3160 = vmatpush.msra.mxu0 0.0
  %3161 = vmatpush.msra.mxu0 0.0
  %3162 = vmatpush.msra.mxu0 0.0
  %3163 = vmatpush.msra.mxu0 0.0
  %3164 = vmatpush.msra.mxu0 0.0
  %3165 = vmatpush.msra.mxu0 0.0
  %3166 = vmatpush.msra.mxu0 0.0
  %3167 = vmatpush.msra.mxu0 0.0
  %3168 = vmatpush.msra.mxu0 0.0
  %3169 = vmatpush.msra.mxu0 0.0
  %3170 = vmatpush.msra.mxu0 0.0
  %3171 = vmatpush.msra.mxu0 0.0
  %3172 = vmatpush.msra.mxu0 0.0
  %3173 = vmatpush.msra.mxu0 %v3105
  %3174 = vmatmul.f32.gmra.mxu0 %v3116
  %v3175 = vpop.f32.mrf.mxu0
  %v3176 = vadd.f32 %v3113, %v3175
  %3177 = vdwg.mxu0
  %3178 = vmatpush.msra.mxu0 0.0
  %3179 = vmatpush.msra.mxu0 0.0
  %3180 = vmatpush.msra.mxu0 0.0
  %3181 = vmatpush.msra.mxu0 0.0
  %3182 = vmatpush.msra.mxu0 0.0
  %3183 = vmatpush.msra.mxu0 0.0
  %3184 = vmatpush.msra.mxu0 0.0
  %3185 = vmatpush.msra.mxu0 0.0
  %3186 = vmatpush.msra.mxu0 0.0
  %3187 = vmatpush.msra.mxu0 0.0
  %3188 = vmatpush.msra.mxu0 0.0
  %3189 = vmatpush.msra.mxu0 0.0
  %3190 = vmatpush.msra.mxu0 0.0
  %3191 = vmatpush.msra.mxu0 0.0
  %3192 = vmatpush.msra.mxu0 0.0
  %3193 = vmatpush.msra.mxu0 %v3106
  %3194 = vmatmul.f32.gmra.mxu0 %v3116
  %v3195 = vpop.f32.mrf.mxu0
  %v3196 = vadd.f32 %v3113, %v3195
  %3197 = vdwg.mxu0
  %3198 = vrot.lane.b32.xlu0 %v3103, 17
  %v3199 = vpop.permute.xlu0 %3198
  %3200 = vrot.lane.b32.xlu0 %v3104, 17
  %v3201 = vpop.permute.xlu0 %3200
  %3202 = vrot.lane.b32.xlu0 %v3105, 17
  %v3203 = vpop.permute.xlu0 %3202
  %3204 = vrot.lane.b32.xlu0 %v3106, 17
  %v3205 = vpop.permute.xlu0 %3204
  %v3206 = vsel %vm182, %v3203, %v3205
  %v3207 = vsel %vm182, %v3201, %v3203
  %v3208 = vsel %vm182, %v3199, %v3201
  %v3209 = vsel %vm182, %v3205, %v3199
  %v3210 = vmul.f32 %v3209, %v187
  %v3211 = vmul.f32 %v3208, %v188
  %v3212 = vmul.f32 %v3207, %v189
  %v3213 = vmul.f32 %v3206, %v190
  %v3214 = vld [vmem:[%s8] sm:$0xff]
  %v3216 = vsel %vm1238, %v3214, 0
  %3218 = vmatpush.msra.mxu0 0.0
  %3219 = vmatpush.msra.mxu0 0.0
  %3220 = vmatpush.msra.mxu0 0.0
  %3221 = vmatpush.msra.mxu0 0.0
  %3222 = vmatpush.msra.mxu0 0.0
  %3223 = vmatpush.msra.mxu0 0.0
  %3224 = vmatpush.msra.mxu0 0.0
  %3225 = vmatpush.msra.mxu0 0.0
  %3226 = vmatpush.msra.mxu0 0.0
  %3227 = vmatpush.msra.mxu0 0.0
  %3228 = vmatpush.msra.mxu0 0.0
  %3229 = vmatpush.msra.mxu0 0.0
  %3230 = vmatpush.msra.mxu0 0.0
  %3231 = vmatpush.msra.mxu0 0.0
  %3232 = vmatpush.msra.mxu0 0.0
  %3233 = vmatpush.msra.mxu0 %v3210
  %3234 = vmatmul.f32.gmra.mxu0 %v3216
  %v3235 = vpop.f32.mrf.mxu0
  %v3236 = vadd.f32 0.0, %v3235
  %3237 = vdwg.mxu0
  %3238 = vmatpush.msra.mxu0 0.0
  %3239 = vmatpush.msra.mxu0 0.0
  %3240 = vmatpush.msra.mxu0 0.0
  %3241 = vmatpush.msra.mxu0 0.0
  %3242 = vmatpush.msra.mxu0 0.0
  %3243 = vmatpush.msra.mxu0 0.0
  %3244 = vmatpush.msra.mxu0 0.0
  %3245 = vmatpush.msra.mxu0 0.0
  %3246 = vmatpush.msra.mxu0 0.0
  %3247 = vmatpush.msra.mxu0 0.0
  %3248 = vmatpush.msra.mxu0 0.0
  %3249 = vmatpush.msra.mxu0 0.0
  %3250 = vmatpush.msra.mxu0 0.0
  %3251 = vmatpush.msra.mxu0 0.0
  %3252 = vmatpush.msra.mxu0 0.0
  %3253 = vmatpush.msra.mxu0 %v3211
  %3254 = vmatmul.f32.gmra.mxu0 %v3216
  %v3255 = vpop.f32.mrf.mxu0
  %v3256 = vadd.f32 0.0, %v3255
  %3257 = vdwg.mxu0
  %3258 = vmatpush.msra.mxu0 0.0
  %3259 = vmatpush.msra.mxu0 0.0
  %3260 = vmatpush.msra.mxu0 0.0
  %3261 = vmatpush.msra.mxu0 0.0
  %3262 = vmatpush.msra.mxu0 0.0
  %3263 = vmatpush.msra.mxu0 0.0
  %3264 = vmatpush.msra.mxu0 0.0
  %3265 = vmatpush.msra.mxu0 0.0
  %3266 = vmatpush.msra.mxu0 0.0
  %3267 = vmatpush.msra.mxu0 0.0
  %3268 = vmatpush.msra.mxu0 0.0
  %3269 = vmatpush.msra.mxu0 0.0
  %3270 = vmatpush.msra.mxu0 0.0
  %3271 = vmatpush.msra.mxu0 0.0
  %3272 = vmatpush.msra.mxu0 0.0
  %3273 = vmatpush.msra.mxu0 %v3212
  %3274 = vmatmul.f32.gmra.mxu0 %v3216
  %v3275 = vpop.f32.mrf.mxu0
  %v3276 = vadd.f32 0.0, %v3275
  %3277 = vdwg.mxu0
  %3278 = vmatpush.msra.mxu0 0.0
  %3279 = vmatpush.msra.mxu0 0.0
  %3280 = vmatpush.msra.mxu0 0.0
  %3281 = vmatpush.msra.mxu0 0.0
  %3282 = vmatpush.msra.mxu0 0.0
  %3283 = vmatpush.msra.mxu0 0.0
  %3284 = vmatpush.msra.mxu0 0.0
  %3285 = vmatpush.msra.mxu0 0.0
  %3286 = vmatpush.msra.mxu0 0.0
  %3287 = vmatpush.msra.mxu0 0.0
  %3288 = vmatpush.msra.mxu0 0.0
  %3289 = vmatpush.msra.mxu0 0.0
  %3290 = vmatpush.msra.mxu0 0.0
  %3291 = vmatpush.msra.mxu0 0.0
  %3292 = vmatpush.msra.mxu0 0.0
  %3293 = vmatpush.msra.mxu0 %v3213
  %3294 = vmatmul.f32.gmra.mxu0 %v3216
  %v3295 = vpop.f32.mrf.mxu0
  %v3296 = vadd.f32 0.0, %v3295
  %3297 = vdwg.mxu0
  %v3298 = vadd.f32 %v3136, %v3236
  %v3299 = vadd.f32 %v3156, %v3256
  %v3300 = vadd.f32 %v3176, %v3276
  %v3301 = vadd.f32 %v3196, %v3296
  %3302 = vrot.lane.b32.xlu0 %v3103, 16
  %v3303 = vpop.permute.xlu0 %3302
  %3304 = vrot.lane.b32.xlu0 %v3104, 16
  %v3305 = vpop.permute.xlu0 %3304
  %3306 = vrot.lane.b32.xlu0 %v3105, 16
  %v3307 = vpop.permute.xlu0 %3306
  %3308 = vrot.lane.b32.xlu0 %v3106, 16
  %v3309 = vpop.permute.xlu0 %3308
  %v3310 = vsel %vm314, %v3307, %v3309
  %v3311 = vsel %vm314, %v3305, %v3307
  %v3312 = vsel %vm314, %v3303, %v3305
  %v3313 = vsel %vm314, %v3309, %v3303
  %v3314 = vmul.f32 %v3313, %v319
  %v3315 = vmul.f32 %v3312, %v320
  %v3316 = vmul.f32 %v3311, %v321
  %v3317 = vmul.f32 %v3310, %v322
  %s3318 = scalar_lea.vmem %s8, 8
  %v3319 = vld [vmem:[%s3318] sm:$0xff]
  %v3321 = vsel %vm1238, %v3319, 0
  %3323 = vmatpush.msra.mxu0 0.0
  %3324 = vmatpush.msra.mxu0 0.0
  %3325 = vmatpush.msra.mxu0 0.0
  %3326 = vmatpush.msra.mxu0 0.0
  %3327 = vmatpush.msra.mxu0 0.0
  %3328 = vmatpush.msra.mxu0 0.0
  %3329 = vmatpush.msra.mxu0 0.0
  %3330 = vmatpush.msra.mxu0 0.0
  %3331 = vmatpush.msra.mxu0 0.0
  %3332 = vmatpush.msra.mxu0 0.0
  %3333 = vmatpush.msra.mxu0 0.0
  %3334 = vmatpush.msra.mxu0 0.0
  %3335 = vmatpush.msra.mxu0 0.0
  %3336 = vmatpush.msra.mxu0 0.0
  %3337 = vmatpush.msra.mxu0 0.0
  %3338 = vmatpush.msra.mxu0 %v3314
  %3339 = vmatmul.f32.gmra.mxu0 %v3321
  %v3340 = vpop.f32.mrf.mxu0
  %v3341 = vadd.f32 0.0, %v3340
  %3342 = vdwg.mxu0
  %3343 = vmatpush.msra.mxu0 0.0
  %3344 = vmatpush.msra.mxu0 0.0
  %3345 = vmatpush.msra.mxu0 0.0
  %3346 = vmatpush.msra.mxu0 0.0
  %3347 = vmatpush.msra.mxu0 0.0
  %3348 = vmatpush.msra.mxu0 0.0
  %3349 = vmatpush.msra.mxu0 0.0
  %3350 = vmatpush.msra.mxu0 0.0
  %3351 = vmatpush.msra.mxu0 0.0
  %3352 = vmatpush.msra.mxu0 0.0
  %3353 = vmatpush.msra.mxu0 0.0
  %3354 = vmatpush.msra.mxu0 0.0
  %3355 = vmatpush.msra.mxu0 0.0
  %3356 = vmatpush.msra.mxu0 0.0
  %3357 = vmatpush.msra.mxu0 0.0
  %3358 = vmatpush.msra.mxu0 %v3315
  %3359 = vmatmul.f32.gmra.mxu0 %v3321
  %v3360 = vpop.f32.mrf.mxu0
  %v3361 = vadd.f32 0.0, %v3360
  %3362 = vdwg.mxu0
  %3363 = vmatpush.msra.mxu0 0.0
  %3364 = vmatpush.msra.mxu0 0.0
  %3365 = vmatpush.msra.mxu0 0.0
  %3366 = vmatpush.msra.mxu0 0.0
  %3367 = vmatpush.msra.mxu0 0.0
  %3368 = vmatpush.msra.mxu0 0.0
  %3369 = vmatpush.msra.mxu0 0.0
  %3370 = vmatpush.msra.mxu0 0.0
  %3371 = vmatpush.msra.mxu0 0.0
  %3372 = vmatpush.msra.mxu0 0.0
  %3373 = vmatpush.msra.mxu0 0.0
  %3374 = vmatpush.msra.mxu0 0.0
  %3375 = vmatpush.msra.mxu0 0.0
  %3376 = vmatpush.msra.mxu0 0.0
  %3377 = vmatpush.msra.mxu0 0.0
  %3378 = vmatpush.msra.mxu0 %v3316
  %3379 = vmatmul.f32.gmra.mxu0 %v3321
  %v3380 = vpop.f32.mrf.mxu0
  %v3381 = vadd.f32 0.0, %v3380
  %3382 = vdwg.mxu0
  %3383 = vmatpush.msra.mxu0 0.0
  %3384 = vmatpush.msra.mxu0 0.0
  %3385 = vmatpush.msra.mxu0 0.0
  %3386 = vmatpush.msra.mxu0 0.0
  %3387 = vmatpush.msra.mxu0 0.0
  %3388 = vmatpush.msra.mxu0 0.0
  %3389 = vmatpush.msra.mxu0 0.0
  %3390 = vmatpush.msra.mxu0 0.0
  %3391 = vmatpush.msra.mxu0 0.0
  %3392 = vmatpush.msra.mxu0 0.0
  %3393 = vmatpush.msra.mxu0 0.0
  %3394 = vmatpush.msra.mxu0 0.0
  %3395 = vmatpush.msra.mxu0 0.0
  %3396 = vmatpush.msra.mxu0 0.0
  %3397 = vmatpush.msra.mxu0 0.0
  %3398 = vmatpush.msra.mxu0 %v3317
  %3399 = vmatmul.f32.gmra.mxu0 %v3321
  %v3400 = vpop.f32.mrf.mxu0
  %v3401 = vadd.f32 0.0, %v3400
  %3402 = vdwg.mxu0
  %v3403 = vadd.f32 %v3298, %v3341
  %v3404 = vadd.f32 %v3299, %v3361
  %v3405 = vadd.f32 %v3300, %v3381
  %v3406 = vadd.f32 %v3301, %v3401
  %3407 = vrot.lane.b32.xlu0 %v3103, 15
  %v3408 = vpop.permute.xlu0 %3407
  %3409 = vrot.lane.b32.xlu0 %v3104, 15
  %v3410 = vpop.permute.xlu0 %3409
  %3411 = vrot.lane.b32.xlu0 %v3105, 15
  %v3412 = vpop.permute.xlu0 %3411
  %3413 = vrot.lane.b32.xlu0 %v3106, 15
  %v3414 = vpop.permute.xlu0 %3413
  %v3415 = vsel %vm447, %v3412, %v3414
  %v3416 = vsel %vm447, %v3410, %v3412
  %v3417 = vsel %vm447, %v3408, %v3410
  %v3418 = vsel %vm447, %v3414, %v3408
  %v3419 = vmul.f32 %v3418, %v452
  %v3420 = vmul.f32 %v3417, %v453
  %v3421 = vmul.f32 %v3416, %v454
  %v3422 = vmul.f32 %v3415, %v455
  %s3423 = scalar_lea.vmem %s8, 16
  %v3424 = vld [vmem:[%s3423] sm:$0xff]
  %v3426 = vsel %vm1238, %v3424, 0
  %3428 = vmatpush.msra.mxu0 0.0
  %3429 = vmatpush.msra.mxu0 0.0
  %3430 = vmatpush.msra.mxu0 0.0
  %3431 = vmatpush.msra.mxu0 0.0
  %3432 = vmatpush.msra.mxu0 0.0
  %3433 = vmatpush.msra.mxu0 0.0
  %3434 = vmatpush.msra.mxu0 0.0
  %3435 = vmatpush.msra.mxu0 0.0
  %3436 = vmatpush.msra.mxu0 0.0
  %3437 = vmatpush.msra.mxu0 0.0
  %3438 = vmatpush.msra.mxu0 0.0
  %3439 = vmatpush.msra.mxu0 0.0
  %3440 = vmatpush.msra.mxu0 0.0
  %3441 = vmatpush.msra.mxu0 0.0
  %3442 = vmatpush.msra.mxu0 0.0
  %3443 = vmatpush.msra.mxu0 %v3419
  %3444 = vmatmul.f32.gmra.mxu0 %v3426
  %v3445 = vpop.f32.mrf.mxu0
  %v3446 = vadd.f32 0.0, %v3445
  %3447 = vdwg.mxu0
  %3448 = vmatpush.msra.mxu0 0.0
  %3449 = vmatpush.msra.mxu0 0.0
  %3450 = vmatpush.msra.mxu0 0.0
  %3451 = vmatpush.msra.mxu0 0.0
  %3452 = vmatpush.msra.mxu0 0.0
  %3453 = vmatpush.msra.mxu0 0.0
  %3454 = vmatpush.msra.mxu0 0.0
  %3455 = vmatpush.msra.mxu0 0.0
  %3456 = vmatpush.msra.mxu0 0.0
  %3457 = vmatpush.msra.mxu0 0.0
  %3458 = vmatpush.msra.mxu0 0.0
  %3459 = vmatpush.msra.mxu0 0.0
  %3460 = vmatpush.msra.mxu0 0.0
  %3461 = vmatpush.msra.mxu0 0.0
  %3462 = vmatpush.msra.mxu0 0.0
  %3463 = vmatpush.msra.mxu0 %v3420
  %3464 = vmatmul.f32.gmra.mxu0 %v3426
  %v3465 = vpop.f32.mrf.mxu0
  %v3466 = vadd.f32 0.0, %v3465
  %3467 = vdwg.mxu0
  %3468 = vmatpush.msra.mxu0 0.0
  %3469 = vmatpush.msra.mxu0 0.0
  %3470 = vmatpush.msra.mxu0 0.0
  %3471 = vmatpush.msra.mxu0 0.0
  %3472 = vmatpush.msra.mxu0 0.0
  %3473 = vmatpush.msra.mxu0 0.0
  %3474 = vmatpush.msra.mxu0 0.0
  %3475 = vmatpush.msra.mxu0 0.0
  %3476 = vmatpush.msra.mxu0 0.0
  %3477 = vmatpush.msra.mxu0 0.0
  %3478 = vmatpush.msra.mxu0 0.0
  %3479 = vmatpush.msra.mxu0 0.0
  %3480 = vmatpush.msra.mxu0 0.0
  %3481 = vmatpush.msra.mxu0 0.0
  %3482 = vmatpush.msra.mxu0 0.0
  %3483 = vmatpush.msra.mxu0 %v3421
  %3484 = vmatmul.f32.gmra.mxu0 %v3426
  %v3485 = vpop.f32.mrf.mxu0
  %v3486 = vadd.f32 0.0, %v3485
  %3487 = vdwg.mxu0
  %3488 = vmatpush.msra.mxu0 0.0
  %3489 = vmatpush.msra.mxu0 0.0
  %3490 = vmatpush.msra.mxu0 0.0
  %3491 = vmatpush.msra.mxu0 0.0
  %3492 = vmatpush.msra.mxu0 0.0
  %3493 = vmatpush.msra.mxu0 0.0
  %3494 = vmatpush.msra.mxu0 0.0
  %3495 = vmatpush.msra.mxu0 0.0
  %3496 = vmatpush.msra.mxu0 0.0
  %3497 = vmatpush.msra.mxu0 0.0
  %3498 = vmatpush.msra.mxu0 0.0
  %3499 = vmatpush.msra.mxu0 0.0
  %3500 = vmatpush.msra.mxu0 0.0
  %3501 = vmatpush.msra.mxu0 0.0
  %3502 = vmatpush.msra.mxu0 0.0
  %3503 = vmatpush.msra.mxu0 %v3422
  %3504 = vmatmul.f32.gmra.mxu0 %v3426
  %v3505 = vpop.f32.mrf.mxu0
  %v3506 = vadd.f32 0.0, %v3505
  %3507 = vdwg.mxu0
  %v3508 = vadd.f32 %v3403, %v3446
  %v3509 = vadd.f32 %v3404, %v3466
  %v3510 = vadd.f32 %v3405, %v3486
  %v3511 = vadd.f32 %v3406, %v3506
  %3512 = vrot.lane.b32.xlu0 %v3103, 1
  %v3513 = vpop.permute.xlu0 %3512
  %3514 = vrot.lane.b32.xlu0 %v3104, 1
  %v3515 = vpop.permute.xlu0 %3514
  %3516 = vrot.lane.b32.xlu0 %v3105, 1
  %v3517 = vpop.permute.xlu0 %3516
  %3518 = vrot.lane.b32.xlu0 %v3106, 1
  %v3519 = vpop.permute.xlu0 %3518
  %v3520 = vsel %vm580, %v3517, %v3519
  %v3521 = vsel %vm580, %v3515, %v3517
  %v3522 = vsel %vm580, %v3513, %v3515
  %v3523 = vsel %vm580, %v3519, %v3513
  %v3524 = vmul.f32 %v3523, %v585
  %v3525 = vmul.f32 %v3522, %v586
  %v3526 = vmul.f32 %v3521, %v587
  %v3527 = vmul.f32 %v3520, %v588
  %s3528 = scalar_lea.vmem %s8, 24
  %v3529 = vld [vmem:[%s3528] sm:$0xff]
  %v3531 = vsel %vm1238, %v3529, 0
  %3533 = vmatpush.msra.mxu0 0.0
  %3534 = vmatpush.msra.mxu0 0.0
  %3535 = vmatpush.msra.mxu0 0.0
  %3536 = vmatpush.msra.mxu0 0.0
  %3537 = vmatpush.msra.mxu0 0.0
  %3538 = vmatpush.msra.mxu0 0.0
  %3539 = vmatpush.msra.mxu0 0.0
  %3540 = vmatpush.msra.mxu0 0.0
  %3541 = vmatpush.msra.mxu0 0.0
  %3542 = vmatpush.msra.mxu0 0.0
  %3543 = vmatpush.msra.mxu0 0.0
  %3544 = vmatpush.msra.mxu0 0.0
  %3545 = vmatpush.msra.mxu0 0.0
  %3546 = vmatpush.msra.mxu0 0.0
  %3547 = vmatpush.msra.mxu0 0.0
  %3548 = vmatpush.msra.mxu0 %v3524
  %3549 = vmatmul.f32.gmra.mxu0 %v3531
  %v3550 = vpop.f32.mrf.mxu0
  %v3551 = vadd.f32 0.0, %v3550
  %3552 = vdwg.mxu0
  %3553 = vmatpush.msra.mxu0 0.0
  %3554 = vmatpush.msra.mxu0 0.0
  %3555 = vmatpush.msra.mxu0 0.0
  %3556 = vmatpush.msra.mxu0 0.0
  %3557 = vmatpush.msra.mxu0 0.0
  %3558 = vmatpush.msra.mxu0 0.0
  %3559 = vmatpush.msra.mxu0 0.0
  %3560 = vmatpush.msra.mxu0 0.0
  %3561 = vmatpush.msra.mxu0 0.0
  %3562 = vmatpush.msra.mxu0 0.0
  %3563 = vmatpush.msra.mxu0 0.0
  %3564 = vmatpush.msra.mxu0 0.0
  %3565 = vmatpush.msra.mxu0 0.0
  %3566 = vmatpush.msra.mxu0 0.0
  %3567 = vmatpush.msra.mxu0 0.0
  %3568 = vmatpush.msra.mxu0 %v3525
  %3569 = vmatmul.f32.gmra.mxu0 %v3531
  %v3570 = vpop.f32.mrf.mxu0
  %v3571 = vadd.f32 0.0, %v3570
  %3572 = vdwg.mxu0
  %3573 = vmatpush.msra.mxu0 0.0
  %3574 = vmatpush.msra.mxu0 0.0
  %3575 = vmatpush.msra.mxu0 0.0
  %3576 = vmatpush.msra.mxu0 0.0
  %3577 = vmatpush.msra.mxu0 0.0
  %3578 = vmatpush.msra.mxu0 0.0
  %3579 = vmatpush.msra.mxu0 0.0
  %3580 = vmatpush.msra.mxu0 0.0
  %3581 = vmatpush.msra.mxu0 0.0
  %3582 = vmatpush.msra.mxu0 0.0
  %3583 = vmatpush.msra.mxu0 0.0
  %3584 = vmatpush.msra.mxu0 0.0
  %3585 = vmatpush.msra.mxu0 0.0
  %3586 = vmatpush.msra.mxu0 0.0
  %3587 = vmatpush.msra.mxu0 0.0
  %3588 = vmatpush.msra.mxu0 %v3526
  %3589 = vmatmul.f32.gmra.mxu0 %v3531
  %v3590 = vpop.f32.mrf.mxu0
  %v3591 = vadd.f32 0.0, %v3590
  %3592 = vdwg.mxu0
  %3593 = vmatpush.msra.mxu0 0.0
  %3594 = vmatpush.msra.mxu0 0.0
  %3595 = vmatpush.msra.mxu0 0.0
  %3596 = vmatpush.msra.mxu0 0.0
  %3597 = vmatpush.msra.mxu0 0.0
  %3598 = vmatpush.msra.mxu0 0.0
  %3599 = vmatpush.msra.mxu0 0.0
  %3600 = vmatpush.msra.mxu0 0.0
  %3601 = vmatpush.msra.mxu0 0.0
  %3602 = vmatpush.msra.mxu0 0.0
  %3603 = vmatpush.msra.mxu0 0.0
  %3604 = vmatpush.msra.mxu0 0.0
  %3605 = vmatpush.msra.mxu0 0.0
  %3606 = vmatpush.msra.mxu0 0.0
  %3607 = vmatpush.msra.mxu0 0.0
  %3608 = vmatpush.msra.mxu0 %v3527
  %3609 = vmatmul.f32.gmra.mxu0 %v3531
  %v3610 = vpop.f32.mrf.mxu0
  %v3611 = vadd.f32 0.0, %v3610
  %3612 = vdwg.mxu0
  %v3613 = vadd.f32 %v3508, %v3551
  %v3614 = vadd.f32 %v3509, %v3571
  %v3615 = vadd.f32 %v3510, %v3591
  %v3616 = vadd.f32 %v3511, %v3611
  %3617 = vrot.lane.b32.xlu0 %v3103, 127
  %v3618 = vpop.permute.xlu0 %3617
  %3619 = vrot.lane.b32.xlu0 %v3104, 127
  %v3620 = vpop.permute.xlu0 %3619
  %3621 = vrot.lane.b32.xlu0 %v3105, 127
  %v3622 = vpop.permute.xlu0 %3621
  %3623 = vrot.lane.b32.xlu0 %v3106, 127
  %v3624 = vpop.permute.xlu0 %3623
  %v3625 = vsel %vm713, %v3622, %v3624
  %v3626 = vsel %vm713, %v3620, %v3622
  %v3627 = vsel %vm713, %v3618, %v3620
  %v3628 = vsel %vm713, %v3624, %v3618
  %v3629 = vmul.f32 %v3627, %v718
  %v3630 = vmul.f32 %v3626, %v719
  %v3631 = vmul.f32 %v3625, %v720
  %v3632 = vmul.f32 %v3628, %v721
  %s3633 = scalar_lea.vmem %s8, 40
  %v3634 = vld [vmem:[%s3633] sm:$0xff]
  %v3636 = vsel %vm1238, %v3634, 0
  %3638 = vmatpush.msra.mxu0 0.0
  %3639 = vmatpush.msra.mxu0 0.0
  %3640 = vmatpush.msra.mxu0 0.0
  %3641 = vmatpush.msra.mxu0 0.0
  %3642 = vmatpush.msra.mxu0 0.0
  %3643 = vmatpush.msra.mxu0 0.0
  %3644 = vmatpush.msra.mxu0 0.0
  %3645 = vmatpush.msra.mxu0 0.0
  %3646 = vmatpush.msra.mxu0 0.0
  %3647 = vmatpush.msra.mxu0 0.0
  %3648 = vmatpush.msra.mxu0 0.0
  %3649 = vmatpush.msra.mxu0 0.0
  %3650 = vmatpush.msra.mxu0 0.0
  %3651 = vmatpush.msra.mxu0 0.0
  %3652 = vmatpush.msra.mxu0 0.0
  %3653 = vmatpush.msra.mxu0 %v3629
  %3654 = vmatmul.f32.gmra.mxu0 %v3636
  %v3655 = vpop.f32.mrf.mxu0
  %v3656 = vadd.f32 0.0, %v3655
  %3657 = vdwg.mxu0
  %3658 = vmatpush.msra.mxu0 0.0
  %3659 = vmatpush.msra.mxu0 0.0
  %3660 = vmatpush.msra.mxu0 0.0
  %3661 = vmatpush.msra.mxu0 0.0
  %3662 = vmatpush.msra.mxu0 0.0
  %3663 = vmatpush.msra.mxu0 0.0
  %3664 = vmatpush.msra.mxu0 0.0
  %3665 = vmatpush.msra.mxu0 0.0
  %3666 = vmatpush.msra.mxu0 0.0
  %3667 = vmatpush.msra.mxu0 0.0
  %3668 = vmatpush.msra.mxu0 0.0
  %3669 = vmatpush.msra.mxu0 0.0
  %3670 = vmatpush.msra.mxu0 0.0
  %3671 = vmatpush.msra.mxu0 0.0
  %3672 = vmatpush.msra.mxu0 0.0
  %3673 = vmatpush.msra.mxu0 %v3630
  %3674 = vmatmul.f32.gmra.mxu0 %v3636
  %v3675 = vpop.f32.mrf.mxu0
  %v3676 = vadd.f32 0.0, %v3675
  %3677 = vdwg.mxu0
  %3678 = vmatpush.msra.mxu0 0.0
  %3679 = vmatpush.msra.mxu0 0.0
  %3680 = vmatpush.msra.mxu0 0.0
  %3681 = vmatpush.msra.mxu0 0.0
  %3682 = vmatpush.msra.mxu0 0.0
  %3683 = vmatpush.msra.mxu0 0.0
  %3684 = vmatpush.msra.mxu0 0.0
  %3685 = vmatpush.msra.mxu0 0.0
  %3686 = vmatpush.msra.mxu0 0.0
  %3687 = vmatpush.msra.mxu0 0.0
  %3688 = vmatpush.msra.mxu0 0.0
  %3689 = vmatpush.msra.mxu0 0.0
  %3690 = vmatpush.msra.mxu0 0.0
  %3691 = vmatpush.msra.mxu0 0.0
  %3692 = vmatpush.msra.mxu0 0.0
  %3693 = vmatpush.msra.mxu0 %v3631
  %3694 = vmatmul.f32.gmra.mxu0 %v3636
  %v3695 = vpop.f32.mrf.mxu0
  %v3696 = vadd.f32 0.0, %v3695
  %3697 = vdwg.mxu0
  %3698 = vmatpush.msra.mxu0 0.0
  %3699 = vmatpush.msra.mxu0 0.0
  %3700 = vmatpush.msra.mxu0 0.0
  %3701 = vmatpush.msra.mxu0 0.0
  %3702 = vmatpush.msra.mxu0 0.0
  %3703 = vmatpush.msra.mxu0 0.0
  %3704 = vmatpush.msra.mxu0 0.0
  %3705 = vmatpush.msra.mxu0 0.0
  %3706 = vmatpush.msra.mxu0 0.0
  %3707 = vmatpush.msra.mxu0 0.0
  %3708 = vmatpush.msra.mxu0 0.0
  %3709 = vmatpush.msra.mxu0 0.0
  %3710 = vmatpush.msra.mxu0 0.0
  %3711 = vmatpush.msra.mxu0 0.0
  %3712 = vmatpush.msra.mxu0 0.0
  %3713 = vmatpush.msra.mxu0 %v3632
  %3714 = vmatmul.f32.gmra.mxu0 %v3636
  %v3715 = vpop.f32.mrf.mxu0
  %v3716 = vadd.f32 0.0, %v3715
  %3717 = vdwg.mxu0
  %v3718 = vadd.f32 %v3613, %v3656
  %v3719 = vadd.f32 %v3614, %v3676
  %v3720 = vadd.f32 %v3615, %v3696
  %v3721 = vadd.f32 %v3616, %v3716
  %3722 = vrot.lane.b32.xlu0 %v3103, 113
  %v3723 = vpop.permute.xlu0 %3722
  %3724 = vrot.lane.b32.xlu0 %v3104, 113
  %v3725 = vpop.permute.xlu0 %3724
  %3726 = vrot.lane.b32.xlu0 %v3105, 113
  %v3727 = vpop.permute.xlu0 %3726
  %3728 = vrot.lane.b32.xlu0 %v3106, 113
  %v3729 = vpop.permute.xlu0 %3728
  %v3730 = vsel %vm846, %v3727, %v3729
  %v3731 = vsel %vm846, %v3725, %v3727
  %v3732 = vsel %vm846, %v3723, %v3725
  %v3733 = vsel %vm846, %v3729, %v3723
  %v3734 = vmul.f32 %v3732, %v851
  %v3735 = vmul.f32 %v3731, %v852
  %v3736 = vmul.f32 %v3730, %v853
  %v3737 = vmul.f32 %v3733, %v854
  %s3738 = scalar_lea.vmem %s8, 48
  %v3739 = vld [vmem:[%s3738] sm:$0xff]
  %v3741 = vsel %vm1238, %v3739, 0
  %3743 = vmatpush.msra.mxu0 0.0
  %3744 = vmatpush.msra.mxu0 0.0
  %3745 = vmatpush.msra.mxu0 0.0
  %3746 = vmatpush.msra.mxu0 0.0
  %3747 = vmatpush.msra.mxu0 0.0
  %3748 = vmatpush.msra.mxu0 0.0
  %3749 = vmatpush.msra.mxu0 0.0
  %3750 = vmatpush.msra.mxu0 0.0
  %3751 = vmatpush.msra.mxu0 0.0
  %3752 = vmatpush.msra.mxu0 0.0
  %3753 = vmatpush.msra.mxu0 0.0
  %3754 = vmatpush.msra.mxu0 0.0
  %3755 = vmatpush.msra.mxu0 0.0
  %3756 = vmatpush.msra.mxu0 0.0
  %3757 = vmatpush.msra.mxu0 0.0
  %3758 = vmatpush.msra.mxu0 %v3734
  %3759 = vmatmul.f32.gmra.mxu0 %v3741
  %v3760 = vpop.f32.mrf.mxu0
  %v3761 = vadd.f32 0.0, %v3760
  %3762 = vdwg.mxu0
  %3763 = vmatpush.msra.mxu0 0.0
  %3764 = vmatpush.msra.mxu0 0.0
  %3765 = vmatpush.msra.mxu0 0.0
  %3766 = vmatpush.msra.mxu0 0.0
  %3767 = vmatpush.msra.mxu0 0.0
  %3768 = vmatpush.msra.mxu0 0.0
  %3769 = vmatpush.msra.mxu0 0.0
  %3770 = vmatpush.msra.mxu0 0.0
  %3771 = vmatpush.msra.mxu0 0.0
  %3772 = vmatpush.msra.mxu0 0.0
  %3773 = vmatpush.msra.mxu0 0.0
  %3774 = vmatpush.msra.mxu0 0.0
  %3775 = vmatpush.msra.mxu0 0.0
  %3776 = vmatpush.msra.mxu0 0.0
  %3777 = vmatpush.msra.mxu0 0.0
  %3778 = vmatpush.msra.mxu0 %v3735
  %3779 = vmatmul.f32.gmra.mxu0 %v3741
  %v3780 = vpop.f32.mrf.mxu0
  %v3781 = vadd.f32 0.0, %v3780
  %3782 = vdwg.mxu0
  %3783 = vmatpush.msra.mxu0 0.0
  %3784 = vmatpush.msra.mxu0 0.0
  %3785 = vmatpush.msra.mxu0 0.0
  %3786 = vmatpush.msra.mxu0 0.0
  %3787 = vmatpush.msra.mxu0 0.0
  %3788 = vmatpush.msra.mxu0 0.0
  %3789 = vmatpush.msra.mxu0 0.0
  %3790 = vmatpush.msra.mxu0 0.0
  %3791 = vmatpush.msra.mxu0 0.0
  %3792 = vmatpush.msra.mxu0 0.0
  %3793 = vmatpush.msra.mxu0 0.0
  %3794 = vmatpush.msra.mxu0 0.0
  %3795 = vmatpush.msra.mxu0 0.0
  %3796 = vmatpush.msra.mxu0 0.0
  %3797 = vmatpush.msra.mxu0 0.0
  %3798 = vmatpush.msra.mxu0 %v3736
  %3799 = vmatmul.f32.gmra.mxu0 %v3741
  %v3800 = vpop.f32.mrf.mxu0
  %v3801 = vadd.f32 0.0, %v3800
  %3802 = vdwg.mxu0
  %3803 = vmatpush.msra.mxu0 0.0
  %3804 = vmatpush.msra.mxu0 0.0
  %3805 = vmatpush.msra.mxu0 0.0
  %3806 = vmatpush.msra.mxu0 0.0
  %3807 = vmatpush.msra.mxu0 0.0
  %3808 = vmatpush.msra.mxu0 0.0
  %3809 = vmatpush.msra.mxu0 0.0
  %3810 = vmatpush.msra.mxu0 0.0
  %3811 = vmatpush.msra.mxu0 0.0
  %3812 = vmatpush.msra.mxu0 0.0
  %3813 = vmatpush.msra.mxu0 0.0
  %3814 = vmatpush.msra.mxu0 0.0
  %3815 = vmatpush.msra.mxu0 0.0
  %3816 = vmatpush.msra.mxu0 0.0
  %3817 = vmatpush.msra.mxu0 0.0
  %3818 = vmatpush.msra.mxu0 %v3737
  %3819 = vmatmul.f32.gmra.mxu0 %v3741
  %v3820 = vpop.f32.mrf.mxu0
  %v3821 = vadd.f32 0.0, %v3820
  %3822 = vdwg.mxu0
  %v3823 = vadd.f32 %v3718, %v3761
  %v3824 = vadd.f32 %v3719, %v3781
  %v3825 = vadd.f32 %v3720, %v3801
  %v3826 = vadd.f32 %v3721, %v3821
  %3827 = vrot.lane.b32.xlu0 %v3103, 112
  %v3828 = vpop.permute.xlu0 %3827
  %3829 = vrot.lane.b32.xlu0 %v3104, 112
  %v3830 = vpop.permute.xlu0 %3829
  %3831 = vrot.lane.b32.xlu0 %v3105, 112
  %v3832 = vpop.permute.xlu0 %3831
  %3833 = vrot.lane.b32.xlu0 %v3106, 112
  %v3834 = vpop.permute.xlu0 %3833
  %v3835 = vsel %vm979, %v3832, %v3834
  %v3836 = vsel %vm979, %v3830, %v3832
  %v3837 = vsel %vm979, %v3828, %v3830
  %v3838 = vsel %vm979, %v3834, %v3828
  %v3839 = vmul.f32 %v3837, %v984
  %v3840 = vmul.f32 %v3836, %v985
  %v3841 = vmul.f32 %v3835, %v986
  %v3842 = vmul.f32 %v3838, %v987
  %s3843 = scalar_lea.vmem %s8, 56
  %v3844 = vld [vmem:[%s3843] sm:$0xff]
  %v3846 = vsel %vm1238, %v3844, 0
  %3848 = vmatpush.msra.mxu0 0.0
  %3849 = vmatpush.msra.mxu0 0.0
  %3850 = vmatpush.msra.mxu0 0.0
  %3851 = vmatpush.msra.mxu0 0.0
  %3852 = vmatpush.msra.mxu0 0.0
  %3853 = vmatpush.msra.mxu0 0.0
  %3854 = vmatpush.msra.mxu0 0.0
  %3855 = vmatpush.msra.mxu0 0.0
  %3856 = vmatpush.msra.mxu0 0.0
  %3857 = vmatpush.msra.mxu0 0.0
  %3858 = vmatpush.msra.mxu0 0.0
  %3859 = vmatpush.msra.mxu0 0.0
  %3860 = vmatpush.msra.mxu0 0.0
  %3861 = vmatpush.msra.mxu0 0.0
  %3862 = vmatpush.msra.mxu0 0.0
  %3863 = vmatpush.msra.mxu0 %v3839
  %3864 = vmatmul.f32.gmra.mxu0 %v3846
  %v3865 = vpop.f32.mrf.mxu0
  %v3866 = vadd.f32 0.0, %v3865
  %3867 = vdwg.mxu0
  %3868 = vmatpush.msra.mxu0 0.0
  %3869 = vmatpush.msra.mxu0 0.0
  %3870 = vmatpush.msra.mxu0 0.0
  %3871 = vmatpush.msra.mxu0 0.0
  %3872 = vmatpush.msra.mxu0 0.0
  %3873 = vmatpush.msra.mxu0 0.0
  %3874 = vmatpush.msra.mxu0 0.0
  %3875 = vmatpush.msra.mxu0 0.0
  %3876 = vmatpush.msra.mxu0 0.0
  %3877 = vmatpush.msra.mxu0 0.0
  %3878 = vmatpush.msra.mxu0 0.0
  %3879 = vmatpush.msra.mxu0 0.0
  %3880 = vmatpush.msra.mxu0 0.0
  %3881 = vmatpush.msra.mxu0 0.0
  %3882 = vmatpush.msra.mxu0 0.0
  %3883 = vmatpush.msra.mxu0 %v3840
  %3884 = vmatmul.f32.gmra.mxu0 %v3846
  %v3885 = vpop.f32.mrf.mxu0
  %v3886 = vadd.f32 0.0, %v3885
  %3887 = vdwg.mxu0
  %3888 = vmatpush.msra.mxu0 0.0
  %3889 = vmatpush.msra.mxu0 0.0
  %3890 = vmatpush.msra.mxu0 0.0
  %3891 = vmatpush.msra.mxu0 0.0
  %3892 = vmatpush.msra.mxu0 0.0
  %3893 = vmatpush.msra.mxu0 0.0
  %3894 = vmatpush.msra.mxu0 0.0
  %3895 = vmatpush.msra.mxu0 0.0
  %3896 = vmatpush.msra.mxu0 0.0
  %3897 = vmatpush.msra.mxu0 0.0
  %3898 = vmatpush.msra.mxu0 0.0
  %3899 = vmatpush.msra.mxu0 0.0
  %3900 = vmatpush.msra.mxu0 0.0
  %3901 = vmatpush.msra.mxu0 0.0
  %3902 = vmatpush.msra.mxu0 0.0
  %3903 = vmatpush.msra.mxu0 %v3841
  %3904 = vmatmul.f32.gmra.mxu0 %v3846
  %v3905 = vpop.f32.mrf.mxu0
  %v3906 = vadd.f32 0.0, %v3905
  %3907 = vdwg.mxu0
  %3908 = vmatpush.msra.mxu0 0.0
  %3909 = vmatpush.msra.mxu0 0.0
  %3910 = vmatpush.msra.mxu0 0.0
  %3911 = vmatpush.msra.mxu0 0.0
  %3912 = vmatpush.msra.mxu0 0.0
  %3913 = vmatpush.msra.mxu0 0.0
  %3914 = vmatpush.msra.mxu0 0.0
  %3915 = vmatpush.msra.mxu0 0.0
  %3916 = vmatpush.msra.mxu0 0.0
  %3917 = vmatpush.msra.mxu0 0.0
  %3918 = vmatpush.msra.mxu0 0.0
  %3919 = vmatpush.msra.mxu0 0.0
  %3920 = vmatpush.msra.mxu0 0.0
  %3921 = vmatpush.msra.mxu0 0.0
  %3922 = vmatpush.msra.mxu0 0.0
  %3923 = vmatpush.msra.mxu0 %v3842
  %3924 = vmatmul.f32.gmra.mxu0 %v3846
  %v3925 = vpop.f32.mrf.mxu0
  %v3926 = vadd.f32 0.0, %v3925
  %3927 = vdwg.mxu0
  %v3928 = vadd.f32 %v3823, %v3866
  %v3929 = vadd.f32 %v3824, %v3886
  %v3930 = vadd.f32 %v3825, %v3906
  %v3931 = vadd.f32 %v3826, %v3926
  %3932 = vrot.lane.b32.xlu0 %v3103, 111
  %v3933 = vpop.permute.xlu0 %3932
  %3934 = vrot.lane.b32.xlu0 %v3104, 111
  %v3935 = vpop.permute.xlu0 %3934
  %3936 = vrot.lane.b32.xlu0 %v3105, 111
  %v3937 = vpop.permute.xlu0 %3936
  %3938 = vrot.lane.b32.xlu0 %v3106, 111
  %v3939 = vpop.permute.xlu0 %3938
  %v3940 = vsel %vm1112, %v3937, %v3939
  %v3941 = vsel %vm1112, %v3935, %v3937
  %v3942 = vsel %vm1112, %v3933, %v3935
  %v3943 = vsel %vm1112, %v3939, %v3933
  %v3944 = vmul.f32 %v3942, %v1117
  %v3945 = vmul.f32 %v3941, %v1118
  %v3946 = vmul.f32 %v3940, %v1119
  %v3947 = vmul.f32 %v3943, %v1120
  %s3948 = scalar_lea.vmem %s8, 64
  %v3949 = vld [vmem:[%s3948] sm:$0xff]
  %v3951 = vsel %vm1238, %v3949, 0
  %3953 = vmatpush.msra.mxu0 0.0
  %3954 = vmatpush.msra.mxu0 0.0
  %3955 = vmatpush.msra.mxu0 0.0
  %3956 = vmatpush.msra.mxu0 0.0
  %3957 = vmatpush.msra.mxu0 0.0
  %3958 = vmatpush.msra.mxu0 0.0
  %3959 = vmatpush.msra.mxu0 0.0
  %3960 = vmatpush.msra.mxu0 0.0
  %3961 = vmatpush.msra.mxu0 0.0
  %3962 = vmatpush.msra.mxu0 0.0
  %3963 = vmatpush.msra.mxu0 0.0
  %3964 = vmatpush.msra.mxu0 0.0
  %3965 = vmatpush.msra.mxu0 0.0
  %3966 = vmatpush.msra.mxu0 0.0
  %3967 = vmatpush.msra.mxu0 0.0
  %3968 = vmatpush.msra.mxu0 %v3944
  %3969 = vmatmul.f32.gmra.mxu0 %v3951
  %v3970 = vpop.f32.mrf.mxu0
  %v3971 = vadd.f32 0.0, %v3970
  %3972 = vdwg.mxu0
  %3973 = vmatpush.msra.mxu0 0.0
  %3974 = vmatpush.msra.mxu0 0.0
  %3975 = vmatpush.msra.mxu0 0.0
  %3976 = vmatpush.msra.mxu0 0.0
  %3977 = vmatpush.msra.mxu0 0.0
  %3978 = vmatpush.msra.mxu0 0.0
  %3979 = vmatpush.msra.mxu0 0.0
  %3980 = vmatpush.msra.mxu0 0.0
  %3981 = vmatpush.msra.mxu0 0.0
  %3982 = vmatpush.msra.mxu0 0.0
  %3983 = vmatpush.msra.mxu0 0.0
  %3984 = vmatpush.msra.mxu0 0.0
  %3985 = vmatpush.msra.mxu0 0.0
  %3986 = vmatpush.msra.mxu0 0.0
  %3987 = vmatpush.msra.mxu0 0.0
  %3988 = vmatpush.msra.mxu0 %v3945
  %3989 = vmatmul.f32.gmra.mxu0 %v3951
  %v3990 = vpop.f32.mrf.mxu0
  %v3991 = vadd.f32 0.0, %v3990
  %3992 = vdwg.mxu0
  %3993 = vmatpush.msra.mxu0 0.0
  %3994 = vmatpush.msra.mxu0 0.0
  %3995 = vmatpush.msra.mxu0 0.0
  %3996 = vmatpush.msra.mxu0 0.0
  %3997 = vmatpush.msra.mxu0 0.0
  %3998 = vmatpush.msra.mxu0 0.0
  %3999 = vmatpush.msra.mxu0 0.0
  %4000 = vmatpush.msra.mxu0 0.0
  %4001 = vmatpush.msra.mxu0 0.0
  %4002 = vmatpush.msra.mxu0 0.0
  %4003 = vmatpush.msra.mxu0 0.0
  %4004 = vmatpush.msra.mxu0 0.0
  %4005 = vmatpush.msra.mxu0 0.0
  %4006 = vmatpush.msra.mxu0 0.0
  %4007 = vmatpush.msra.mxu0 0.0
  %4008 = vmatpush.msra.mxu0 %v3946
  %4009 = vmatmul.f32.gmra.mxu0 %v3951
  %v4010 = vpop.f32.mrf.mxu0
  %v4011 = vadd.f32 0.0, %v4010
  %4012 = vdwg.mxu0
  %4013 = vmatpush.msra.mxu0 0.0
  %4014 = vmatpush.msra.mxu0 0.0
  %4015 = vmatpush.msra.mxu0 0.0
  %4016 = vmatpush.msra.mxu0 0.0
  %4017 = vmatpush.msra.mxu0 0.0
  %4018 = vmatpush.msra.mxu0 0.0
  %4019 = vmatpush.msra.mxu0 0.0
  %4020 = vmatpush.msra.mxu0 0.0
  %4021 = vmatpush.msra.mxu0 0.0
  %4022 = vmatpush.msra.mxu0 0.0
  %4023 = vmatpush.msra.mxu0 0.0
  %4024 = vmatpush.msra.mxu0 0.0
  %4025 = vmatpush.msra.mxu0 0.0
  %4026 = vmatpush.msra.mxu0 0.0
  %4027 = vmatpush.msra.mxu0 0.0
  %4028 = vmatpush.msra.mxu0 %v3947
  %4029 = vmatmul.f32.gmra.mxu0 %v3951
  %v4030 = vpop.f32.mrf.mxu0
  %v4031 = vadd.f32 0.0, %v4030
  %4032 = vdwg.mxu0
  %v4033 = vadd.f32 %v3928, %v3971
  %v4034 = vadd.f32 %v3929, %v3991
  %v4035 = vadd.f32 %v3930, %v4011
  %v4036 = vadd.f32 %v3931, %v4031
  %v4037 = vmax.f32 %v4033, 0.0
  %v4038 = vmax.f32 %v4034, 0.0
  %v4039 = vmax.f32 %v4035, 0.0
  %v4040 = vmax.f32 %v4036, 0.0
  %v4041 = vadd.f32 %v4037, %v3103
  %v4042 = vadd.f32 %v4038, %v3104
  %v4043 = vadd.f32 %v4039, %v3105
  %v4044 = vadd.f32 %v4040, %v3106
  %v4045 = vld [vmem:[%s10] sm:$0xf]
  %v4046 = vld [vmem:[%s11] sm:$0xf]
  %4048 = vset.pattern.permute.xlu0 0
  %4049 = vperm.xlu0 %4048, %v4046
  %v4050 = vpop.permute.xlu0 %4049
  %v4053 = vsel %vm1238, %v4045, 0
  %4055 = vmatpush.msra.mxu0 0.0
  %4056 = vmatpush.msra.mxu0 0.0
  %4057 = vmatpush.msra.mxu0 0.0
  %4058 = vmatpush.msra.mxu0 0.0
  %4059 = vmatpush.msra.mxu0 0.0
  %4060 = vmatpush.msra.mxu0 0.0
  %4061 = vmatpush.msra.mxu0 0.0
  %4062 = vmatpush.msra.mxu0 0.0
  %4063 = vmatpush.msra.mxu0 0.0
  %4064 = vmatpush.msra.mxu0 0.0
  %4065 = vmatpush.msra.mxu0 0.0
  %4066 = vmatpush.msra.mxu0 0.0
  %4067 = vmatpush.msra.mxu0 0.0
  %4068 = vmatpush.msra.mxu0 0.0
  %4069 = vmatpush.msra.mxu0 0.0
  %4070 = vmatpush.msra.mxu0 %v4041
  %4071 = vmatmul.f32.gmra.mxu0 %v4053
  %v4072 = vpop.f32.mrf.mxu0
  %v4073 = vadd.f32 %v4050, %v4072
  %4074 = vdwg.mxu0
  %4075 = vmatpush.msra.mxu0 0.0
  %4076 = vmatpush.msra.mxu0 0.0
  %4077 = vmatpush.msra.mxu0 0.0
  %4078 = vmatpush.msra.mxu0 0.0
  %4079 = vmatpush.msra.mxu0 0.0
  %4080 = vmatpush.msra.mxu0 0.0
  %4081 = vmatpush.msra.mxu0 0.0
  %4082 = vmatpush.msra.mxu0 0.0
  %4083 = vmatpush.msra.mxu0 0.0
  %4084 = vmatpush.msra.mxu0 0.0
  %4085 = vmatpush.msra.mxu0 0.0
  %4086 = vmatpush.msra.mxu0 0.0
  %4087 = vmatpush.msra.mxu0 0.0
  %4088 = vmatpush.msra.mxu0 0.0
  %4089 = vmatpush.msra.mxu0 0.0
  %4090 = vmatpush.msra.mxu0 %v4042
  %4091 = vmatmul.f32.gmra.mxu0 %v4053
  %v4092 = vpop.f32.mrf.mxu0
  %v4093 = vadd.f32 %v4050, %v4092
  %4094 = vdwg.mxu0
  %4095 = vmatpush.msra.mxu0 0.0
  %4096 = vmatpush.msra.mxu0 0.0
  %4097 = vmatpush.msra.mxu0 0.0
  %4098 = vmatpush.msra.mxu0 0.0
  %4099 = vmatpush.msra.mxu0 0.0
  %4100 = vmatpush.msra.mxu0 0.0
  %4101 = vmatpush.msra.mxu0 0.0
  %4102 = vmatpush.msra.mxu0 0.0
  %4103 = vmatpush.msra.mxu0 0.0
  %4104 = vmatpush.msra.mxu0 0.0
  %4105 = vmatpush.msra.mxu0 0.0
  %4106 = vmatpush.msra.mxu0 0.0
  %4107 = vmatpush.msra.mxu0 0.0
  %4108 = vmatpush.msra.mxu0 0.0
  %4109 = vmatpush.msra.mxu0 0.0
  %4110 = vmatpush.msra.mxu0 %v4043
  %4111 = vmatmul.f32.gmra.mxu0 %v4053
  %v4112 = vpop.f32.mrf.mxu0
  %v4113 = vadd.f32 %v4050, %v4112
  %4114 = vdwg.mxu0
  %4115 = vmatpush.msra.mxu0 0.0
  %4116 = vmatpush.msra.mxu0 0.0
  %4117 = vmatpush.msra.mxu0 0.0
  %4118 = vmatpush.msra.mxu0 0.0
  %4119 = vmatpush.msra.mxu0 0.0
  %4120 = vmatpush.msra.mxu0 0.0
  %4121 = vmatpush.msra.mxu0 0.0
  %4122 = vmatpush.msra.mxu0 0.0
  %4123 = vmatpush.msra.mxu0 0.0
  %4124 = vmatpush.msra.mxu0 0.0
  %4125 = vmatpush.msra.mxu0 0.0
  %4126 = vmatpush.msra.mxu0 0.0
  %4127 = vmatpush.msra.mxu0 0.0
  %4128 = vmatpush.msra.mxu0 0.0
  %4129 = vmatpush.msra.mxu0 0.0
  %4130 = vmatpush.msra.mxu0 %v4044
  %4131 = vmatmul.f32.gmra.mxu0 %v4053
  %v4132 = vpop.f32.mrf.mxu0
  %v4133 = vadd.f32 %v4050, %v4132
  %4134 = vdwg.mxu0
  %v4139 = vrot.slane %v4093, 4
  %v4140 = vrot.slane %v4133, 4
  %v4141 = vsel %vm72, %v4073, %v4139
  %v4142 = vsel %vm72, %v4113, %v4140
  %4145 = vst [vmem:[%s12] sm:$0xff] %v4141
  %4146 = vst [vmem:[%s12 + $0x8] sm:$0xff] %v4142
  // Predicated region
  $region50: #{_lambda_.1} parent=0 // pred_check
    _
  $region51: #{_lambda_.1} parent=0 // pred_check_branch
    %4148 = sbr.rel (0) target = $region53
  $region52: #{_lambda_.1} parent=0 // pred_region
    _
  $region53: #{_lambda_.1} parent=0 // pred_fallthru
    _
  // Predicated region
  $region54: #{_lambda_.1} parent=0 // pred_check
    _
  $region55: #{_lambda_.1} parent=0 // pred_check_branch
    %4150 = sbr.rel (0) target = $region57
  $region56: #{_lambda_.1} parent=0 // pred_region
    _
  $region57: #{_lambda_.1} parent=0 // pred_fallthru
    _

</llo_original>
